<compile_context>
chip_gen: v5e
topology: v5e:2x2
jax: 0.10.0
libtpu: 0.0.40
codegen_flags: <defaults>
</compile_context>

<pallas_src>
import functools

import jax
import jax.numpy as jnp
import numpy as np
from jax.experimental import pallas as pl
from jax.experimental.pallas import tpu as pltpu


def lstm_cell_kernel(x_ref, h_ref, c_ref, wx_ref, wh_ref, b_ref,
                     h_out_ref, c_out_ref, *,
                     matmul_dtype, gate_dtype, exact_softmax):
    # x_ref / h_ref / c_ref : (1, C, tp)  activations, channels on sublanes
    # wx_ref / wh_ref       : (4C, C)     1x1-conv weights (grid-invariant)
    # b_ref                 : (4C, 1)     bias of layer_h (layer_x has bias=False)
    C = x_ref.shape[1]
    cdt = jnp.float32 if gate_dtype is None else gate_dtype

    x = x_ref[0]
    h = h_ref[0]
    if matmul_dtype is not None:
        x = x.astype(matmul_dtype)
        h = h.astype(matmul_dtype)

    # Two K=C dots instead of one K=2C dot on a concatenated buffer:
    # same MXU work, no (2C, tp) VMEM copy per grid step.
    gates = (jnp.dot(wx_ref[...], x, preferred_element_type=jnp.float32)
             + jnp.dot(wh_ref[...], h, preferred_element_type=jnp.float32))
    gates = gates + b_ref[...].astype(jnp.float32)              # broadcast over lanes

    def softmax_channels(z):
        # Softmax2d == per-pixel softmax over channels (sublane axis here).
        # max-subtraction and the sum/reciprocal stay f32 for stability; the
        # exp and the final scaling run in `cdt` (bf16 on v6e/v7x if requested).
        m = jnp.max(z, axis=0, keepdims=True)
        e = jnp.exp((z - m).astype(cdt))
        denom = jnp.sum(e.astype(jnp.float32), axis=0, keepdims=True)
        if exact_softmax:
            inv = 1.0 / denom
        else:
            inv = pl.reciprocal(denom, approx=True)
        return e * inv.astype(cdt)

    f = softmax_channels(gates[0 * C:1 * C, :])
    i = softmax_channels(gates[1 * C:2 * C, :])
    s = jnp.tanh(gates[2 * C:3 * C, :].astype(cdt))
    o = softmax_channels(gates[3 * C:4 * C, :])

    c_new = f * c_ref[0].astype(cdt) + i * s
    h_new = o * jnp.tanh(c_new)

    h_out_ref[0] = h_new.astype(h_out_ref.dtype)
    c_out_ref[0] = c_new.astype(c_out_ref.dtype)


def _vmem_capacity_bytes():
    try:
        return int(pltpu.get_tpu_info().vmem_capacity_bytes)
    except Exception:
        return 128 * 1024 * 1024          # v5e/v6e default if query unavailable


def _pick_pixel_tile(hw_pad, tp_max):
    """Largest lane-dense (multiple-of-128) tile <= tp_max dividing hw_pad."""
    if hw_pad <= tp_max:
        return hw_pad                      # hw_pad already a multiple of 128
    t = (tp_max // 128) * 128
    while t >= 128:
        if hw_pad % t == 0:
            return t
        t -= 128
    return 128                             # unreachable: 128 always divides hw_pad


def lstm_cell_pallas(x, h, c, w_x, w_h, b_h, *, pixel_tile=None,
                     matmul_dtype=jnp.bfloat16, gate_dtype=None,
                     exact_softmax=False):
    """x, h, c: (N, C, H, W); w_x, w_h: (4C, C) (1x1 conv weights squeezed);
    b_h: (4C,). Returns (h_new, c_new) in NCHW.

    matmul_dtype : dtype fed to the MXU (default bf16; accumulation is f32).
    gate_dtype   : dtype for exp/tanh/elementwise gate math (None -> f32;
                   bf16 recommended on v6e/v7x, keep f32 on v5e).
    exact_softmax: use exact division instead of the approximate EUP reciprocal.
    """
    N, C, H, W = x.shape
    HW = H * W

    vmem_cap = _vmem_capacity_bytes()
    if pixel_tile is None:
        # v7x-class chips have 64 MiB VMEM/TC -> cap the tile; v5e/v6e take 4096.
        pixel_tile = 2048 if vmem_cap <= 64 * 1024 * 1024 else 4096
    vmem_limit = max(32 * 1024 * 1024,
                     min(int(vmem_cap * 0.6), 80 * 1024 * 1024))

    # Metadata-only reshape; then pad the lane (pixel) axis to a multiple of
    # 128 so every block/store is lane-dense (no masked vst.msk partials).
    hw_pad = ((HW + 127) // 128) * 128
    tp = _pick_pixel_tile(hw_pad, pixel_tile)
    assert hw_pad % tp == 0 and tp % 128 == 0

    x3 = x.reshape(N, C, HW)
    h3 = h.reshape(N, C, HW)
    c3 = c.reshape(N, C, HW)
    if hw_pad != HW:
        pad = ((0, 0), (0, 0), (0, hw_pad - HW))
        x3 = jnp.pad(x3, pad)
        h3 = jnp.pad(h3, pad)
        c3 = jnp.pad(c3, pad)

    wx = w_x if matmul_dtype is None else w_x.astype(matmul_dtype)
    wh = w_h if matmul_dtype is None else w_h.astype(matmul_dtype)
    b2 = b_h.reshape(4 * C, 1).astype(jnp.float32)

    act_spec = pl.BlockSpec((1, C, tp), lambda n, j: (n, 0, j))
    # Grid-invariant operands (constant index_map): fetched once, kept in VMEM.
    w_spec = pl.BlockSpec((4 * C, C), lambda n, j: (0, 0))
    b_spec = pl.BlockSpec((4 * C, 1), lambda n, j: (0, 0))

    kernel = functools.partial(lstm_cell_kernel,
                               matmul_dtype=matmul_dtype,
                               gate_dtype=gate_dtype,
                               exact_softmax=exact_softmax)

    # NOTE: on v7x, if N * (hw_pad // tp) ends up < 4 the grid is too short to
    # feed both TensorCores + double-buffering; shrink pixel_tile at the call
    # site for such tiny feature maps.
    h_new, c_new = pl.pallas_call(
        kernel,
        out_shape=(
            jax.ShapeDtypeStruct((N, C, hw_pad), x.dtype),
            jax.ShapeDtypeStruct((N, C, hw_pad), x.dtype),
        ),
        grid_spec=pltpu.PrefetchScalarGridSpec(
            num_scalar_prefetch=0,
            grid=(N, hw_pad // tp),
            in_specs=[act_spec, act_spec, act_spec, w_spec, w_spec, b_spec],
            out_specs=[act_spec, act_spec],
        ),
        compiler_params=pltpu.CompilerParams(
            dimension_semantics=("parallel", "parallel"),
            vmem_limit_bytes=vmem_limit,
        ),
    )(x3, h3, c3, wx, wh, b2)

    if hw_pad != HW:
        h_new = h_new[:, :, :HW]
        c_new = c_new[:, :, :HW]
    return h_new.reshape(N, C, H, W), c_new.reshape(N, C, H, W)


def lstm_cell_ref(x, h, c, w_x, w_h, b_h):
    """Pure-JAX reference mirroring the PyTorch forward (NCHW)."""
    gates = (jnp.einsum('oc,nchw->nohw', w_x, x)
             + jnp.einsum('oc,nchw->nohw', w_h, h)
             + b_h[None, :, None, None])
    f, i, s, o = jnp.split(gates, 4, axis=1)
    f = jax.nn.softmax(f, axis=1)
    i = jax.nn.softmax(i, axis=1)
    o = jax.nn.softmax(o, axis=1)
    s = jnp.tanh(s)
    c_new = f * c + i * s
    h_new = o * jnp.tanh(c_new)
    return h_new, c_new


if __name__ == "__main__":
    channel_size = 128          # matches the module's constant
    N, H, W = 2, 16, 16         # small batch / spatial (HW=256 -> lane-dense)

    key = jax.random.PRNGKey(0)
    k1, k2, k3, k4, k5, k6 = jax.random.split(key, 6)

    x = jax.random.normal(k1, (N, channel_size, H, W), dtype=jnp.float32)
    h0 = jax.random.normal(k2, (N, channel_size, H, W), dtype=jnp.float32)
    c0 = jax.random.normal(k3, (N, channel_size, H, W), dtype=jnp.float32)

    # Conv2d(C, 4C, kernel=1) weights, squeezed to 2-D; default-uniform init.
    bound = 1.0 / np.sqrt(channel_size)
    w_x = jax.random.uniform(k4, (4 * channel_size, channel_size),
                             minval=-bound, maxval=bound, dtype=jnp.float32)
    w_h = jax.random.uniform(k5, (4 * channel_size, channel_size),
                             minval=-bound, maxval=bound, dtype=jnp.float32)
    b_h = jax.random.uniform(k6, (4 * channel_size,),
                             minval=-bound, maxval=bound, dtype=jnp.float32)

    h_ref_out, c_ref_out = lstm_cell_ref(x, h0, c0, w_x, w_h, b_h)

    # 1) Default fast path: bf16 at the MXU, f32 gate math, approx reciprocal.
    h_new, c_new = lstm_cell_pallas(x, h0, c0, w_x, w_h, b_h)
    jax.block_until_ready((h_new, c_new))
    np.testing.assert_allclose(np.asarray(h_new), np.asarray(h_ref_out),
                               rtol=1e-1, atol=1e-3)
    np.testing.assert_allclose(np.asarray(c_new), np.asarray(c_ref_out),
                               rtol=1e-1, atol=1e-3)

    # 2) Verification path: f32 dot, exact softmax division.
    h_f32, c_f32 = lstm_cell_pallas(x, h0, c0, w_x, w_h, b_h,
                                    matmul_dtype=None, exact_softmax=True)
    jax.block_until_ready((h_f32, c_f32))
    np.testing.assert_allclose(np.asarray(h_f32), np.asarray(h_ref_out),
                               rtol=1e-2, atol=1e-4)
    np.testing.assert_allclose(np.asarray(c_f32), np.asarray(c_ref_out),
                               rtol=1e-2, atol=1e-4)

    # 3) bf16 gate-math path (intended for v6e/v7x EUP/VPU; still correct elsewhere).
    h_bf, c_bf = lstm_cell_pallas(x, h0, c0, w_x, w_h, b_h,
                                  gate_dtype=jnp.bfloat16)
    jax.block_until_ready((h_bf, c_bf))
    np.testing.assert_allclose(np.asarray(h_bf), np.asarray(h_ref_out),
                               rtol=1.5e-1, atol=3e-3)
    np.testing.assert_allclose(np.asarray(c_bf), np.asarray(c_ref_out),
                               rtol=1.5e-1, atol=3e-3)

    print("KERNEL_OK")
</pallas_src>

<mosaic_0001>
module attributes {stable_mosaic.version = 11 : i64} {
  func.func @lstm_cell_kernel(%arg0: i32, %arg1: i32, %arg2: memref<1x128x256xf32, #tpu.memory_space<vmem>>, %arg3: memref<1x128x256xf32, #tpu.memory_space<vmem>>, %arg4: memref<1x128x256xf32, #tpu.memory_space<vmem>>, %arg5: memref<512x128xbf16, #tpu.memory_space<vmem>>, %arg6: memref<512x128xbf16, #tpu.memory_space<vmem>>, %arg7: memref<512x1xf32, #tpu.memory_space<vmem>>, %arg8: memref<1x128x256xf32, #tpu.memory_space<vmem>>, %arg9: memref<1x128x256xf32, #tpu.memory_space<vmem>>) attributes {dimension_semantics = [#tpu.dimension_semantics<parallel>, #tpu.dimension_semantics<parallel>], iteration_bounds = array<i64: 2, 1>, scalar_prefetch = 0 : i64, scratch_operands = 0 : i64, tpu.core_type = #tpu.core_type<tc>, window_params = [{transform_indices = @transform_0, window_bounds = array<i64: 1, 128, 256>}, {transform_indices = @transform_1, window_bounds = array<i64: 1, 128, 256>}, {transform_indices = @transform_2, window_bounds = array<i64: 1, 128, 256>}, {pipeline_mode = #tpu.pipeline_mode<synchronous>, transform_indices = @transform_3, window_bounds = array<i64: 512, 128>}, {pipeline_mode = #tpu.pipeline_mode<synchronous>, transform_indices = @transform_4, window_bounds = array<i64: 512, 128>}, {pipeline_mode = #tpu.pipeline_mode<synchronous>, transform_indices = @transform_5, window_bounds = array<i64: 512, 1>}, {transform_indices = @transform_6, window_bounds = array<i64: 1, 128, 256>}, {transform_indices = @transform_7, window_bounds = array<i64: 1, 128, 256>}]} {
    %c0 = arith.constant 0 : index
    %c0_0 = arith.constant 0 : index
    %c0_1 = arith.constant 0 : index
    %0 = vector.load %arg2[%c0, %c0_0, %c0_1] : memref<1x128x256xf32, #tpu.memory_space<vmem>>, vector<1x128x256xf32>
    %1 = vector.shape_cast %0 : vector<1x128x256xf32> to vector<128x256xf32>
    %c0_2 = arith.constant 0 : index
    %c0_3 = arith.constant 0 : index
    %c0_4 = arith.constant 0 : index
    %2 = vector.load %arg3[%c0_2, %c0_3, %c0_4] : memref<1x128x256xf32, #tpu.memory_space<vmem>>, vector<1x128x256xf32>
    %3 = vector.shape_cast %2 : vector<1x128x256xf32> to vector<128x256xf32>
    %4 = arith.truncf %1 : vector<128x256xf32> to vector<128x256xbf16>
    %5 = arith.truncf %3 : vector<128x256xf32> to vector<128x256xbf16>
    %c0_5 = arith.constant 0 : index
    %c0_6 = arith.constant 0 : index
    %6 = vector.load %arg5[%c0_5, %c0_6] : memref<512x128xbf16, #tpu.memory_space<vmem>>, vector<512x128xbf16>
    %cst = arith.constant dense<0.000000e+00> : vector<512x256xf32>
    %7 = tpu.matmul %6, %4, %cst {dimension_numbers = #tpu.dot_dimension_numbers<[1], [0], [0], [1], [0, 0, 1, 1], [], []>} : vector<512x128xbf16>, vector<128x256xbf16>, vector<512x256xf32> -> vector<512x256xf32>
    %c0_7 = arith.constant 0 : index
    %c0_8 = arith.constant 0 : index
    %8 = vector.load %arg6[%c0_7, %c0_8] : memref<512x128xbf16, #tpu.memory_space<vmem>>, vector<512x128xbf16>
    %cst_9 = arith.constant dense<0.000000e+00> : vector<512x256xf32>
    %9 = tpu.matmul %8, %5, %cst_9 {dimension_numbers = #tpu.dot_dimension_numbers<[1], [0], [0], [1], [0, 0, 1, 1], [], []>} : vector<512x128xbf16>, vector<128x256xbf16>, vector<512x256xf32> -> vector<512x256xf32>
    %10 = arith.addf %7, %9 : vector<512x256xf32>
    %c0_10 = arith.constant 0 : index
    %c0_11 = arith.constant 0 : index
    %11 = vector.load %arg7[%c0_10, %c0_11] : memref<512x1xf32, #tpu.memory_space<vmem>>, vector<512x1xf32>
    %12 = vector.broadcast %11 : vector<512x1xf32> to vector<512x256xf32>
    %13 = arith.addf %10, %12 : vector<512x256xf32>
    %14 = vector.extract_strided_slice %13 {offsets = [0, 0], sizes = [128, 256], strides = [1, 1]} : vector<512x256xf32> to vector<128x256xf32>
    %cst_12 = arith.constant dense<0xFF800000> : vector<256xf32>
    %15 = vector.multi_reduction <maximumf>, %14, %cst_12 [0] : vector<128x256xf32> to vector<256xf32>
    %16 = vector.shape_cast %15 : vector<256xf32> to vector<1x256xf32>
    %17 = vector.broadcast %16 : vector<1x256xf32> to vector<128x256xf32>
    %18 = arith.subf %14, %17 : vector<128x256xf32>
    %19 = math.exp %18 : vector<128x256xf32>
    %cst_13 = arith.constant dense<0.000000e+00> : vector<256xf32>
    %20 = vector.multi_reduction <add>, %19, %cst_13 [0] : vector<128x256xf32> to vector<256xf32>
    %21 = vector.shape_cast %20 : vector<256xf32> to vector<1x256xf32>
    %22 = tpu.reciprocal %21 {approx = true} : vector<1x256xf32> -> vector<1x256xf32>
    %23 = vector.broadcast %22 : vector<1x256xf32> to vector<128x256xf32>
    %24 = arith.mulf %19, %23 : vector<128x256xf32>
    %25 = vector.extract_strided_slice %13 {offsets = [128, 0], sizes = [128, 256], strides = [1, 1]} : vector<512x256xf32> to vector<128x256xf32>
    %cst_14 = arith.constant dense<0xFF800000> : vector<256xf32>
    %26 = vector.multi_reduction <maximumf>, %25, %cst_14 [0] : vector<128x256xf32> to vector<256xf32>
    %27 = vector.shape_cast %26 : vector<256xf32> to vector<1x256xf32>
    %28 = vector.broadcast %27 : vector<1x256xf32> to vector<128x256xf32>
    %29 = arith.subf %25, %28 : vector<128x256xf32>
    %30 = math.exp %29 : vector<128x256xf32>
    %cst_15 = arith.constant dense<0.000000e+00> : vector<256xf32>
    %31 = vector.multi_reduction <add>, %30, %cst_15 [0] : vector<128x256xf32> to vector<256xf32>
    %32 = vector.shape_cast %31 : vector<256xf32> to vector<1x256xf32>
    %33 = tpu.reciprocal %32 {approx = true} : vector<1x256xf32> -> vector<1x256xf32>
    %34 = vector.broadcast %33 : vector<1x256xf32> to vector<128x256xf32>
    %35 = arith.mulf %30, %34 : vector<128x256xf32>
    %36 = vector.extract_strided_slice %13 {offsets = [256, 0], sizes = [128, 256], strides = [1, 1]} : vector<512x256xf32> to vector<128x256xf32>
    %37 = math.tanh %36 : vector<128x256xf32>
    %38 = vector.extract_strided_slice %13 {offsets = [384, 0], sizes = [128, 256], strides = [1, 1]} : vector<512x256xf32> to vector<128x256xf32>
    %cst_16 = arith.constant dense<0xFF800000> : vector<256xf32>
    %39 = vector.multi_reduction <maximumf>, %38, %cst_16 [0] : vector<128x256xf32> to vector<256xf32>
    %40 = vector.shape_cast %39 : vector<256xf32> to vector<1x256xf32>
    %41 = vector.broadcast %40 : vector<1x256xf32> to vector<128x256xf32>
    %42 = arith.subf %38, %41 : vector<128x256xf32>
    %43 = math.exp %42 : vector<128x256xf32>
    %cst_17 = arith.constant dense<0.000000e+00> : vector<256xf32>
    %44 = vector.multi_reduction <add>, %43, %cst_17 [0] : vector<128x256xf32> to vector<256xf32>
    %45 = vector.shape_cast %44 : vector<256xf32> to vector<1x256xf32>
    %46 = tpu.reciprocal %45 {approx = true} : vector<1x256xf32> -> vector<1x256xf32>
    %47 = vector.broadcast %46 : vector<1x256xf32> to vector<128x256xf32>
    %48 = arith.mulf %43, %47 : vector<128x256xf32>
    %c0_18 = arith.constant 0 : index
    %c0_19 = arith.constant 0 : index
    %c0_20 = arith.constant 0 : index
    %49 = vector.load %arg4[%c0_18, %c0_19, %c0_20] : memref<1x128x256xf32, #tpu.memory_space<vmem>>, vector<1x128x256xf32>
    %50 = vector.shape_cast %49 : vector<1x128x256xf32> to vector<128x256xf32>
    %51 = arith.mulf %24, %50 : vector<128x256xf32>
    %52 = arith.mulf %35, %37 : vector<128x256xf32>
    %53 = arith.addf %51, %52 : vector<128x256xf32>
    %54 = math.tanh %53 : vector<128x256xf32>
    %55 = arith.mulf %48, %54 : vector<128x256xf32>
    %c0_21 = arith.constant 0 : index
    %c0_22 = arith.constant 0 : index
    %c0_23 = arith.constant 0 : index
    %56 = vector.load %arg8[%c0_21, %c0_22, %c0_23] : memref<1x128x256xf32, #tpu.memory_space<vmem>>, vector<1x128x256xf32>
    %57 = vector.shape_cast %56 : vector<1x128x256xf32> to vector<128x256xf32>
    %58 = vector.shape_cast %55 : vector<128x256xf32> to vector<1x128x256xf32>
    tpu.vector_store %arg8[%c0_21, %c0_22, %c0_23], %58 {strides = array<i32>} : memref<1x128x256xf32, #tpu.memory_space<vmem>>, vector<1x128x256xf32>,
    %c0_24 = arith.constant 0 : index
    %c0_25 = arith.constant 0 : index
    %c0_26 = arith.constant 0 : index
    %59 = vector.load %arg9[%c0_24, %c0_25, %c0_26] : memref<1x128x256xf32, #tpu.memory_space<vmem>>, vector<1x128x256xf32>
    %60 = vector.shape_cast %59 : vector<1x128x256xf32> to vector<128x256xf32>
    %61 = vector.shape_cast %53 : vector<128x256xf32> to vector<1x128x256xf32>
    tpu.vector_store %arg9[%c0_24, %c0_25, %c0_26], %61 {strides = array<i32>} : memref<1x128x256xf32, #tpu.memory_space<vmem>>, vector<1x128x256xf32>,
    return
  }
  func.func @transform_0(%arg0: i32, %arg1: i32) -> (i32, i32, i32) {
    %c0_i32 = arith.constant 0 : i32
    %c0_i32_0 = arith.constant 0 : i32
    return %arg0, %c0_i32, %arg1 : i32, i32, i32
  }
  func.func @transform_1(%arg0: i32, %arg1: i32) -> (i32, i32, i32) {
    %c0_i32 = arith.constant 0 : i32
    %c0_i32_0 = arith.constant 0 : i32
    return %arg0, %c0_i32, %arg1 : i32, i32, i32
  }
  func.func @transform_2(%arg0: i32, %arg1: i32) -> (i32, i32, i32) {
    %c0_i32 = arith.constant 0 : i32
    %c0_i32_0 = arith.constant 0 : i32
    return %arg0, %c0_i32, %arg1 : i32, i32, i32
  }
  func.func @transform_3(%arg0: i32, %arg1: i32) -> (i32, i32) {
    %c0_i32 = arith.constant 0 : i32
    %c0_i32_0 = arith.constant 0 : i32
    %c0_i32_1 = arith.constant 0 : i32
    return %c0_i32, %c0_i32_0 : i32, i32
  }
  func.func @transform_4(%arg0: i32, %arg1: i32) -> (i32, i32) {
    %c0_i32 = arith.constant 0 : i32
    %c0_i32_0 = arith.constant 0 : i32
    %c0_i32_1 = arith.constant 0 : i32
    return %c0_i32, %c0_i32_0 : i32, i32
  }
  func.func @transform_5(%arg0: i32, %arg1: i32) -> (i32, i32) {
    %c0_i32 = arith.constant 0 : i32
    %c0_i32_0 = arith.constant 0 : i32
    %c0_i32_1 = arith.constant 0 : i32
    return %c0_i32, %c0_i32_0 : i32, i32
  }
  func.func @transform_6(%arg0: i32, %arg1: i32) -> (i32, i32, i32) {
    %c0_i32 = arith.constant 0 : i32
    %c0_i32_0 = arith.constant 0 : i32
    return %arg0, %c0_i32, %arg1 : i32, i32, i32
  }
  func.func @transform_7(%arg0: i32, %arg1: i32) -> (i32, i32, i32) {
    %c0_i32 = arith.constant 0 : i32
    %c0_i32_0 = arith.constant 0 : i32
    return %arg0, %c0_i32, %arg1 : i32, i32, i32
  }
}

</mosaic_0001>

<llo_original>
// kernel: tpu_custom_call.1
$region0: #{tpu_custom_call.1}
  #allocation0 [shape = 'u32[]', space=smem, size = 0x4, offset = 0x4, fixed_abs, tag = 'smem constant byte address 0x4 - core index']
  #allocation1 [shape = 'u32[72,128]{1,0:T(1,128)}', space=vmem, size = 0x9000, scoped, tag = 'internal scratch']
  %s0 = inlined_call_operand.vmem [shape: f32[2,128,256], index: 0, kind: input, shape index: {}]
  %s1 = inlined_call_operand.hbm [shape: f32[2,128,256], index: 1, kind: input, shape index: {}]
  %s2 = inlined_call_operand.hbm [shape: f32[2,128,256], index: 2, kind: input, shape index: {}]
  %s3 = inlined_call_operand.hbm [shape: bf16[512,128], index: 3, kind: input, shape index: {}]
  %s4 = inlined_call_operand.hbm [shape: bf16[512,128], index: 4, kind: input, shape index: {}]
  %s5 = inlined_call_operand.vmem [shape: f32[512,1], index: 5, kind: input, shape index: {}]
  %s6 = inlined_call_operand.hbm [shape: f32[2,128,256], index: 6, kind: output, shape index: {0}]
  %s7 = inlined_call_operand.hbm [shape: f32[2,128,256], index: 7, kind: output, shape index: {1}]
  %8 = xla_tuple %s6, %s7
  %s9 = sld [smem:[#allocation0]]
  $region81: #{tpu_custom_call.1} parent=0
    _
  %s11 = ssub.s32 1, %s9
  %s12 = scalar_select 0, %s11, %s9
  $region1: #{tpu_custom_call.1} parent=0
    #allocation2 [shape = 'u8[262144]{0}', space=vmem, size = 0x40000, scoped, tag = 'input window, operand 1']
    #allocation3 [shape = 's32[2]{0}', space=sflag, size = 0x8, scoped, tag = 'scoped memory for tpu_custom_call.1']
    #allocation4 [shape = 's32[2]{0}', space=sflag, size = 0x8, scoped, tag = 'scoped memory for tpu_custom_call.1']
    #allocation5 [shape = 'u8[262144]{0}', space=vmem, size = 0x40000, scoped, tag = 'input window, operand 2']
    #allocation6 [shape = 's32[2]{0}', space=sflag, size = 0x8, scoped, tag = 'scoped memory for tpu_custom_call.1']
    #allocation7 [shape = 'u8[131072]{0}', space=vmem, size = 0x20000, scoped, tag = 'input window, operand 3, single buffered']
    #allocation8 [shape = 'u8[131072]{0}', space=vmem, size = 0x20000, scoped, tag = 'input window, operand 4, single buffered']
    #allocation9 [shape = 's32[1]{0}', space=sflag, size = 0x4, scoped, tag = 'scoped memory for tpu_custom_call.1']
    #allocation10 [shape = 'u8[262144]{0}', space=vmem, size = 0x40000, scoped, tag = 'output window, operand 0']
    #allocation11 [shape = 'u8[262144]{0}', space=vmem, size = 0x40000, scoped, tag = 'output window, operand 1']
    #allocation12 [shape = 's32[2]{0}', space=sflag, size = 0x8, scoped, tag = 'scoped memory for tpu_custom_call.1']
    %13 = vsyncpa [#allocation3], 0
    %s14 = scalar_lea.sflag [#allocation3], 1
    %15 = vsyncpa %s14, 0
    %16 = vsyncpa [#allocation6], 0
    %s17 = scalar_lea.sflag [#allocation6], 1
    %18 = vsyncpa %s17, 0
    %19 = vsyncpa [#allocation9], 0
    %20 = vsyncpa [#allocation4], 0
    %s21 = scalar_lea.sflag [#allocation4], 1
    %22 = vsyncpa %s21, 0
    %23 = vsyncpa [#allocation12], 0
    %s24 = scalar_lea.sflag [#allocation12], 1
    %25 = vsyncpa %s24, 0
    loop: start=0, step=1, limit=4
    $region2: #{tpu_custom_call.1} parent=1 // loop_pre_header
      _
    $region3: #{tpu_custom_call.1} parent=1 // loop_header
      %s27 = sphi 0, %s31
      %p28 = scmp.ge.s32.totalorder %s27, 4
      %s34 = sphi 0, %s46
      %s35 = sphi 0, %s42
      %s36 = sphi 0, %s34
      %s37 = sphi 0, %s35
      %s38 = sphi 0, %s36
      %s39 = sphi 0, %s37
      %s51 = sphi 0, %s53
      %s54 = sphi 0, %s51
      %s55 = sphi 0, %s54
      %s71 = sphi 0, %s55
      %s79 = sphi 0, %s81
      %s82 = sphi 0, %s79
      %s83 = sphi 0, %s82
      %s99 = sphi 0, %s83
      %s107 = sphi 0, %s109
      %s110 = sphi 0, %s107
      %s111 = sphi 0, %s110
      %s127 = sphi 0, %s111
      %s131 = sphi 0, %s131
      %s133 = sphi 0, %s131
      %s134 = sphi 0, %s133
      %s148 = sphi 0, %s134
      %s152 = sphi 0, %s152
      %s154 = sphi 0, %s152
      %s155 = sphi 0, %s154
      %s169 = sphi 0, %s155
      %s173 = sphi 0, %s173
      %s175 = sphi 0, %s173
      %s176 = sphi 0, %s175
      %s190 = sphi 0, %s176
      %s198 = sphi 0, %s200
      %s201 = sphi 0, %s198
      %s202 = sphi 0, %s201
      %s218 = sphi 0, %s202
      %s226 = sphi 0, %s228
      %s229 = sphi 0, %s226
      %s230 = sphi 0, %s229
      %s246 = sphi 0, %s230
    $region4: #{tpu_custom_call.1} parent=1 // loop_header_branch
      %30 = sbr.rel (%p28) target = $region8
    $region5: #{tpu_custom_call.1} parent=1 // loop_body
      %s32 = ssub.s32 %s27, 1
      %s33 = ssub.s32 %s27, 2
      %s40 = sadd.s32 1, %s35
      %p41 = scmp.ge.s32.totalorder %s40, 1
      %s42 = scalar_select %p41, 0, %s40
      %s43 = sadd.s32 1, %s34
      %s44 = scalar_select %p41, %s43, %s34
      %p45 = scmp.ge.s32.totalorder %s44, 2
      %s46 = scalar_select %p45, 0, %s44
      %s47 = ssub.s32 %s34, %s46
      %s48 = ssub.s32 %s35, %s42
      %s49 = sor.u32 %s47, %s48
      %p50 = scmp.eq.s32.totalorder %s49, 0
      %s52 = sadd.s32 %s51, 1
      %s53 = scalar_select %p50, %s51, %s52
      %p56 = pneg %p50
      %p57 = scmp.eq.s32.totalorder %s27, 1
      %p58 = por %p56, %p57
      %p59 = scmp.ne.s32.totalorder %s51, %s54
      %p60 = scmp.eq.s32.totalorder %s27, 0
      %p61 = por %p59, %p60
      %p62 = scmp.ne.s32.totalorder %s51, %s54
      %p63 = scmp.eq.s32.totalorder %s32, 1
      %p64 = por %p62, %p63
      %p65 = scmp.ne.s32.totalorder %s54, %s55
      %p66 = scmp.eq.s32.totalorder %s32, 0
      %p67 = por %p65, %p66
      %p68 = scmp.ne.s32.totalorder %s54, %s55
      %p69 = scmp.eq.s32.totalorder %s33, 1
      %p70 = por %p68, %p69
      %p72 = scmp.ne.s32.totalorder %s55, %s71
      %p73 = scmp.eq.s32.totalorder %s33, 0
      %p74 = por %p72, %p73
      %s75 = ssub.s32 %s34, %s46
      %s76 = ssub.s32 %s35, %s42
      %s77 = sor.u32 %s75, %s76
      %p78 = scmp.eq.s32.totalorder %s77, 0
      %s80 = sadd.s32 %s79, 1
      %s81 = scalar_select %p78, %s79, %s80
      %p84 = pneg %p78
      %p85 = scmp.eq.s32.totalorder %s27, 1
      %p86 = por %p84, %p85
      %p87 = scmp.ne.s32.totalorder %s79, %s82
      %p88 = scmp.eq.s32.totalorder %s27, 0
      %p89 = por %p87, %p88
      %p90 = scmp.ne.s32.totalorder %s79, %s82
      %p91 = scmp.eq.s32.totalorder %s32, 1
      %p92 = por %p90, %p91
      %p93 = scmp.ne.s32.totalorder %s82, %s83
      %p94 = scmp.eq.s32.totalorder %s32, 0
      %p95 = por %p93, %p94
      %p96 = scmp.ne.s32.totalorder %s82, %s83
      %p97 = scmp.eq.s32.totalorder %s33, 1
      %p98 = por %p96, %p97
      %p100 = scmp.ne.s32.totalorder %s83, %s99
      %p101 = scmp.eq.s32.totalorder %s33, 0
      %p102 = por %p100, %p101
      %s103 = ssub.s32 %s34, %s46
      %s104 = ssub.s32 %s35, %s42
      %s105 = sor.u32 %s103, %s104
      %p106 = scmp.eq.s32.totalorder %s105, 0
      %s108 = sadd.s32 %s107, 1
      %s109 = scalar_select %p106, %s107, %s108
      %p112 = pneg %p106
      %p113 = scmp.eq.s32.totalorder %s27, 1
      %p114 = por %p112, %p113
      %p115 = scmp.ne.s32.totalorder %s107, %s110
      %p116 = scmp.eq.s32.totalorder %s27, 0
      %p117 = por %p115, %p116
      %p118 = scmp.ne.s32.totalorder %s107, %s110
      %p119 = scmp.eq.s32.totalorder %s32, 1
      %p120 = por %p118, %p119
      %p121 = scmp.ne.s32.totalorder %s110, %s111
      %p122 = scmp.eq.s32.totalorder %s32, 0
      %p123 = por %p121, %p122
      %p124 = scmp.ne.s32.totalorder %s110, %s111
      %p125 = scmp.eq.s32.totalorder %s33, 1
      %p126 = por %p124, %p125
      %p128 = scmp.ne.s32.totalorder %s111, %s127
      %p129 = scmp.eq.s32.totalorder %s33, 0
      %p130 = por %p128, %p129
      %s132 = sadd.s32 %s131, 1
      %p135 = scmp.eq.s32.totalorder %s27, 1
      %p136 = scmp.ne.s32.totalorder %s131, %s133
      %p137 = scmp.eq.s32.totalorder %s27, 0
      %p138 = por %p136, %p137
      %p139 = scmp.ne.s32.totalorder %s131, %s133
      %p140 = scmp.eq.s32.totalorder %s32, 1
      %p141 = por %p139, %p140
      %p142 = scmp.ne.s32.totalorder %s133, %s134
      %p143 = scmp.eq.s32.totalorder %s32, 0
      %p144 = por %p142, %p143
      %p145 = scmp.ne.s32.totalorder %s133, %s134
      %p146 = scmp.eq.s32.totalorder %s33, 1
      %p147 = por %p145, %p146
      %p149 = scmp.ne.s32.totalorder %s134, %s148
      %p150 = scmp.eq.s32.totalorder %s33, 0
      %p151 = por %p149, %p150
      %s153 = sadd.s32 %s152, 1
      %p156 = scmp.eq.s32.totalorder %s27, 1
      %p157 = scmp.ne.s32.totalorder %s152, %s154
      %p158 = scmp.eq.s32.totalorder %s27, 0
      %p159 = por %p157, %p158
      %p160 = scmp.ne.s32.totalorder %s152, %s154
      %p161 = scmp.eq.s32.totalorder %s32, 1
      %p162 = por %p160, %p161
      %p163 = scmp.ne.s32.totalorder %s154, %s155
      %p164 = scmp.eq.s32.totalorder %s32, 0
      %p165 = por %p163, %p164
      %p166 = scmp.ne.s32.totalorder %s154, %s155
      %p167 = scmp.eq.s32.totalorder %s33, 1
      %p168 = por %p166, %p167
      %p170 = scmp.ne.s32.totalorder %s155, %s169
      %p171 = scmp.eq.s32.totalorder %s33, 0
      %p172 = por %p170, %p171
      %s174 = sadd.s32 %s173, 1
      %p177 = scmp.eq.s32.totalorder %s27, 1
      %p178 = scmp.ne.s32.totalorder %s173, %s175
      %p179 = scmp.eq.s32.totalorder %s27, 0
      %p180 = por %p178, %p179
      %p181 = scmp.ne.s32.totalorder %s173, %s175
      %p182 = scmp.eq.s32.totalorder %s32, 1
      %p183 = por %p181, %p182
      %p184 = scmp.ne.s32.totalorder %s175, %s176
      %p185 = scmp.eq.s32.totalorder %s32, 0
      %p186 = por %p184, %p185
      %p187 = scmp.ne.s32.totalorder %s175, %s176
      %p188 = scmp.eq.s32.totalorder %s33, 1
      %p189 = por %p187, %p188
      %p191 = scmp.ne.s32.totalorder %s176, %s190
      %p192 = scmp.eq.s32.totalorder %s33, 0
      %p193 = por %p191, %p192
      %s194 = ssub.s32 %s34, %s46
      %s195 = ssub.s32 %s35, %s42
      %s196 = sor.u32 %s194, %s195
      %p197 = scmp.eq.s32.totalorder %s196, 0
      %s199 = sadd.s32 %s198, 1
      %s200 = scalar_select %p197, %s198, %s199
      %p203 = pneg %p197
      %p204 = scmp.eq.s32.totalorder %s27, 1
      %p205 = por %p203, %p204
      %p206 = scmp.ne.s32.totalorder %s198, %s201
      %p207 = scmp.eq.s32.totalorder %s27, 0
      %p208 = por %p206, %p207
      %p209 = scmp.ne.s32.totalorder %s198, %s201
      %p210 = scmp.eq.s32.totalorder %s32, 1
      %p211 = por %p209, %p210
      %p212 = scmp.ne.s32.totalorder %s201, %s202
      %p213 = scmp.eq.s32.totalorder %s32, 0
      %p214 = por %p212, %p213
      %p215 = scmp.ne.s32.totalorder %s201, %s202
      %p216 = scmp.eq.s32.totalorder %s33, 1
      %p217 = por %p215, %p216
      %p219 = scmp.ne.s32.totalorder %s202, %s218
      %p220 = scmp.eq.s32.totalorder %s33, 0
      %p221 = por %p219, %p220
      %s222 = ssub.s32 %s34, %s46
      %s223 = ssub.s32 %s35, %s42
      %s224 = sor.u32 %s222, %s223
      %p225 = scmp.eq.s32.totalorder %s224, 0
      %s227 = sadd.s32 %s226, 1
      %s228 = scalar_select %p225, %s226, %s227
      %p231 = pneg %p225
      %p232 = scmp.eq.s32.totalorder %s27, 1
      %p233 = por %p231, %p232
      %p234 = scmp.ne.s32.totalorder %s226, %s229
      %p235 = scmp.eq.s32.totalorder %s27, 0
      %p236 = por %p234, %p235
      %p237 = scmp.ne.s32.totalorder %s226, %s229
      %p238 = scmp.eq.s32.totalorder %s32, 1
      %p239 = por %p237, %p238
      %p240 = scmp.ne.s32.totalorder %s229, %s230
      %p241 = scmp.eq.s32.totalorder %s32, 0
      %p242 = por %p240, %p241
      %p243 = scmp.ne.s32.totalorder %s229, %s230
      %p244 = scmp.eq.s32.totalorder %s33, 1
      %p245 = por %p243, %p244
      %p247 = scmp.ne.s32.totalorder %s230, %s246
      %p248 = scmp.eq.s32.totalorder %s33, 0
      %p249 = por %p247, %p248
      %p250 = scmp.le.s32.totalorder 1, %s27
      %p251 = scmp.lt.s32.totalorder %s27, 3
      %p252 = pnand %p250, %p251
      %p253 = pneg %p252
      // Predicated region
      $region9: #{tpu_custom_call.1} parent=5 // pred_check
        _
      $region10: #{tpu_custom_call.1} parent=5 // pred_check_branch
        %255 = sbr.rel (%p252) target = $region12
      $region11: #{tpu_custom_call.1} parent=5 // pred_region
        %s256 = ssub.s32 %s27, 1
        // Predicated region
        $region13: #{tpu_custom_call.1} parent=11 // pred_check
          %p257 = pneg %p144
        $region14: #{tpu_custom_call.1} parent=11 // pred_check_branch
          %259 = sbr.rel (%p257) target = $region16
        $region15: #{tpu_custom_call.1} parent=11 // pred_region
          %261 = vsyncadd [#allocation6], 0
          %s262 = sshll.u32 %s3, 4
          %s263 = int_to_ptr.hbm [resolvable:$true] %s262
          %s264 = sshll.u32 [#allocation7], 4
          %s265 = int_to_ptr.vmem [resolvable:$true] %s264
          %270 = dma.hbm_to_vmem [thread:$0]  %s263, 4096, %s265, [#allocation6], 64, 64, 4
        $region16: #{tpu_custom_call.1} parent=11 // pred_fallthru
          _
        // Predicated region
        $region17: #{tpu_custom_call.1} parent=11 // pred_check
          %p271 = pneg %p165
        $region18: #{tpu_custom_call.1} parent=11 // pred_check_branch
          %273 = sbr.rel (%p271) target = $region20
        $region19: #{tpu_custom_call.1} parent=11 // pred_region
          %275 = vsyncadd [#allocation9], 0
          %s276 = sshll.u32 %s4, 4
          %s277 = int_to_ptr.hbm [resolvable:$true] %s276
          %s278 = sshll.u32 [#allocation8], 4
          %s279 = int_to_ptr.vmem [resolvable:$true] %s278
          %284 = dma.hbm_to_vmem [thread:$0]  %s277, 4096, %s279, [#allocation9], 64, 64, 4
        $region20: #{tpu_custom_call.1} parent=11 // pred_fallthru
          _
        // Predicated region
        $region21: #{tpu_custom_call.1} parent=11 // pred_check
          %p285 = pneg %p186
        $region22: #{tpu_custom_call.1} parent=11 // pred_check_branch
          %287 = sbr.rel (%p285) target = $region24
        $region23: #{tpu_custom_call.1} parent=11 // pred_region
          _
        $region24: #{tpu_custom_call.1} parent=11 // pred_fallthru
          _
      $region12: #{tpu_custom_call.1} parent=5 // pred_fallthru
        _
      %p288 = scmp.lt.s32.totalorder %s27, 2
      // Predicated region
      $region25: #{tpu_custom_call.1} parent=5 // pred_check
        %p289 = pneg %p288
      $region26: #{tpu_custom_call.1} parent=5 // pred_check_branch
        %291 = sbr.rel (%p289) target = $region28
      $region27: #{tpu_custom_call.1} parent=5 // pred_region
        // Predicated region
        $region29: #{tpu_custom_call.1} parent=27 // pred_check
          %p292 = pneg %p61
        $region30: #{tpu_custom_call.1} parent=27 // pred_check_branch
          %294 = sbr.rel (%p292) target = $region32
        $region31: #{tpu_custom_call.1} parent=27 // pred_region
          %s295 = smul.u32 2, %s35
          %p296 = scmp.lt.s32.totalorder %s34, 1
          %s297 = scalar_select %p296, %s34, 1
          %p298 = scmp.lt.s32.totalorder %s295, 1
          %s299 = scalar_select %p298, %s295, 1
          %s300 = smul.addr %s297, 32
          %s301 = sadd.s32 %s299, %s300
          %s302 = smul.addr %s301, 8
          %s303 = scalar_lea.vmem %s0, %s302
          %s304 = smul.u32 2, %s35
        $region32: #{tpu_custom_call.1} parent=27 // pred_fallthru
          _
        // Predicated region
        $region33: #{tpu_custom_call.1} parent=27 // pred_check
          %p305 = pneg %p89
        $region34: #{tpu_custom_call.1} parent=27 // pred_check_branch
          %307 = sbr.rel (%p305) target = $region36
        $region35: #{tpu_custom_call.1} parent=27 // pred_region
          %s308 = sand.u32 %s79, 1
          %s309 = scalar_lea.sflag [#allocation3], %s308
          %s310 = sand.u32 %s79, 1
          %s311 = smul.addr %s310, 256
          %s312 = scalar_lea.vmem [#allocation2], %s311
          %s313 = smul.u32 2, %s35
          %315 = vsyncadd %s309, 0
          %s316 = smul.addr %s34, 32
          %s317 = sadd.s32 %s313, %s316
          %s318 = smul.addr %s317, 8
          %s319 = scalar_lea.hbm %s1, %s318
          %s320 = sshll.u32 %s319, 4
          %s321 = int_to_ptr.hbm [resolvable:$true] %s320
          %s322 = sshll.u32 %s312, 4
          %s323 = int_to_ptr.vmem [resolvable:$true] %s322
          %328 = dma.hbm_to_vmem [thread:$0]  %s321, 4096, %s323, %s309, 256, 256, 16
        $region36: #{tpu_custom_call.1} parent=27 // pred_fallthru
          _
        // Predicated region
        $region37: #{tpu_custom_call.1} parent=27 // pred_check
          %p329 = pneg %p117
        $region38: #{tpu_custom_call.1} parent=27 // pred_check_branch
          %331 = sbr.rel (%p329) target = $region40
        $region39: #{tpu_custom_call.1} parent=27 // pred_region
          %s332 = sand.u32 %s27, 1
          %s333 = scalar_lea.sflag [#allocation6], %s332
          %s334 = sand.u32 %s107, 1
          %s335 = smul.addr %s334, 256
          %s336 = scalar_lea.vmem [#allocation5], %s335
          %s337 = smul.u32 2, %s35
          %339 = vsyncadd %s333, 0
          %s340 = smul.addr %s34, 32
          %s341 = sadd.s32 %s337, %s340
          %s342 = smul.addr %s341, 8
          %s343 = scalar_lea.hbm %s2, %s342
          %s344 = sshll.u32 %s343, 4
          %s345 = int_to_ptr.hbm [resolvable:$true] %s344
          %s346 = sshll.u32 %s336, 4
          %s347 = int_to_ptr.vmem [resolvable:$true] %s346
          %352 = dma.hbm_to_vmem [thread:$0]  %s345, 4096, %s347, %s333, 256, 256, 16
        $region40: #{tpu_custom_call.1} parent=27 // pred_fallthru
          _
      $region28: #{tpu_custom_call.1} parent=5 // pred_fallthru
        _
      %p353 = scmp.le.s32.totalorder 1, %s27
      %p354 = scmp.lt.s32.totalorder %s27, 3
      %p355 = pnand %p353, %p354
      %p356 = pneg %p355
      // Predicated region
      $region41: #{tpu_custom_call.1} parent=5 // pred_check
        _
      $region42: #{tpu_custom_call.1} parent=5 // pred_check_branch
        %358 = sbr.rel (%p355) target = $region44
      $region43: #{tpu_custom_call.1} parent=5 // pred_region
        %s359 = ssub.s32 %s27, 1
        %s360 = sand.u32 %s82, 1
        %s361 = scalar_lea.sflag [#allocation3], %s360
        %s362 = sand.u32 %s82, 1
        %s363 = smul.addr %s362, 256
        %s364 = scalar_lea.vmem [#allocation2], %s363
        // Predicated region
        $region45: #{tpu_custom_call.1} parent=43 // pred_check
          %p365 = pneg %p95
        $region46: #{tpu_custom_call.1} parent=43 // pred_check_branch
          %367 = sbr.rel (%p365) target = $region48
        $region47: #{tpu_custom_call.1} parent=43 // pred_region
          %369 = dma.done %s361, 4096
        $region48: #{tpu_custom_call.1} parent=43 // pred_fallthru
          _
        %s370 = sand.u32 %s32, 1
        %s371 = scalar_lea.sflag [#allocation6], %s370
        %s372 = sand.u32 %s110, 1
        %s373 = smul.addr %s372, 256
        %s374 = scalar_lea.vmem [#allocation5], %s373
        // Predicated region
        $region49: #{tpu_custom_call.1} parent=43 // pred_check
          %p375 = pneg %p123
        $region50: #{tpu_custom_call.1} parent=43 // pred_check_branch
          %377 = sbr.rel (%p375) target = $region52
        $region51: #{tpu_custom_call.1} parent=43 // pred_region
          %379 = dma.done %s371, 4096
        $region52: #{tpu_custom_call.1} parent=43 // pred_fallthru
          _
        // Predicated region
        $region53: #{tpu_custom_call.1} parent=43 // pred_check
          %p380 = pneg %p144
        $region54: #{tpu_custom_call.1} parent=43 // pred_check_branch
          %382 = sbr.rel (%p380) target = $region56
        $region55: #{tpu_custom_call.1} parent=43 // pred_region
          %384 = dma.done [#allocation6], 4096
        $region56: #{tpu_custom_call.1} parent=43 // pred_fallthru
          _
        // Predicated region
        $region57: #{tpu_custom_call.1} parent=43 // pred_check
          %p385 = pneg %p165
        $region58: #{tpu_custom_call.1} parent=43 // pred_check_branch
          %387 = sbr.rel (%p385) target = $region60
        $region59: #{tpu_custom_call.1} parent=43 // pred_region
          %389 = dma.done [#allocation9], 4096
        $region60: #{tpu_custom_call.1} parent=43 // pred_fallthru
          _
        %s390 = smul.u32 2, %s37
        %p391 = scmp.lt.s32.totalorder %s36, 1
        %s392 = scalar_select %p391, %s36, 1
        %p393 = scmp.lt.s32.totalorder %s390, 1
        %s394 = scalar_select %p393, %s390, 1
        %s395 = smul.addr %s392, 32
        %s396 = sadd.s32 %s394, %s395
        %s397 = smul.addr %s396, 8
        %s398 = scalar_lea.vmem %s0, %s397
        %p399 = pneg %p67
        %p400 = pneg %p64
        %s401 = sand.u32 %s82, 1
        %s402 = scalar_lea.sflag [#allocation3], %s401
        %s403 = sand.u32 %s82, 1
        %s404 = smul.addr %s403, 256
        %s405 = scalar_lea.vmem [#allocation2], %s404
        %p406 = pneg %p95
        %p407 = pneg %p92
        %s408 = sand.u32 %s32, 1
        %s409 = scalar_lea.sflag [#allocation6], %s408
        %s410 = sand.u32 %s110, 1
        %s411 = smul.addr %s410, 256
        %s412 = scalar_lea.vmem [#allocation5], %s411
        %p413 = pneg %p123
        %p414 = pneg %p120
        %p415 = pneg %p144
        %p416 = pneg %p141
        %p417 = pneg %p165
        %p418 = pneg %p162
        %p419 = pneg %p186
        %p420 = pneg %p183
        %p421 = pneg %p214
        %p422 = pneg %p211
        %s423 = sand.u32 %s201, 1
        %s424 = scalar_lea.sflag [#allocation4], %s423
        %s425 = sand.u32 %s201, 1
        %s426 = smul.addr %s425, 256
        %s427 = scalar_lea.vmem [#allocation10], %s426
        %p428 = pneg %p242
        %p429 = pneg %p239
        %s430 = sand.u32 %s229, 1
        %s431 = scalar_lea.sflag [#allocation12], %s430
        %s432 = sand.u32 %s229, 1
        %s433 = smul.addr %s432, 256
        %s434 = scalar_lea.vmem [#allocation11], %s433
        %s435 = smul.u32 2, %s37
        %p436 = scmp.lt.s32.totalorder %s36, 1
        %s437 = scalar_select %p436, %s36, 1
        %p438 = scmp.lt.s32.totalorder %s435, 1
        %s439 = scalar_select %p438, %s435, 1
        %s440 = smul.addr %s437, 32
        %s441 = sadd.s32 %s439, %s440
        %s442 = smul.addr %s441, 8
        %s443 = scalar_lea.vmem %s0, %s442
        %s444 = smul.u32 2, %s37
        %s445 = smul.u32 2, %s37
        %s446 = smul.u32 2, %s37
        %s447 = smul.u32 2, %s37
        %s448 = smul.u32 2, %s37
        %v449 = vld [vmem:[%s443] sm:$0xff]
        %v450 = vld [vmem:[%s443 + $0x8] sm:$0xff]
        %v451 = vld [vmem:[%s443 + $0x10] sm:$0xff]
        %v452 = vld [vmem:[%s443 + $0x18] sm:$0xff]
        %v453 = vld [vmem:[%s443 + $0x20] sm:$0xff]
        %v454 = vld [vmem:[%s443 + $0x28] sm:$0xff]
        %v455 = vld [vmem:[%s443 + $0x30] sm:$0xff]
        %v456 = vld [vmem:[%s443 + $0x38] sm:$0xff]
        %v457 = vld [vmem:[%s443 + $0x40] sm:$0xff]
        %v458 = vld [vmem:[%s443 + $0x48] sm:$0xff]
        %v459 = vld [vmem:[%s443 + $0x50] sm:$0xff]
        %v460 = vld [vmem:[%s443 + $0x58] sm:$0xff]
        %v461 = vld [vmem:[%s443 + $0x60] sm:$0xff]
        %v462 = vld [vmem:[%s443 + $0x68] sm:$0xff]
        %v463 = vld [vmem:[%s443 + $0x70] sm:$0xff]
        %v464 = vld [vmem:[%s443 + $0x78] sm:$0xff]
        %v465 = vld [vmem:[%s443 + $0x80] sm:$0xff]
        %v466 = vld [vmem:[%s443 + $0x88] sm:$0xff]
        %v467 = vld [vmem:[%s443 + $0x90] sm:$0xff]
        %v468 = vld [vmem:[%s443 + $0x98] sm:$0xff]
        %v469 = vld [vmem:[%s443 + $0xa0] sm:$0xff]
        %v470 = vld [vmem:[%s443 + $0xa8] sm:$0xff]
        %v471 = vld [vmem:[%s443 + $0xb0] sm:$0xff]
        %v472 = vld [vmem:[%s443 + $0xb8] sm:$0xff]
        %v473 = vld [vmem:[%s443 + $0xc0] sm:$0xff]
        %v474 = vld [vmem:[%s443 + $0xc8] sm:$0xff]
        %v475 = vld [vmem:[%s443 + $0xd0] sm:$0xff]
        %v476 = vld [vmem:[%s443 + $0xd8] sm:$0xff]
        %v477 = vld [vmem:[%s443 + $0xe0] sm:$0xff]
        %v478 = vld [vmem:[%s443 + $0xe8] sm:$0xff]
        %v479 = vld [vmem:[%s443 + $0xf0] sm:$0xff]
        %v480 = vld [vmem:[%s443 + $0xf8] sm:$0xff]
        %v481 = vld [vmem:[%s364] sm:$0xff]
        %v482 = vld [vmem:[%s364 + $0x8] sm:$0xff]
        %v483 = vld [vmem:[%s364 + $0x10] sm:$0xff]
        %v484 = vld [vmem:[%s364 + $0x18] sm:$0xff]
        %v485 = vld [vmem:[%s364 + $0x20] sm:$0xff]
        %v486 = vld [vmem:[%s364 + $0x28] sm:$0xff]
        %v487 = vld [vmem:[%s364 + $0x30] sm:$0xff]
        %v488 = vld [vmem:[%s364 + $0x38] sm:$0xff]
        %v489 = vld [vmem:[%s364 + $0x40] sm:$0xff]
        %v490 = vld [vmem:[%s364 + $0x48] sm:$0xff]
        %v491 = vld [vmem:[%s364 + $0x50] sm:$0xff]
        %v492 = vld [vmem:[%s364 + $0x58] sm:$0xff]
        %v493 = vld [vmem:[%s364 + $0x60] sm:$0xff]
        %v494 = vld [vmem:[%s364 + $0x68] sm:$0xff]
        %v495 = vld [vmem:[%s364 + $0x70] sm:$0xff]
        %v496 = vld [vmem:[%s364 + $0x78] sm:$0xff]
        %v497 = vld [vmem:[%s364 + $0x80] sm:$0xff]
        %v498 = vld [vmem:[%s364 + $0x88] sm:$0xff]
        %v499 = vld [vmem:[%s364 + $0x90] sm:$0xff]
        %v500 = vld [vmem:[%s364 + $0x98] sm:$0xff]
        %v501 = vld [vmem:[%s364 + $0xa0] sm:$0xff]
        %v502 = vld [vmem:[%s364 + $0xa8] sm:$0xff]
        %v503 = vld [vmem:[%s364 + $0xb0] sm:$0xff]
        %v504 = vld [vmem:[%s364 + $0xb8] sm:$0xff]
        %v505 = vld [vmem:[%s364 + $0xc0] sm:$0xff]
        %v506 = vld [vmem:[%s364 + $0xc8] sm:$0xff]
        %v507 = vld [vmem:[%s364 + $0xd0] sm:$0xff]
        %v508 = vld [vmem:[%s364 + $0xd8] sm:$0xff]
        %v509 = vld [vmem:[%s364 + $0xe0] sm:$0xff]
        %v510 = vld [vmem:[%s364 + $0xe8] sm:$0xff]
        %v511 = vld [vmem:[%s364 + $0xf0] sm:$0xff]
        %v512 = vld [vmem:[%s364 + $0xf8] sm:$0xff]
        %v513 = vpack.c.bf16 %v451, %v449
        %v514 = vpack.c.bf16 %v452, %v450
        %v515 = vpack.c.bf16 %v455, %v453
        %v516 = vpack.c.bf16 %v456, %v454
        %v517 = vpack.c.bf16 %v459, %v457
        %v518 = vpack.c.bf16 %v460, %v458
        %v519 = vpack.c.bf16 %v463, %v461
        %v520 = vpack.c.bf16 %v464, %v462
        %v521 = vpack.c.bf16 %v467, %v465
        %v522 = vpack.c.bf16 %v468, %v466
        %v523 = vpack.c.bf16 %v471, %v469
        %v524 = vpack.c.bf16 %v472, %v470
        %v525 = vpack.c.bf16 %v475, %v473
        %v526 = vpack.c.bf16 %v476, %v474
        %v527 = vpack.c.bf16 %v479, %v477
        %v528 = vpack.c.bf16 %v480, %v478
        %v529 = vpack.c.bf16 %v483, %v481
        %v530 = vpack.c.bf16 %v484, %v482
        %v531 = vpack.c.bf16 %v487, %v485
        %v532 = vpack.c.bf16 %v488, %v486
        %v533 = vpack.c.bf16 %v491, %v489
        %v534 = vpack.c.bf16 %v492, %v490
        %v535 = vpack.c.bf16 %v495, %v493
        %v536 = vpack.c.bf16 %v496, %v494
        %v537 = vpack.c.bf16 %v499, %v497
        %v538 = vpack.c.bf16 %v500, %v498
        %v539 = vpack.c.bf16 %v503, %v501
        %v540 = vpack.c.bf16 %v504, %v502
        %v541 = vpack.c.bf16 %v507, %v505
        %v542 = vpack.c.bf16 %v508, %v506
        %v543 = vpack.c.bf16 %v511, %v509
        %v544 = vpack.c.bf16 %v512, %v510
        %v545 = vld [vmem:[#allocation7] sm:$0xf]
        %v546 = vld [vmem:[#allocation7 + $0x4] sm:$0xf]
        %v547 = vld [vmem:[#allocation7 + $0x8] sm:$0xf]
        %v548 = vld [vmem:[#allocation7 + $0xc] sm:$0xf]
        %v549 = vld [vmem:[#allocation7 + $0x10] sm:$0xf]
        %v550 = vld [vmem:[#allocation7 + $0x14] sm:$0xf]
        %v551 = vld [vmem:[#allocation7 + $0x18] sm:$0xf]
        %v552 = vld [vmem:[#allocation7 + $0x1c] sm:$0xf]
        %v553 = vld [vmem:[#allocation7 + $0x20] sm:$0xf]
        %v554 = vld [vmem:[#allocation7 + $0x24] sm:$0xf]
        %v555 = vld [vmem:[#allocation7 + $0x28] sm:$0xf]
        %v556 = vld [vmem:[#allocation7 + $0x2c] sm:$0xf]
        %v557 = vld [vmem:[#allocation7 + $0x30] sm:$0xf]
        %v558 = vld [vmem:[#allocation7 + $0x34] sm:$0xf]
        %v559 = vld [vmem:[#allocation7 + $0x38] sm:$0xf]
        %v560 = vld [vmem:[#allocation7 + $0x3c] sm:$0xf]
        %v561 = vld [vmem:[#allocation7 + $0x40] sm:$0xf]
        %v562 = vld [vmem:[#allocation7 + $0x44] sm:$0xf]
        %v563 = vld [vmem:[#allocation7 + $0x48] sm:$0xf]
        %v564 = vld [vmem:[#allocation7 + $0x4c] sm:$0xf]
        %v565 = vld [vmem:[#allocation7 + $0x50] sm:$0xf]
        %v566 = vld [vmem:[#allocation7 + $0x54] sm:$0xf]
        %v567 = vld [vmem:[#allocation7 + $0x58] sm:$0xf]
        %v568 = vld [vmem:[#allocation7 + $0x5c] sm:$0xf]
        %v569 = vld [vmem:[#allocation7 + $0x60] sm:$0xf]
        %v570 = vld [vmem:[#allocation7 + $0x64] sm:$0xf]
        %v571 = vld [vmem:[#allocation7 + $0x68] sm:$0xf]
        %v572 = vld [vmem:[#allocation7 + $0x6c] sm:$0xf]
        %v573 = vld [vmem:[#allocation7 + $0x70] sm:$0xf]
        %v574 = vld [vmem:[#allocation7 + $0x74] sm:$0xf]
        %v575 = vld [vmem:[#allocation7 + $0x78] sm:$0xf]
        %v576 = vld [vmem:[#allocation7 + $0x7c] sm:$0xf]
        %v577 = vld [vmem:[#allocation7 + $0x80] sm:$0xf]
        %v578 = vld [vmem:[#allocation7 + $0x84] sm:$0xf]
        %v579 = vld [vmem:[#allocation7 + $0x88] sm:$0xf]
        %v580 = vld [vmem:[#allocation7 + $0x8c] sm:$0xf]
        %v581 = vld [vmem:[#allocation7 + $0x90] sm:$0xf]
        %v582 = vld [vmem:[#allocation7 + $0x94] sm:$0xf]
        %v583 = vld [vmem:[#allocation7 + $0x98] sm:$0xf]
        %v584 = vld [vmem:[#allocation7 + $0x9c] sm:$0xf]
        %v585 = vld [vmem:[#allocation7 + $0xa0] sm:$0xf]
        %v586 = vld [vmem:[#allocation7 + $0xa4] sm:$0xf]
        %v587 = vld [vmem:[#allocation7 + $0xa8] sm:$0xf]
        %v588 = vld [vmem:[#allocation7 + $0xac] sm:$0xf]
        %v589 = vld [vmem:[#allocation7 + $0xb0] sm:$0xf]
        %v590 = vld [vmem:[#allocation7 + $0xb4] sm:$0xf]
        %v591 = vld [vmem:[#allocation7 + $0xb8] sm:$0xf]
        %v592 = vld [vmem:[#allocation7 + $0xbc] sm:$0xf]
        %v593 = vld [vmem:[#allocation7 + $0xc0] sm:$0xf]
        %v594 = vld [vmem:[#allocation7 + $0xc4] sm:$0xf]
        %v595 = vld [vmem:[#allocation7 + $0xc8] sm:$0xf]
        %v596 = vld [vmem:[#allocation7 + $0xcc] sm:$0xf]
        %v597 = vld [vmem:[#allocation7 + $0xd0] sm:$0xf]
        %v598 = vld [vmem:[#allocation7 + $0xd4] sm:$0xf]
        %v599 = vld [vmem:[#allocation7 + $0xd8] sm:$0xf]
        %v600 = vld [vmem:[#allocation7 + $0xdc] sm:$0xf]
        %v601 = vld [vmem:[#allocation7 + $0xe0] sm:$0xf]
        %v602 = vld [vmem:[#allocation7 + $0xe4] sm:$0xf]
        %v603 = vld [vmem:[#allocation7 + $0xe8] sm:$0xf]
        %v604 = vld [vmem:[#allocation7 + $0xec] sm:$0xf]
        %v605 = vld [vmem:[#allocation7 + $0xf0] sm:$0xf]
        %v606 = vld [vmem:[#allocation7 + $0xf4] sm:$0xf]
        %v607 = vld [vmem:[#allocation7 + $0xf8] sm:$0xf]
        %v608 = vld [vmem:[#allocation7 + $0xfc] sm:$0xf]
        %v609 = vld [vmem:[#allocation8] sm:$0xf]
        %v610 = vld [vmem:[#allocation8 + $0x4] sm:$0xf]
        %v611 = vld [vmem:[#allocation8 + $0x8] sm:$0xf]
        %v612 = vld [vmem:[#allocation8 + $0xc] sm:$0xf]
        %v613 = vld [vmem:[#allocation8 + $0x10] sm:$0xf]
        %v614 = vld [vmem:[#allocation8 + $0x14] sm:$0xf]
        %v615 = vld [vmem:[#allocation8 + $0x18] sm:$0xf]
        %v616 = vld [vmem:[#allocation8 + $0x1c] sm:$0xf]
        %v617 = vld [vmem:[#allocation8 + $0x20] sm:$0xf]
        %v618 = vld [vmem:[#allocation8 + $0x24] sm:$0xf]
        %v619 = vld [vmem:[#allocation8 + $0x28] sm:$0xf]
        %v620 = vld [vmem:[#allocation8 + $0x2c] sm:$0xf]
        %v621 = vld [vmem:[#allocation8 + $0x30] sm:$0xf]
        %v622 = vld [vmem:[#allocation8 + $0x34] sm:$0xf]
        %v623 = vld [vmem:[#allocation8 + $0x38] sm:$0xf]
        %v624 = vld [vmem:[#allocation8 + $0x3c] sm:$0xf]
        %v625 = vld [vmem:[#allocation8 + $0x40] sm:$0xf]
        %v626 = vld [vmem:[#allocation8 + $0x44] sm:$0xf]
        %v627 = vld [vmem:[#allocation8 + $0x48] sm:$0xf]
        %v628 = vld [vmem:[#allocation8 + $0x4c] sm:$0xf]
        %v629 = vld [vmem:[#allocation8 + $0x50] sm:$0xf]
        %v630 = vld [vmem:[#allocation8 + $0x54] sm:$0xf]
        %v631 = vld [vmem:[#allocation8 + $0x58] sm:$0xf]
        %v632 = vld [vmem:[#allocation8 + $0x5c] sm:$0xf]
        %v633 = vld [vmem:[#allocation8 + $0x60] sm:$0xf]
        %v634 = vld [vmem:[#allocation8 + $0x64] sm:$0xf]
        %v635 = vld [vmem:[#allocation8 + $0x68] sm:$0xf]
        %v636 = vld [vmem:[#allocation8 + $0x6c] sm:$0xf]
        %v637 = vld [vmem:[#allocation8 + $0x70] sm:$0xf]
        %v638 = vld [vmem:[#allocation8 + $0x74] sm:$0xf]
        %v639 = vld [vmem:[#allocation8 + $0x78] sm:$0xf]
        %v640 = vld [vmem:[#allocation8 + $0x7c] sm:$0xf]
        %v641 = vld [vmem:[#allocation8 + $0x80] sm:$0xf]
        %v642 = vld [vmem:[#allocation8 + $0x84] sm:$0xf]
        %v643 = vld [vmem:[#allocation8 + $0x88] sm:$0xf]
        %v644 = vld [vmem:[#allocation8 + $0x8c] sm:$0xf]
        %v645 = vld [vmem:[#allocation8 + $0x90] sm:$0xf]
        %v646 = vld [vmem:[#allocation8 + $0x94] sm:$0xf]
        %v647 = vld [vmem:[#allocation8 + $0x98] sm:$0xf]
        %v648 = vld [vmem:[#allocation8 + $0x9c] sm:$0xf]
        %v649 = vld [vmem:[#allocation8 + $0xa0] sm:$0xf]
        %v650 = vld [vmem:[#allocation8 + $0xa4] sm:$0xf]
        %v651 = vld [vmem:[#allocation8 + $0xa8] sm:$0xf]
        %v652 = vld [vmem:[#allocation8 + $0xac] sm:$0xf]
        %v653 = vld [vmem:[#allocation8 + $0xb0] sm:$0xf]
        %v654 = vld [vmem:[#allocation8 + $0xb4] sm:$0xf]
        %v655 = vld [vmem:[#allocation8 + $0xb8] sm:$0xf]
        %v656 = vld [vmem:[#allocation8 + $0xbc] sm:$0xf]
        %v657 = vld [vmem:[#allocation8 + $0xc0] sm:$0xf]
        %v658 = vld [vmem:[#allocation8 + $0xc4] sm:$0xf]
        %v659 = vld [vmem:[#allocation8 + $0xc8] sm:$0xf]
        %v660 = vld [vmem:[#allocation8 + $0xcc] sm:$0xf]
        %v661 = vld [vmem:[#allocation8 + $0xd0] sm:$0xf]
        %v662 = vld [vmem:[#allocation8 + $0xd4] sm:$0xf]
        %v663 = vld [vmem:[#allocation8 + $0xd8] sm:$0xf]
        %v664 = vld [vmem:[#allocation8 + $0xdc] sm:$0xf]
        %v665 = vld [vmem:[#allocation8 + $0xe0] sm:$0xf]
        %v666 = vld [vmem:[#allocation8 + $0xe4] sm:$0xf]
        %v667 = vld [vmem:[#allocation8 + $0xe8] sm:$0xf]
        %v668 = vld [vmem:[#allocation8 + $0xec] sm:$0xf]
        %v669 = vld [vmem:[#allocation8 + $0xf0] sm:$0xf]
        %v670 = vld [vmem:[#allocation8 + $0xf4] sm:$0xf]
        %v671 = vld [vmem:[#allocation8 + $0xf8] sm:$0xf]
        %v672 = vld [vmem:[#allocation8 + $0xfc] sm:$0xf]
        %v737 = vunpack.c.l.b16 %v609
        %v738 = vunpack.c.l.b16 %v610
        %v739 = vunpack.c.l.b16 %v611
        %v740 = vunpack.c.l.b16 %v612
        %v741 = vunpack.c.l.b16 %v613
        %v742 = vunpack.c.l.b16 %v614
        %v743 = vunpack.c.l.b16 %v615
        %v744 = vunpack.c.l.b16 %v616
        %v745 = vunpack.c.l.b16 %v617
        %v746 = vunpack.c.l.b16 %v618
        %v747 = vunpack.c.l.b16 %v619
        %v748 = vunpack.c.l.b16 %v620
        %v749 = vunpack.c.l.b16 %v621
        %v750 = vunpack.c.l.b16 %v622
        %v751 = vunpack.c.l.b16 %v623
        %v752 = vunpack.c.l.b16 %v624
        %v753 = vunpack.c.l.b16 %v625
        %v754 = vunpack.c.l.b16 %v626
        %v755 = vunpack.c.l.b16 %v627
        %v756 = vunpack.c.l.b16 %v628
        %v757 = vunpack.c.l.b16 %v629
        %v758 = vunpack.c.l.b16 %v630
        %v759 = vunpack.c.l.b16 %v631
        %v760 = vunpack.c.l.b16 %v632
        %v761 = vunpack.c.l.b16 %v633
        %v762 = vunpack.c.l.b16 %v634
        %v763 = vunpack.c.l.b16 %v635
        %v764 = vunpack.c.l.b16 %v636
        %v765 = vunpack.c.l.b16 %v637
        %v766 = vunpack.c.l.b16 %v638
        %v767 = vunpack.c.l.b16 %v639
        %v768 = vunpack.c.l.b16 %v640
        %v769 = vunpack.c.l.b16 %v641
        %v770 = vunpack.c.l.b16 %v642
        %v771 = vunpack.c.l.b16 %v643
        %v772 = vunpack.c.l.b16 %v644
        %v773 = vunpack.c.l.b16 %v645
        %v774 = vunpack.c.l.b16 %v646
        %v775 = vunpack.c.l.b16 %v647
        %v776 = vunpack.c.l.b16 %v648
        %v777 = vunpack.c.l.b16 %v649
        %v778 = vunpack.c.l.b16 %v650
        %v779 = vunpack.c.l.b16 %v651
        %v780 = vunpack.c.l.b16 %v652
        %v781 = vunpack.c.l.b16 %v653
        %v782 = vunpack.c.l.b16 %v654
        %v783 = vunpack.c.l.b16 %v655
        %v784 = vunpack.c.l.b16 %v656
        %v785 = vunpack.c.l.b16 %v657
        %v786 = vunpack.c.l.b16 %v658
        %v787 = vunpack.c.l.b16 %v659
        %v788 = vunpack.c.l.b16 %v660
        %v789 = vunpack.c.l.b16 %v661
        %v790 = vunpack.c.l.b16 %v662
        %v791 = vunpack.c.l.b16 %v663
        %v792 = vunpack.c.l.b16 %v664
        %v793 = vunpack.c.l.b16 %v665
        %v794 = vunpack.c.l.b16 %v666
        %v795 = vunpack.c.l.b16 %v667
        %v796 = vunpack.c.l.b16 %v668
        %v797 = vunpack.c.l.b16 %v669
        %v798 = vunpack.c.l.b16 %v670
        %v799 = vunpack.c.l.b16 %v671
        %v800 = vunpack.c.l.b16 %v672
        %v801 = vpack.c.b16 %v738, %v737
        %v802 = vpack.c.b16 %v740, %v739
        %v803 = vpack.c.b16 %v742, %v741
        %v804 = vpack.c.b16 %v744, %v743
        %v805 = vpack.c.b16 %v746, %v745
        %v806 = vpack.c.b16 %v748, %v747
        %v807 = vpack.c.b16 %v750, %v749
        %v808 = vpack.c.b16 %v752, %v751
        %v809 = vpack.c.b16 %v754, %v753
        %v810 = vpack.c.b16 %v756, %v755
        %v811 = vpack.c.b16 %v758, %v757
        %v812 = vpack.c.b16 %v760, %v759
        %v813 = vpack.c.b16 %v762, %v761
        %v814 = vpack.c.b16 %v764, %v763
        %v815 = vpack.c.b16 %v766, %v765
        %v816 = vpack.c.b16 %v768, %v767
        %v817 = vpack.c.b16 %v770, %v769
        %v818 = vpack.c.b16 %v772, %v771
        %v819 = vpack.c.b16 %v774, %v773
        %v820 = vpack.c.b16 %v776, %v775
        %v821 = vpack.c.b16 %v778, %v777
        %v822 = vpack.c.b16 %v780, %v779
        %v823 = vpack.c.b16 %v782, %v781
        %v824 = vpack.c.b16 %v784, %v783
        %v825 = vpack.c.b16 %v786, %v785
        %v826 = vpack.c.b16 %v788, %v787
        %v827 = vpack.c.b16 %v790, %v789
        %v828 = vpack.c.b16 %v792, %v791
        %v829 = vpack.c.b16 %v794, %v793
        %v830 = vpack.c.b16 %v796, %v795
        %v831 = vpack.c.b16 %v798, %v797
        %v832 = vpack.c.b16 %v800, %v799
        %865 = vmatpush.bf16.msra.mxu0 %v543
        %866 = vmatpush.bf16.msra.mxu0 %v541
        %867 = vmatpush.bf16.msra.mxu0 %v539
        %868 = vmatpush.bf16.msra.mxu0 %v537
        %869 = vmatpush.bf16.msra.mxu0 %v535
        %870 = vmatpush.bf16.msra.mxu0 %v533
        %871 = vmatpush.bf16.msra.mxu0 %v531
        %872 = vmatpush.bf16.msra.mxu0 %v529
        %873 = vmatmul.bf16.gmra.mxu0 %v801
        %v874 = vpop.f32.mrf.mxu0
        %v875 = vadd.f32 0.0, %v874
        %v876 = vpop.f32.mrf.mxu0
        %v877 = vadd.f32 0.0, %v876
        %878 = vmatmul.bf16.gmra.mxu0 %v802
        %v879 = vpop.f32.mrf.mxu0
        %v880 = vadd.f32 0.0, %v879
        %v881 = vpop.f32.mrf.mxu0
        %v882 = vadd.f32 0.0, %v881
        %883 = vmatmul.bf16.gmra.mxu0 %v803
        %v884 = vpop.f32.mrf.mxu0
        %v885 = vadd.f32 0.0, %v884
        %v886 = vpop.f32.mrf.mxu0
        %v887 = vadd.f32 0.0, %v886
        %888 = vmatmul.bf16.gmra.mxu0 %v804
        %v889 = vpop.f32.mrf.mxu0
        %v890 = vadd.f32 0.0, %v889
        %v891 = vpop.f32.mrf.mxu0
        %v892 = vadd.f32 0.0, %v891
        %893 = vmatmul.bf16.gmra.mxu0 %v805
        %v894 = vpop.f32.mrf.mxu0
        %v895 = vadd.f32 0.0, %v894
        %v896 = vpop.f32.mrf.mxu0
        %v897 = vadd.f32 0.0, %v896
        %898 = vmatmul.bf16.gmra.mxu0 %v806
        %v899 = vpop.f32.mrf.mxu0
        %v900 = vadd.f32 0.0, %v899
        %v901 = vpop.f32.mrf.mxu0
        %v902 = vadd.f32 0.0, %v901
        %903 = vmatmul.bf16.gmra.mxu0 %v807
        %v904 = vpop.f32.mrf.mxu0
        %v905 = vadd.f32 0.0, %v904
        %v906 = vpop.f32.mrf.mxu0
        %v907 = vadd.f32 0.0, %v906
        %908 = vmatmul.bf16.gmra.mxu0 %v808
        %v909 = vpop.f32.mrf.mxu0
        %v910 = vadd.f32 0.0, %v909
        %v911 = vpop.f32.mrf.mxu0
        %v912 = vadd.f32 0.0, %v911
        %913 = vmatmul.bf16.gmra.mxu0 %v809
        %v914 = vpop.f32.mrf.mxu0
        %v915 = vadd.f32 0.0, %v914
        %v916 = vpop.f32.mrf.mxu0
        %v917 = vadd.f32 0.0, %v916
        %918 = vmatmul.bf16.gmra.mxu0 %v810
        %v919 = vpop.f32.mrf.mxu0
        %v920 = vadd.f32 0.0, %v919
        %v921 = vpop.f32.mrf.mxu0
        %v922 = vadd.f32 0.0, %v921
        %923 = vmatmul.bf16.gmra.mxu0 %v811
        %v924 = vpop.f32.mrf.mxu0
        %v925 = vadd.f32 0.0, %v924
        %v926 = vpop.f32.mrf.mxu0
        %v927 = vadd.f32 0.0, %v926
        %928 = vmatmul.bf16.gmra.mxu0 %v812
        %v929 = vpop.f32.mrf.mxu0
        %v930 = vadd.f32 0.0, %v929
        %v931 = vpop.f32.mrf.mxu0
        %v932 = vadd.f32 0.0, %v931
        %933 = vmatmul.bf16.gmra.mxu0 %v813
        %v934 = vpop.f32.mrf.mxu0
        %v935 = vadd.f32 0.0, %v934
        %v936 = vpop.f32.mrf.mxu0
        %v937 = vadd.f32 0.0, %v936
        %938 = vmatmul.bf16.gmra.mxu0 %v814
        %v939 = vpop.f32.mrf.mxu0
        %v940 = vadd.f32 0.0, %v939
        %v941 = vpop.f32.mrf.mxu0
        %v942 = vadd.f32 0.0, %v941
        %943 = vmatmul.bf16.gmra.mxu0 %v815
        %v944 = vpop.f32.mrf.mxu0
        %v945 = vadd.f32 0.0, %v944
        %v946 = vpop.f32.mrf.mxu0
        %v947 = vadd.f32 0.0, %v946
        %948 = vmatmul.bf16.gmra.mxu0 %v816
        %v949 = vpop.f32.mrf.mxu0
        %v950 = vadd.f32 0.0, %v949
        %v951 = vpop.f32.mrf.mxu0
        %v952 = vadd.f32 0.0, %v951
        %953 = vmatmul.bf16.gmra.mxu0 %v817
        %v954 = vpop.f32.mrf.mxu0
        %v955 = vadd.f32 0.0, %v954
        %v956 = vpop.f32.mrf.mxu0
        %v957 = vadd.f32 0.0, %v956
        %958 = vmatmul.bf16.gmra.mxu0 %v818
        %v959 = vpop.f32.mrf.mxu0
        %v960 = vadd.f32 0.0, %v959
        %v961 = vpop.f32.mrf.mxu0
        %v962 = vadd.f32 0.0, %v961
        %963 = vmatmul.bf16.gmra.mxu0 %v819
        %v964 = vpop.f32.mrf.mxu0
        %v965 = vadd.f32 0.0, %v964
        %v966 = vpop.f32.mrf.mxu0
        %v967 = vadd.f32 0.0, %v966
        %968 = vmatmul.bf16.gmra.mxu0 %v820
        %v969 = vpop.f32.mrf.mxu0
        %v970 = vadd.f32 0.0, %v969
        %v971 = vpop.f32.mrf.mxu0
        %v972 = vadd.f32 0.0, %v971
        %973 = vmatmul.bf16.gmra.mxu0 %v821
        %v974 = vpop.f32.mrf.mxu0
        %v975 = vadd.f32 0.0, %v974
        %v976 = vpop.f32.mrf.mxu0
        %v977 = vadd.f32 0.0, %v976
        %978 = vmatmul.bf16.gmra.mxu0 %v822
        %v979 = vpop.f32.mrf.mxu0
        %v980 = vadd.f32 0.0, %v979
        %v981 = vpop.f32.mrf.mxu0
        %v982 = vadd.f32 0.0, %v981
        %983 = vmatmul.bf16.gmra.mxu0 %v823
        %v984 = vpop.f32.mrf.mxu0
        %v985 = vadd.f32 0.0, %v984
        %v986 = vpop.f32.mrf.mxu0
        %v987 = vadd.f32 0.0, %v986
        %988 = vmatmul.bf16.gmra.mxu0 %v824
        %v989 = vpop.f32.mrf.mxu0
        %v990 = vadd.f32 0.0, %v989
        %v991 = vpop.f32.mrf.mxu0
        %v992 = vadd.f32 0.0, %v991
        %993 = vmatmul.bf16.gmra.mxu0 %v825
        %v994 = vpop.f32.mrf.mxu0
        %v995 = vadd.f32 0.0, %v994
        %v996 = vpop.f32.mrf.mxu0
        %v997 = vadd.f32 0.0, %v996
        %998 = vmatmul.bf16.gmra.mxu0 %v826
        %v999 = vpop.f32.mrf.mxu0
        %v1000 = vadd.f32 0.0, %v999
        %v1001 = vpop.f32.mrf.mxu0
        %v1002 = vadd.f32 0.0, %v1001
        %1003 = vmatmul.bf16.gmra.mxu0 %v827
        %v1004 = vpop.f32.mrf.mxu0
        %v1005 = vadd.f32 0.0, %v1004
        %v1006 = vpop.f32.mrf.mxu0
        %v1007 = vadd.f32 0.0, %v1006
        %1008 = vmatmul.bf16.gmra.mxu0 %v828
        %v1009 = vpop.f32.mrf.mxu0
        %v1010 = vadd.f32 0.0, %v1009
        %v1011 = vpop.f32.mrf.mxu0
        %v1012 = vadd.f32 0.0, %v1011
        %1013 = vmatmul.bf16.gmra.mxu0 %v829
        %v1014 = vpop.f32.mrf.mxu0
        %v1015 = vadd.f32 0.0, %v1014
        %v1016 = vpop.f32.mrf.mxu0
        %v1017 = vadd.f32 0.0, %v1016
        %1018 = vmatmul.bf16.gmra.mxu0 %v830
        %v1019 = vpop.f32.mrf.mxu0
        %v1020 = vadd.f32 0.0, %v1019
        %v1021 = vpop.f32.mrf.mxu0
        %v1022 = vadd.f32 0.0, %v1021
        %1023 = vmatmul.bf16.gmra.mxu0 %v831
        %v1024 = vpop.f32.mrf.mxu0
        %v1025 = vadd.f32 0.0, %v1024
        %v1026 = vpop.f32.mrf.mxu0
        %v1027 = vadd.f32 0.0, %v1026
        %1028 = vmatmul.bf16.gmra.mxu0 %v832
        %v1029 = vpop.f32.mrf.mxu0
        %v1030 = vadd.f32 0.0, %v1029
        %v1031 = vpop.f32.mrf.mxu0
        %v1032 = vadd.f32 0.0, %v1031
        %1033 = vdwg.mxu0
        %1034 = vmatpush.bf16.msra.mxu0 %v544
        %1035 = vmatpush.bf16.msra.mxu0 %v542
        %1036 = vmatpush.bf16.msra.mxu0 %v540
        %1037 = vmatpush.bf16.msra.mxu0 %v538
        %1038 = vmatpush.bf16.msra.mxu0 %v536
        %1039 = vmatpush.bf16.msra.mxu0 %v534
        %1040 = vmatpush.bf16.msra.mxu0 %v532
        %1041 = vmatpush.bf16.msra.mxu0 %v530
        %1042 = vmatmul.bf16.gmra.mxu0 %v801
        %v1043 = vpop.f32.mrf.mxu0
        %v1044 = vadd.f32 0.0, %v1043
        %v1045 = vpop.f32.mrf.mxu0
        %v1046 = vadd.f32 0.0, %v1045
        %1047 = vmatmul.bf16.gmra.mxu0 %v802
        %v1048 = vpop.f32.mrf.mxu0
        %v1049 = vadd.f32 0.0, %v1048
        %v1050 = vpop.f32.mrf.mxu0
        %v1051 = vadd.f32 0.0, %v1050
        %1052 = vmatmul.bf16.gmra.mxu0 %v803
        %v1053 = vpop.f32.mrf.mxu0
        %v1054 = vadd.f32 0.0, %v1053
        %v1055 = vpop.f32.mrf.mxu0
        %v1056 = vadd.f32 0.0, %v1055
        %1057 = vmatmul.bf16.gmra.mxu0 %v804
        %v1058 = vpop.f32.mrf.mxu0
        %v1059 = vadd.f32 0.0, %v1058
        %v1060 = vpop.f32.mrf.mxu0
        %v1061 = vadd.f32 0.0, %v1060
        %1062 = vmatmul.bf16.gmra.mxu0 %v805
        %v1063 = vpop.f32.mrf.mxu0
        %v1064 = vadd.f32 0.0, %v1063
        %v1065 = vpop.f32.mrf.mxu0
        %v1066 = vadd.f32 0.0, %v1065
        %1067 = vmatmul.bf16.gmra.mxu0 %v806
        %v1068 = vpop.f32.mrf.mxu0
        %v1069 = vadd.f32 0.0, %v1068
        %v1070 = vpop.f32.mrf.mxu0
        %v1071 = vadd.f32 0.0, %v1070
        %1072 = vmatmul.bf16.gmra.mxu0 %v807
        %v1073 = vpop.f32.mrf.mxu0
        %v1074 = vadd.f32 0.0, %v1073
        %v1075 = vpop.f32.mrf.mxu0
        %v1076 = vadd.f32 0.0, %v1075
        %1077 = vmatmul.bf16.gmra.mxu0 %v808
        %v1078 = vpop.f32.mrf.mxu0
        %v1079 = vadd.f32 0.0, %v1078
        %v1080 = vpop.f32.mrf.mxu0
        %v1081 = vadd.f32 0.0, %v1080
        %1082 = vmatmul.bf16.gmra.mxu0 %v809
        %v1083 = vpop.f32.mrf.mxu0
        %v1084 = vadd.f32 0.0, %v1083
        %v1085 = vpop.f32.mrf.mxu0
        %v1086 = vadd.f32 0.0, %v1085
        %1087 = vmatmul.bf16.gmra.mxu0 %v810
        %v1088 = vpop.f32.mrf.mxu0
        %v1089 = vadd.f32 0.0, %v1088
        %v1090 = vpop.f32.mrf.mxu0
        %v1091 = vadd.f32 0.0, %v1090
        %1092 = vmatmul.bf16.gmra.mxu0 %v811
        %v1093 = vpop.f32.mrf.mxu0
        %v1094 = vadd.f32 0.0, %v1093
        %v1095 = vpop.f32.mrf.mxu0
        %v1096 = vadd.f32 0.0, %v1095
        %1097 = vmatmul.bf16.gmra.mxu0 %v812
        %v1098 = vpop.f32.mrf.mxu0
        %v1099 = vadd.f32 0.0, %v1098
        %v1100 = vpop.f32.mrf.mxu0
        %v1101 = vadd.f32 0.0, %v1100
        %1102 = vmatmul.bf16.gmra.mxu0 %v813
        %v1103 = vpop.f32.mrf.mxu0
        %v1104 = vadd.f32 0.0, %v1103
        %v1105 = vpop.f32.mrf.mxu0
        %v1106 = vadd.f32 0.0, %v1105
        %1107 = vmatmul.bf16.gmra.mxu0 %v814
        %v1108 = vpop.f32.mrf.mxu0
        %v1109 = vadd.f32 0.0, %v1108
        %v1110 = vpop.f32.mrf.mxu0
        %v1111 = vadd.f32 0.0, %v1110
        %1112 = vmatmul.bf16.gmra.mxu0 %v815
        %v1113 = vpop.f32.mrf.mxu0
        %v1114 = vadd.f32 0.0, %v1113
        %v1115 = vpop.f32.mrf.mxu0
        %v1116 = vadd.f32 0.0, %v1115
        %1117 = vmatmul.bf16.gmra.mxu0 %v816
        %v1118 = vpop.f32.mrf.mxu0
        %v1119 = vadd.f32 0.0, %v1118
        %v1120 = vpop.f32.mrf.mxu0
        %v1121 = vadd.f32 0.0, %v1120
        %1122 = vmatmul.bf16.gmra.mxu0 %v817
        %v1123 = vpop.f32.mrf.mxu0
        %v1124 = vadd.f32 0.0, %v1123
        %v1125 = vpop.f32.mrf.mxu0
        %v1126 = vadd.f32 0.0, %v1125
        %1127 = vmatmul.bf16.gmra.mxu0 %v818
        %v1128 = vpop.f32.mrf.mxu0
        %v1129 = vadd.f32 0.0, %v1128
        %v1130 = vpop.f32.mrf.mxu0
        %v1131 = vadd.f32 0.0, %v1130
        %1132 = vmatmul.bf16.gmra.mxu0 %v819
        %v1133 = vpop.f32.mrf.mxu0
        %v1134 = vadd.f32 0.0, %v1133
        %v1135 = vpop.f32.mrf.mxu0
        %v1136 = vadd.f32 0.0, %v1135
        %1137 = vmatmul.bf16.gmra.mxu0 %v820
        %v1138 = vpop.f32.mrf.mxu0
        %v1139 = vadd.f32 0.0, %v1138
        %v1140 = vpop.f32.mrf.mxu0
        %v1141 = vadd.f32 0.0, %v1140
        %1142 = vmatmul.bf16.gmra.mxu0 %v821
        %v1143 = vpop.f32.mrf.mxu0
        %v1144 = vadd.f32 0.0, %v1143
        %v1145 = vpop.f32.mrf.mxu0
        %v1146 = vadd.f32 0.0, %v1145
        %1147 = vmatmul.bf16.gmra.mxu0 %v822
        %v1148 = vpop.f32.mrf.mxu0
        %v1149 = vadd.f32 0.0, %v1148
        %v1150 = vpop.f32.mrf.mxu0
        %v1151 = vadd.f32 0.0, %v1150
        %1152 = vmatmul.bf16.gmra.mxu0 %v823
        %v1153 = vpop.f32.mrf.mxu0
        %v1154 = vadd.f32 0.0, %v1153
        %v1155 = vpop.f32.mrf.mxu0
        %v1156 = vadd.f32 0.0, %v1155
        %1157 = vmatmul.bf16.gmra.mxu0 %v824
        %v1158 = vpop.f32.mrf.mxu0
        %v1159 = vadd.f32 0.0, %v1158
        %v1160 = vpop.f32.mrf.mxu0
        %v1161 = vadd.f32 0.0, %v1160
        %1162 = vmatmul.bf16.gmra.mxu0 %v825
        %v1163 = vpop.f32.mrf.mxu0
        %v1164 = vadd.f32 0.0, %v1163
        %v1165 = vpop.f32.mrf.mxu0
        %v1166 = vadd.f32 0.0, %v1165
        %1167 = vmatmul.bf16.gmra.mxu0 %v826
        %v1168 = vpop.f32.mrf.mxu0
        %v1169 = vadd.f32 0.0, %v1168
        %v1170 = vpop.f32.mrf.mxu0
        %v1171 = vadd.f32 0.0, %v1170
        %1172 = vmatmul.bf16.gmra.mxu0 %v827
        %v1173 = vpop.f32.mrf.mxu0
        %v1174 = vadd.f32 0.0, %v1173
        %v1175 = vpop.f32.mrf.mxu0
        %v1176 = vadd.f32 0.0, %v1175
        %1177 = vmatmul.bf16.gmra.mxu0 %v828
        %v1178 = vpop.f32.mrf.mxu0
        %v1179 = vadd.f32 0.0, %v1178
        %v1180 = vpop.f32.mrf.mxu0
        %v1181 = vadd.f32 0.0, %v1180
        %1182 = vmatmul.bf16.gmra.mxu0 %v829
        %v1183 = vpop.f32.mrf.mxu0
        %v1184 = vadd.f32 0.0, %v1183
        %v1185 = vpop.f32.mrf.mxu0
        %v1186 = vadd.f32 0.0, %v1185
        %1187 = vmatmul.bf16.gmra.mxu0 %v830
        %v1188 = vpop.f32.mrf.mxu0
        %v1189 = vadd.f32 0.0, %v1188
        %v1190 = vpop.f32.mrf.mxu0
        %v1191 = vadd.f32 0.0, %v1190
        %1192 = vmatmul.bf16.gmra.mxu0 %v831
        %v1193 = vpop.f32.mrf.mxu0
        %v1194 = vadd.f32 0.0, %v1193
        %v1195 = vpop.f32.mrf.mxu0
        %v1196 = vadd.f32 0.0, %v1195
        %1197 = vmatmul.bf16.gmra.mxu0 %v832
        %v1198 = vpop.f32.mrf.mxu0
        %v1199 = vadd.f32 0.0, %v1198
        %v1200 = vpop.f32.mrf.mxu0
        %v1201 = vadd.f32 0.0, %v1200
        %1202 = vdwg.mxu0
        %v1267 = vunpack.c.l.b16 %v545
        %v1268 = vunpack.c.l.b16 %v546
        %v1269 = vunpack.c.l.b16 %v547
        %v1270 = vunpack.c.l.b16 %v548
        %v1271 = vunpack.c.l.b16 %v549
        %v1272 = vunpack.c.l.b16 %v550
        %v1273 = vunpack.c.l.b16 %v551
        %v1274 = vunpack.c.l.b16 %v552
        %v1275 = vunpack.c.l.b16 %v553
        %v1276 = vunpack.c.l.b16 %v554
        %v1277 = vunpack.c.l.b16 %v555
        %v1278 = vunpack.c.l.b16 %v556
        %v1279 = vunpack.c.l.b16 %v557
        %v1280 = vunpack.c.l.b16 %v558
        %v1281 = vunpack.c.l.b16 %v559
        %v1282 = vunpack.c.l.b16 %v560
        %v1283 = vunpack.c.l.b16 %v561
        %v1284 = vunpack.c.l.b16 %v562
        %v1285 = vunpack.c.l.b16 %v563
        %v1286 = vunpack.c.l.b16 %v564
        %v1287 = vunpack.c.l.b16 %v565
        %v1288 = vunpack.c.l.b16 %v566
        %v1289 = vunpack.c.l.b16 %v567
        %v1290 = vunpack.c.l.b16 %v568
        %v1291 = vunpack.c.l.b16 %v569
        %v1292 = vunpack.c.l.b16 %v570
        %v1293 = vunpack.c.l.b16 %v571
        %v1294 = vunpack.c.l.b16 %v572
        %v1295 = vunpack.c.l.b16 %v573
        %v1296 = vunpack.c.l.b16 %v574
        %v1297 = vunpack.c.l.b16 %v575
        %v1298 = vunpack.c.l.b16 %v576
        %v1299 = vunpack.c.l.b16 %v577
        %v1300 = vunpack.c.l.b16 %v578
        %v1301 = vunpack.c.l.b16 %v579
        %v1302 = vunpack.c.l.b16 %v580
        %v1303 = vunpack.c.l.b16 %v581
        %v1304 = vunpack.c.l.b16 %v582
        %v1305 = vunpack.c.l.b16 %v583
        %v1306 = vunpack.c.l.b16 %v584
        %v1307 = vunpack.c.l.b16 %v585
        %v1308 = vunpack.c.l.b16 %v586
        %v1309 = vunpack.c.l.b16 %v587
        %v1310 = vunpack.c.l.b16 %v588
        %v1311 = vunpack.c.l.b16 %v589
        %v1312 = vunpack.c.l.b16 %v590
        %v1313 = vunpack.c.l.b16 %v591
        %v1314 = vunpack.c.l.b16 %v592
        %v1315 = vunpack.c.l.b16 %v593
        %v1316 = vunpack.c.l.b16 %v594
        %v1317 = vunpack.c.l.b16 %v595
        %v1318 = vunpack.c.l.b16 %v596
        %v1319 = vunpack.c.l.b16 %v597
        %v1320 = vunpack.c.l.b16 %v598
        %v1321 = vunpack.c.l.b16 %v599
        %v1322 = vunpack.c.l.b16 %v600
        %v1323 = vunpack.c.l.b16 %v601
        %v1324 = vunpack.c.l.b16 %v602
        %v1325 = vunpack.c.l.b16 %v603
        %v1326 = vunpack.c.l.b16 %v604
        %v1327 = vunpack.c.l.b16 %v605
        %v1328 = vunpack.c.l.b16 %v606
        %v1329 = vunpack.c.l.b16 %v607
        %v1330 = vunpack.c.l.b16 %v608
        %v1331 = vpack.c.b16 %v1268, %v1267
        %v1332 = vpack.c.b16 %v1270, %v1269
        %v1333 = vpack.c.b16 %v1272, %v1271
        %v1334 = vpack.c.b16 %v1274, %v1273
        %v1335 = vpack.c.b16 %v1276, %v1275
        %v1336 = vpack.c.b16 %v1278, %v1277
        %v1337 = vpack.c.b16 %v1280, %v1279
        %v1338 = vpack.c.b16 %v1282, %v1281
        %v1339 = vpack.c.b16 %v1284, %v1283
        %v1340 = vpack.c.b16 %v1286, %v1285
        %v1341 = vpack.c.b16 %v1288, %v1287
        %v1342 = vpack.c.b16 %v1290, %v1289
        %v1343 = vpack.c.b16 %v1292, %v1291
        %v1344 = vpack.c.b16 %v1294, %v1293
        %v1345 = vpack.c.b16 %v1296, %v1295
        %v1346 = vpack.c.b16 %v1298, %v1297
        %v1347 = vpack.c.b16 %v1300, %v1299
        %v1348 = vpack.c.b16 %v1302, %v1301
        %v1349 = vpack.c.b16 %v1304, %v1303
        %v1350 = vpack.c.b16 %v1306, %v1305
        %v1351 = vpack.c.b16 %v1308, %v1307
        %v1352 = vpack.c.b16 %v1310, %v1309
        %v1353 = vpack.c.b16 %v1312, %v1311
        %v1354 = vpack.c.b16 %v1314, %v1313
        %v1355 = vpack.c.b16 %v1316, %v1315
        %v1356 = vpack.c.b16 %v1318, %v1317
        %v1357 = vpack.c.b16 %v1320, %v1319
        %v1358 = vpack.c.b16 %v1322, %v1321
        %v1359 = vpack.c.b16 %v1324, %v1323
        %v1360 = vpack.c.b16 %v1326, %v1325
        %v1361 = vpack.c.b16 %v1328, %v1327
        %v1362 = vpack.c.b16 %v1330, %v1329
        %1395 = vmatpush.bf16.msra.mxu0 %v527
        %1396 = vmatpush.bf16.msra.mxu0 %v525
        %1397 = vmatpush.bf16.msra.mxu0 %v523
        %1398 = vmatpush.bf16.msra.mxu0 %v521
        %1399 = vmatpush.bf16.msra.mxu0 %v519
        %1400 = vmatpush.bf16.msra.mxu0 %v517
        %1401 = vmatpush.bf16.msra.mxu0 %v515
        %1402 = vmatpush.bf16.msra.mxu0 %v513
        %1403 = vmatmul.bf16.gmra.mxu0 %v1331
        %v1404 = vpop.f32.mrf.mxu0
        %v1405 = vadd.f32 %v875, %v1404
        %v1406 = vpop.f32.mrf.mxu0
        %v1407 = vadd.f32 %v877, %v1406
        %1408 = vmatmul.bf16.gmra.mxu0 %v1332
        %v1409 = vpop.f32.mrf.mxu0
        %v1410 = vadd.f32 %v880, %v1409
        %v1411 = vpop.f32.mrf.mxu0
        %v1412 = vadd.f32 %v882, %v1411
        %1413 = vmatmul.bf16.gmra.mxu0 %v1333
        %v1414 = vpop.f32.mrf.mxu0
        %v1415 = vadd.f32 %v885, %v1414
        %v1416 = vpop.f32.mrf.mxu0
        %v1417 = vadd.f32 %v887, %v1416
        %1418 = vmatmul.bf16.gmra.mxu0 %v1334
        %v1419 = vpop.f32.mrf.mxu0
        %v1420 = vadd.f32 %v890, %v1419
        %v1421 = vpop.f32.mrf.mxu0
        %v1422 = vadd.f32 %v892, %v1421
        %1423 = vmatmul.bf16.gmra.mxu0 %v1335
        %v1424 = vpop.f32.mrf.mxu0
        %v1425 = vadd.f32 %v895, %v1424
        %v1426 = vpop.f32.mrf.mxu0
        %v1427 = vadd.f32 %v897, %v1426
        %1428 = vmatmul.bf16.gmra.mxu0 %v1336
        %v1429 = vpop.f32.mrf.mxu0
        %v1430 = vadd.f32 %v900, %v1429
        %v1431 = vpop.f32.mrf.mxu0
        %v1432 = vadd.f32 %v902, %v1431
        %1433 = vmatmul.bf16.gmra.mxu0 %v1337
        %v1434 = vpop.f32.mrf.mxu0
        %v1435 = vadd.f32 %v905, %v1434
        %v1436 = vpop.f32.mrf.mxu0
        %v1437 = vadd.f32 %v907, %v1436
        %1438 = vmatmul.bf16.gmra.mxu0 %v1338
        %v1439 = vpop.f32.mrf.mxu0
        %v1440 = vadd.f32 %v910, %v1439
        %v1441 = vpop.f32.mrf.mxu0
        %v1442 = vadd.f32 %v912, %v1441
        %1443 = vmatmul.bf16.gmra.mxu0 %v1339
        %v1444 = vpop.f32.mrf.mxu0
        %v1445 = vadd.f32 %v915, %v1444
        %v1446 = vpop.f32.mrf.mxu0
        %v1447 = vadd.f32 %v917, %v1446
        %1448 = vmatmul.bf16.gmra.mxu0 %v1340
        %v1449 = vpop.f32.mrf.mxu0
        %v1450 = vadd.f32 %v920, %v1449
        %v1451 = vpop.f32.mrf.mxu0
        %v1452 = vadd.f32 %v922, %v1451
        %1453 = vmatmul.bf16.gmra.mxu0 %v1341
        %v1454 = vpop.f32.mrf.mxu0
        %v1455 = vadd.f32 %v925, %v1454
        %v1456 = vpop.f32.mrf.mxu0
        %v1457 = vadd.f32 %v927, %v1456
        %1458 = vmatmul.bf16.gmra.mxu0 %v1342
        %v1459 = vpop.f32.mrf.mxu0
        %v1460 = vadd.f32 %v930, %v1459
        %v1461 = vpop.f32.mrf.mxu0
        %v1462 = vadd.f32 %v932, %v1461
        %1463 = vmatmul.bf16.gmra.mxu0 %v1343
        %v1464 = vpop.f32.mrf.mxu0
        %v1465 = vadd.f32 %v935, %v1464
        %v1466 = vpop.f32.mrf.mxu0
        %v1467 = vadd.f32 %v937, %v1466
        %1468 = vmatmul.bf16.gmra.mxu0 %v1344
        %v1469 = vpop.f32.mrf.mxu0
        %v1470 = vadd.f32 %v940, %v1469
        %v1471 = vpop.f32.mrf.mxu0
        %v1472 = vadd.f32 %v942, %v1471
        %1473 = vmatmul.bf16.gmra.mxu0 %v1345
        %v1474 = vpop.f32.mrf.mxu0
        %v1475 = vadd.f32 %v945, %v1474
        %v1476 = vpop.f32.mrf.mxu0
        %v1477 = vadd.f32 %v947, %v1476
        %1478 = vmatmul.bf16.gmra.mxu0 %v1346
        %v1479 = vpop.f32.mrf.mxu0
        %v1480 = vadd.f32 %v950, %v1479
        %v1481 = vpop.f32.mrf.mxu0
        %v1482 = vadd.f32 %v952, %v1481
        %1483 = vmatmul.bf16.gmra.mxu0 %v1347
        %v1484 = vpop.f32.mrf.mxu0
        %v1485 = vadd.f32 %v955, %v1484
        %v1486 = vpop.f32.mrf.mxu0
        %v1487 = vadd.f32 %v957, %v1486
        %1488 = vmatmul.bf16.gmra.mxu0 %v1348
        %v1489 = vpop.f32.mrf.mxu0
        %v1490 = vadd.f32 %v960, %v1489
        %v1491 = vpop.f32.mrf.mxu0
        %v1492 = vadd.f32 %v962, %v1491
        %1493 = vmatmul.bf16.gmra.mxu0 %v1349
        %v1494 = vpop.f32.mrf.mxu0
        %v1495 = vadd.f32 %v965, %v1494
        %v1496 = vpop.f32.mrf.mxu0
        %v1497 = vadd.f32 %v967, %v1496
        %1498 = vmatmul.bf16.gmra.mxu0 %v1350
        %v1499 = vpop.f32.mrf.mxu0
        %v1500 = vadd.f32 %v970, %v1499
        %v1501 = vpop.f32.mrf.mxu0
        %v1502 = vadd.f32 %v972, %v1501
        %1503 = vmatmul.bf16.gmra.mxu0 %v1351
        %v1504 = vpop.f32.mrf.mxu0
        %v1505 = vadd.f32 %v975, %v1504
        %v1506 = vpop.f32.mrf.mxu0
        %v1507 = vadd.f32 %v977, %v1506
        %1508 = vmatmul.bf16.gmra.mxu0 %v1352
        %v1509 = vpop.f32.mrf.mxu0
        %v1510 = vadd.f32 %v980, %v1509
        %v1511 = vpop.f32.mrf.mxu0
        %v1512 = vadd.f32 %v982, %v1511
        %1513 = vmatmul.bf16.gmra.mxu0 %v1353
        %v1514 = vpop.f32.mrf.mxu0
        %v1515 = vadd.f32 %v985, %v1514
        %v1516 = vpop.f32.mrf.mxu0
        %v1517 = vadd.f32 %v987, %v1516
        %1518 = vmatmul.bf16.gmra.mxu0 %v1354
        %v1519 = vpop.f32.mrf.mxu0
        %v1520 = vadd.f32 %v990, %v1519
        %v1521 = vpop.f32.mrf.mxu0
        %v1522 = vadd.f32 %v992, %v1521
        %1523 = vmatmul.bf16.gmra.mxu0 %v1355
        %v1524 = vpop.f32.mrf.mxu0
        %v1525 = vadd.f32 %v995, %v1524
        %v1526 = vpop.f32.mrf.mxu0
        %v1527 = vadd.f32 %v997, %v1526
        %1528 = vmatmul.bf16.gmra.mxu0 %v1356
        %v1529 = vpop.f32.mrf.mxu0
        %v1530 = vadd.f32 %v1000, %v1529
        %v1531 = vpop.f32.mrf.mxu0
        %v1532 = vadd.f32 %v1002, %v1531
        %1533 = vmatmul.bf16.gmra.mxu0 %v1357
        %v1534 = vpop.f32.mrf.mxu0
        %v1535 = vadd.f32 %v1005, %v1534
        %v1536 = vpop.f32.mrf.mxu0
        %v1537 = vadd.f32 %v1007, %v1536
        %1538 = vmatmul.bf16.gmra.mxu0 %v1358
        %v1539 = vpop.f32.mrf.mxu0
        %v1540 = vadd.f32 %v1010, %v1539
        %v1541 = vpop.f32.mrf.mxu0
        %v1542 = vadd.f32 %v1012, %v1541
        %1543 = vmatmul.bf16.gmra.mxu0 %v1359
        %v1544 = vpop.f32.mrf.mxu0
        %v1545 = vadd.f32 %v1015, %v1544
        %v1546 = vpop.f32.mrf.mxu0
        %v1547 = vadd.f32 %v1017, %v1546
        %1548 = vmatmul.bf16.gmra.mxu0 %v1360
        %v1549 = vpop.f32.mrf.mxu0
        %v1550 = vadd.f32 %v1020, %v1549
        %v1551 = vpop.f32.mrf.mxu0
        %v1552 = vadd.f32 %v1022, %v1551
        %1553 = vmatmul.bf16.gmra.mxu0 %v1361
        %v1554 = vpop.f32.mrf.mxu0
        %v1555 = vadd.f32 %v1025, %v1554
        %v1556 = vpop.f32.mrf.mxu0
        %v1557 = vadd.f32 %v1027, %v1556
        %1558 = vmatmul.bf16.gmra.mxu0 %v1362
        %v1559 = vpop.f32.mrf.mxu0
        %v1560 = vadd.f32 %v1030, %v1559
        %v1561 = vpop.f32.mrf.mxu0
        %v1562 = vadd.f32 %v1032, %v1561
        %1563 = vdwg.mxu0
        %1564 = vmatpush.bf16.msra.mxu0 %v528
        %1565 = vmatpush.bf16.msra.mxu0 %v526
        %1566 = vmatpush.bf16.msra.mxu0 %v524
        %1567 = vmatpush.bf16.msra.mxu0 %v522
        %1568 = vmatpush.bf16.msra.mxu0 %v520
        %1569 = vmatpush.bf16.msra.mxu0 %v518
        %1570 = vmatpush.bf16.msra.mxu0 %v516
        %1571 = vmatpush.bf16.msra.mxu0 %v514
        %1572 = vmatmul.bf16.gmra.mxu0 %v1331
        %v1573 = vpop.f32.mrf.mxu0
        %v1574 = vadd.f32 %v1044, %v1573
        %v1575 = vpop.f32.mrf.mxu0
        %v1576 = vadd.f32 %v1046, %v1575
        %1577 = vmatmul.bf16.gmra.mxu0 %v1332
        %v1578 = vpop.f32.mrf.mxu0
        %v1579 = vadd.f32 %v1049, %v1578
        %v1580 = vpop.f32.mrf.mxu0
        %v1581 = vadd.f32 %v1051, %v1580
        %1582 = vmatmul.bf16.gmra.mxu0 %v1333
        %v1583 = vpop.f32.mrf.mxu0
        %v1584 = vadd.f32 %v1054, %v1583
        %v1585 = vpop.f32.mrf.mxu0
        %v1586 = vadd.f32 %v1056, %v1585
        %1587 = vmatmul.bf16.gmra.mxu0 %v1334
        %v1588 = vpop.f32.mrf.mxu0
        %v1589 = vadd.f32 %v1059, %v1588
        %v1590 = vpop.f32.mrf.mxu0
        %v1591 = vadd.f32 %v1061, %v1590
        %1592 = vmatmul.bf16.gmra.mxu0 %v1335
        %v1593 = vpop.f32.mrf.mxu0
        %v1594 = vadd.f32 %v1064, %v1593
        %v1595 = vpop.f32.mrf.mxu0
        %v1596 = vadd.f32 %v1066, %v1595
        %1597 = vmatmul.bf16.gmra.mxu0 %v1336
        %v1598 = vpop.f32.mrf.mxu0
        %v1599 = vadd.f32 %v1069, %v1598
        %v1600 = vpop.f32.mrf.mxu0
        %v1601 = vadd.f32 %v1071, %v1600
        %1602 = vmatmul.bf16.gmra.mxu0 %v1337
        %v1603 = vpop.f32.mrf.mxu0
        %v1604 = vadd.f32 %v1074, %v1603
        %v1605 = vpop.f32.mrf.mxu0
        %v1606 = vadd.f32 %v1076, %v1605
        %1607 = vmatmul.bf16.gmra.mxu0 %v1338
        %v1608 = vpop.f32.mrf.mxu0
        %v1609 = vadd.f32 %v1079, %v1608
        %v1610 = vpop.f32.mrf.mxu0
        %v1611 = vadd.f32 %v1081, %v1610
        %1612 = vmatmul.bf16.gmra.mxu0 %v1339
        %v1613 = vpop.f32.mrf.mxu0
        %v1614 = vadd.f32 %v1084, %v1613
        %v1615 = vpop.f32.mrf.mxu0
        %v1616 = vadd.f32 %v1086, %v1615
        %1617 = vmatmul.bf16.gmra.mxu0 %v1340
        %v1618 = vpop.f32.mrf.mxu0
        %v1619 = vadd.f32 %v1089, %v1618
        %v1620 = vpop.f32.mrf.mxu0
        %v1621 = vadd.f32 %v1091, %v1620
        %1622 = vmatmul.bf16.gmra.mxu0 %v1341
        %v1623 = vpop.f32.mrf.mxu0
        %v1624 = vadd.f32 %v1094, %v1623
        %v1625 = vpop.f32.mrf.mxu0
        %v1626 = vadd.f32 %v1096, %v1625
        %1627 = vmatmul.bf16.gmra.mxu0 %v1342
        %v1628 = vpop.f32.mrf.mxu0
        %v1629 = vadd.f32 %v1099, %v1628
        %v1630 = vpop.f32.mrf.mxu0
        %v1631 = vadd.f32 %v1101, %v1630
        %1632 = vmatmul.bf16.gmra.mxu0 %v1343
        %v1633 = vpop.f32.mrf.mxu0
        %v1634 = vadd.f32 %v1104, %v1633
        %v1635 = vpop.f32.mrf.mxu0
        %v1636 = vadd.f32 %v1106, %v1635
        %1637 = vmatmul.bf16.gmra.mxu0 %v1344
        %v1638 = vpop.f32.mrf.mxu0
        %v1639 = vadd.f32 %v1109, %v1638
        %v1640 = vpop.f32.mrf.mxu0
        %v1641 = vadd.f32 %v1111, %v1640
        %1642 = vmatmul.bf16.gmra.mxu0 %v1345
        %v1643 = vpop.f32.mrf.mxu0
        %v1644 = vadd.f32 %v1114, %v1643
        %v1645 = vpop.f32.mrf.mxu0
        %v1646 = vadd.f32 %v1116, %v1645
        %1647 = vmatmul.bf16.gmra.mxu0 %v1346
        %v1648 = vpop.f32.mrf.mxu0
        %v1649 = vadd.f32 %v1119, %v1648
        %v1650 = vpop.f32.mrf.mxu0
        %v1651 = vadd.f32 %v1121, %v1650
        %1652 = vmatmul.bf16.gmra.mxu0 %v1347
        %v1653 = vpop.f32.mrf.mxu0
        %v1654 = vadd.f32 %v1124, %v1653
        %v1655 = vpop.f32.mrf.mxu0
        %v1656 = vadd.f32 %v1126, %v1655
        %1657 = vmatmul.bf16.gmra.mxu0 %v1348
        %v1658 = vpop.f32.mrf.mxu0
        %v1659 = vadd.f32 %v1129, %v1658
        %v1660 = vpop.f32.mrf.mxu0
        %v1661 = vadd.f32 %v1131, %v1660
        %1662 = vmatmul.bf16.gmra.mxu0 %v1349
        %v1663 = vpop.f32.mrf.mxu0
        %v1664 = vadd.f32 %v1134, %v1663
        %v1665 = vpop.f32.mrf.mxu0
        %v1666 = vadd.f32 %v1136, %v1665
        %1667 = vmatmul.bf16.gmra.mxu0 %v1350
        %v1668 = vpop.f32.mrf.mxu0
        %v1669 = vadd.f32 %v1139, %v1668
        %v1670 = vpop.f32.mrf.mxu0
        %v1671 = vadd.f32 %v1141, %v1670
        %1672 = vmatmul.bf16.gmra.mxu0 %v1351
        %v1673 = vpop.f32.mrf.mxu0
        %v1674 = vadd.f32 %v1144, %v1673
        %v1675 = vpop.f32.mrf.mxu0
        %v1676 = vadd.f32 %v1146, %v1675
        %1677 = vmatmul.bf16.gmra.mxu0 %v1352
        %v1678 = vpop.f32.mrf.mxu0
        %v1679 = vadd.f32 %v1149, %v1678
        %v1680 = vpop.f32.mrf.mxu0
        %v1681 = vadd.f32 %v1151, %v1680
        %1682 = vmatmul.bf16.gmra.mxu0 %v1353
        %v1683 = vpop.f32.mrf.mxu0
        %v1684 = vadd.f32 %v1154, %v1683
        %v1685 = vpop.f32.mrf.mxu0
        %v1686 = vadd.f32 %v1156, %v1685
        %1687 = vmatmul.bf16.gmra.mxu0 %v1354
        %v1688 = vpop.f32.mrf.mxu0
        %v1689 = vadd.f32 %v1159, %v1688
        %v1690 = vpop.f32.mrf.mxu0
        %v1691 = vadd.f32 %v1161, %v1690
        %1692 = vmatmul.bf16.gmra.mxu0 %v1355
        %v1693 = vpop.f32.mrf.mxu0
        %v1694 = vadd.f32 %v1164, %v1693
        %v1695 = vpop.f32.mrf.mxu0
        %v1696 = vadd.f32 %v1166, %v1695
        %1697 = vmatmul.bf16.gmra.mxu0 %v1356
        %v1698 = vpop.f32.mrf.mxu0
        %v1699 = vadd.f32 %v1169, %v1698
        %v1700 = vpop.f32.mrf.mxu0
        %v1701 = vadd.f32 %v1171, %v1700
        %1702 = vmatmul.bf16.gmra.mxu0 %v1357
        %v1703 = vpop.f32.mrf.mxu0
        %v1704 = vadd.f32 %v1174, %v1703
        %v1705 = vpop.f32.mrf.mxu0
        %v1706 = vadd.f32 %v1176, %v1705
        %1707 = vmatmul.bf16.gmra.mxu0 %v1358
        %v1708 = vpop.f32.mrf.mxu0
        %v1709 = vadd.f32 %v1179, %v1708
        %v1710 = vpop.f32.mrf.mxu0
        %v1711 = vadd.f32 %v1181, %v1710
        %1712 = vmatmul.bf16.gmra.mxu0 %v1359
        %v1713 = vpop.f32.mrf.mxu0
        %v1714 = vadd.f32 %v1184, %v1713
        %v1715 = vpop.f32.mrf.mxu0
        %v1716 = vadd.f32 %v1186, %v1715
        %1717 = vmatmul.bf16.gmra.mxu0 %v1360
        %v1718 = vpop.f32.mrf.mxu0
        %v1719 = vadd.f32 %v1189, %v1718
        %v1720 = vpop.f32.mrf.mxu0
        %v1721 = vadd.f32 %v1191, %v1720
        %1722 = vmatmul.bf16.gmra.mxu0 %v1361
        %v1723 = vpop.f32.mrf.mxu0
        %v1724 = vadd.f32 %v1194, %v1723
        %v1725 = vpop.f32.mrf.mxu0
        %v1726 = vadd.f32 %v1196, %v1725
        %1727 = vmatmul.bf16.gmra.mxu0 %v1362
        %v1728 = vpop.f32.mrf.mxu0
        %v1729 = vadd.f32 %v1199, %v1728
        %v1730 = vpop.f32.mrf.mxu0
        %v1731 = vadd.f32 %v1201, %v1730
        %1732 = vdwg.mxu0
        %v1733 = vld [vmem:[%s5] sm:$0xff]
        %v1734 = vld [vmem:[%s5 + $0x8] sm:$0xff]
        %v1735 = vld [vmem:[%s5 + $0x10] sm:$0xff]
        %v1736 = vld [vmem:[%s5 + $0x18] sm:$0xff]
        %v1737 = vld [vmem:[%s5 + $0x20] sm:$0xff]
        %v1738 = vld [vmem:[%s5 + $0x28] sm:$0xff]
        %v1739 = vld [vmem:[%s5 + $0x30] sm:$0xff]
        %v1740 = vld [vmem:[%s5 + $0x38] sm:$0xff]
        %v1741 = vld [vmem:[%s5 + $0x40] sm:$0xff]
        %v1742 = vld [vmem:[%s5 + $0x48] sm:$0xff]
        %v1743 = vld [vmem:[%s5 + $0x50] sm:$0xff]
        %v1744 = vld [vmem:[%s5 + $0x58] sm:$0xff]
        %v1745 = vld [vmem:[%s5 + $0x60] sm:$0xff]
        %v1746 = vld [vmem:[%s5 + $0x68] sm:$0xff]
        %v1747 = vld [vmem:[%s5 + $0x70] sm:$0xff]
        %v1748 = vld [vmem:[%s5 + $0x78] sm:$0xff]
        %v1749 = vld [vmem:[%s5 + $0x80] sm:$0xff]
        %v1750 = vld [vmem:[%s5 + $0x88] sm:$0xff]
        %v1751 = vld [vmem:[%s5 + $0x90] sm:$0xff]
        %v1752 = vld [vmem:[%s5 + $0x98] sm:$0xff]
        %v1753 = vld [vmem:[%s5 + $0xa0] sm:$0xff]
        %v1754 = vld [vmem:[%s5 + $0xa8] sm:$0xff]
        %v1755 = vld [vmem:[%s5 + $0xb0] sm:$0xff]
        %v1756 = vld [vmem:[%s5 + $0xb8] sm:$0xff]
        %v1757 = vld [vmem:[%s5 + $0xc0] sm:$0xff]
        %v1758 = vld [vmem:[%s5 + $0xc8] sm:$0xff]
        %v1759 = vld [vmem:[%s5 + $0xd0] sm:$0xff]
        %v1760 = vld [vmem:[%s5 + $0xd8] sm:$0xff]
        %v1761 = vld [vmem:[%s5 + $0xe0] sm:$0xff]
        %v1762 = vld [vmem:[%s5 + $0xe8] sm:$0xff]
        %v1763 = vld [vmem:[%s5 + $0xf0] sm:$0xff]
        %v1764 = vld [vmem:[%s5 + $0xf8] sm:$0xff]
        %v1765 = vld [vmem:[%s5 + $0x100] sm:$0xff]
        %v1766 = vld [vmem:[%s5 + $0x108] sm:$0xff]
        %v1767 = vld [vmem:[%s5 + $0x110] sm:$0xff]
        %v1768 = vld [vmem:[%s5 + $0x118] sm:$0xff]
        %v1769 = vld [vmem:[%s5 + $0x120] sm:$0xff]
        %v1770 = vld [vmem:[%s5 + $0x128] sm:$0xff]
        %v1771 = vld [vmem:[%s5 + $0x130] sm:$0xff]
        %v1772 = vld [vmem:[%s5 + $0x138] sm:$0xff]
        %v1773 = vld [vmem:[%s5 + $0x140] sm:$0xff]
        %v1774 = vld [vmem:[%s5 + $0x148] sm:$0xff]
        %v1775 = vld [vmem:[%s5 + $0x150] sm:$0xff]
        %v1776 = vld [vmem:[%s5 + $0x158] sm:$0xff]
        %v1777 = vld [vmem:[%s5 + $0x160] sm:$0xff]
        %v1778 = vld [vmem:[%s5 + $0x168] sm:$0xff]
        %v1779 = vld [vmem:[%s5 + $0x170] sm:$0xff]
        %v1780 = vld [vmem:[%s5 + $0x178] sm:$0xff]
        %v1781 = vld [vmem:[%s5 + $0x180] sm:$0xff]
        %v1782 = vld [vmem:[%s5 + $0x188] sm:$0xff]
        %v1783 = vld [vmem:[%s5 + $0x190] sm:$0xff]
        %v1784 = vld [vmem:[%s5 + $0x198] sm:$0xff]
        %v1785 = vld [vmem:[%s5 + $0x1a0] sm:$0xff]
        %v1786 = vld [vmem:[%s5 + $0x1a8] sm:$0xff]
        %v1787 = vld [vmem:[%s5 + $0x1b0] sm:$0xff]
        %v1788 = vld [vmem:[%s5 + $0x1b8] sm:$0xff]
        %v1789 = vld [vmem:[%s5 + $0x1c0] sm:$0xff]
        %v1790 = vld [vmem:[%s5 + $0x1c8] sm:$0xff]
        %v1791 = vld [vmem:[%s5 + $0x1d0] sm:$0xff]
        %v1792 = vld [vmem:[%s5 + $0x1d8] sm:$0xff]
        %v1793 = vld [vmem:[%s5 + $0x1e0] sm:$0xff]
        %v1794 = vld [vmem:[%s5 + $0x1e8] sm:$0xff]
        %v1795 = vld [vmem:[%s5 + $0x1f0] sm:$0xff]
        %v1796 = vld [vmem:[%s5 + $0x1f8] sm:$0xff]
        %1798 = vset.pattern.permute.xlu0 0
        %1799 = vperm.xlu0 %1798, %v1733
        %v1800 = vpop.permute.xlu0 %1799
        %1803 = vset.pattern.permute.xlu0 0
        %1804 = vperm.xlu0 %1803, %v1734
        %v1805 = vpop.permute.xlu0 %1804
        %1808 = vset.pattern.permute.xlu0 0
        %1809 = vperm.xlu0 %1808, %v1735
        %v1810 = vpop.permute.xlu0 %1809
        %1813 = vset.pattern.permute.xlu0 0
        %1814 = vperm.xlu0 %1813, %v1736
        %v1815 = vpop.permute.xlu0 %1814
        %1818 = vset.pattern.permute.xlu0 0
        %1819 = vperm.xlu0 %1818, %v1737
        %v1820 = vpop.permute.xlu0 %1819
        %1823 = vset.pattern.permute.xlu0 0
        %1824 = vperm.xlu0 %1823, %v1738
        %v1825 = vpop.permute.xlu0 %1824
        %1828 = vset.pattern.permute.xlu0 0
        %1829 = vperm.xlu0 %1828, %v1739
        %v1830 = vpop.permute.xlu0 %1829
        %1833 = vset.pattern.permute.xlu0 0
        %1834 = vperm.xlu0 %1833, %v1740
        %v1835 = vpop.permute.xlu0 %1834
        %1838 = vset.pattern.permute.xlu0 0
        %1839 = vperm.xlu0 %1838, %v1741
        %v1840 = vpop.permute.xlu0 %1839
        %1843 = vset.pattern.permute.xlu0 0
        %1844 = vperm.xlu0 %1843, %v1742
        %v1845 = vpop.permute.xlu0 %1844
        %1848 = vset.pattern.permute.xlu0 0
        %1849 = vperm.xlu0 %1848, %v1743
        %v1850 = vpop.permute.xlu0 %1849
        %1853 = vset.pattern.permute.xlu0 0
        %1854 = vperm.xlu0 %1853, %v1744
        %v1855 = vpop.permute.xlu0 %1854
        %1858 = vset.pattern.permute.xlu0 0
        %1859 = vperm.xlu0 %1858, %v1745
        %v1860 = vpop.permute.xlu0 %1859
        %1863 = vset.pattern.permute.xlu0 0
        %1864 = vperm.xlu0 %1863, %v1746
        %v1865 = vpop.permute.xlu0 %1864
        %1868 = vset.pattern.permute.xlu0 0
        %1869 = vperm.xlu0 %1868, %v1747
        %v1870 = vpop.permute.xlu0 %1869
        %1873 = vset.pattern.permute.xlu0 0
        %1874 = vperm.xlu0 %1873, %v1748
        %v1875 = vpop.permute.xlu0 %1874
        %1878 = vset.pattern.permute.xlu0 0
        %1879 = vperm.xlu0 %1878, %v1749
        %v1880 = vpop.permute.xlu0 %1879
        %1883 = vset.pattern.permute.xlu0 0
        %1884 = vperm.xlu0 %1883, %v1750
        %v1885 = vpop.permute.xlu0 %1884
        %1888 = vset.pattern.permute.xlu0 0
        %1889 = vperm.xlu0 %1888, %v1751
        %v1890 = vpop.permute.xlu0 %1889
        %1893 = vset.pattern.permute.xlu0 0
        %1894 = vperm.xlu0 %1893, %v1752
        %v1895 = vpop.permute.xlu0 %1894
        %1898 = vset.pattern.permute.xlu0 0
        %1899 = vperm.xlu0 %1898, %v1753
        %v1900 = vpop.permute.xlu0 %1899
        %1903 = vset.pattern.permute.xlu0 0
        %1904 = vperm.xlu0 %1903, %v1754
        %v1905 = vpop.permute.xlu0 %1904
        %1908 = vset.pattern.permute.xlu0 0
        %1909 = vperm.xlu0 %1908, %v1755
        %v1910 = vpop.permute.xlu0 %1909
        %1913 = vset.pattern.permute.xlu0 0
        %1914 = vperm.xlu0 %1913, %v1756
        %v1915 = vpop.permute.xlu0 %1914
        %1918 = vset.pattern.permute.xlu0 0
        %1919 = vperm.xlu0 %1918, %v1757
        %v1920 = vpop.permute.xlu0 %1919
        %1923 = vset.pattern.permute.xlu0 0
        %1924 = vperm.xlu0 %1923, %v1758
        %v1925 = vpop.permute.xlu0 %1924
        %1928 = vset.pattern.permute.xlu0 0
        %1929 = vperm.xlu0 %1928, %v1759
        %v1930 = vpop.permute.xlu0 %1929
        %1933 = vset.pattern.permute.xlu0 0
        %1934 = vperm.xlu0 %1933, %v1760
        %v1935 = vpop.permute.xlu0 %1934
        %1938 = vset.pattern.permute.xlu0 0
        %1939 = vperm.xlu0 %1938, %v1761
        %v1940 = vpop.permute.xlu0 %1939
        %1943 = vset.pattern.permute.xlu0 0
        %1944 = vperm.xlu0 %1943, %v1762
        %v1945 = vpop.permute.xlu0 %1944
        %1948 = vset.pattern.permute.xlu0 0
        %1949 = vperm.xlu0 %1948, %v1763
        %v1950 = vpop.permute.xlu0 %1949
        %1953 = vset.pattern.permute.xlu0 0
        %1954 = vperm.xlu0 %1953, %v1764
        %v1955 = vpop.permute.xlu0 %1954
        %1958 = vset.pattern.permute.xlu0 0
        %1959 = vperm.xlu0 %1958, %v1765
        %v1960 = vpop.permute.xlu0 %1959
        %1963 = vset.pattern.permute.xlu0 0
        %1964 = vperm.xlu0 %1963, %v1766
        %v1965 = vpop.permute.xlu0 %1964
        %1968 = vset.pattern.permute.xlu0 0
        %1969 = vperm.xlu0 %1968, %v1767
        %v1970 = vpop.permute.xlu0 %1969
        %1973 = vset.pattern.permute.xlu0 0
        %1974 = vperm.xlu0 %1973, %v1768
        %v1975 = vpop.permute.xlu0 %1974
        %1978 = vset.pattern.permute.xlu0 0
        %1979 = vperm.xlu0 %1978, %v1769
        %v1980 = vpop.permute.xlu0 %1979
        %1983 = vset.pattern.permute.xlu0 0
        %1984 = vperm.xlu0 %1983, %v1770
        %v1985 = vpop.permute.xlu0 %1984
        %1988 = vset.pattern.permute.xlu0 0
        %1989 = vperm.xlu0 %1988, %v1771
        %v1990 = vpop.permute.xlu0 %1989
        %1993 = vset.pattern.permute.xlu0 0
        %1994 = vperm.xlu0 %1993, %v1772
        %v1995 = vpop.permute.xlu0 %1994
        %1998 = vset.pattern.permute.xlu0 0
        %1999 = vperm.xlu0 %1998, %v1773
        %v2000 = vpop.permute.xlu0 %1999
        %2003 = vset.pattern.permute.xlu0 0
        %2004 = vperm.xlu0 %2003, %v1774
        %v2005 = vpop.permute.xlu0 %2004
        %2008 = vset.pattern.permute.xlu0 0
        %2009 = vperm.xlu0 %2008, %v1775
        %v2010 = vpop.permute.xlu0 %2009
        %2013 = vset.pattern.permute.xlu0 0
        %2014 = vperm.xlu0 %2013, %v1776
        %v2015 = vpop.permute.xlu0 %2014
        %2018 = vset.pattern.permute.xlu0 0
        %2019 = vperm.xlu0 %2018, %v1777
        %v2020 = vpop.permute.xlu0 %2019
        %2023 = vset.pattern.permute.xlu0 0
        %2024 = vperm.xlu0 %2023, %v1778
        %v2025 = vpop.permute.xlu0 %2024
        %2028 = vset.pattern.permute.xlu0 0
        %2029 = vperm.xlu0 %2028, %v1779
        %v2030 = vpop.permute.xlu0 %2029
        %2033 = vset.pattern.permute.xlu0 0
        %2034 = vperm.xlu0 %2033, %v1780
        %v2035 = vpop.permute.xlu0 %2034
        %2038 = vset.pattern.permute.xlu0 0
        %2039 = vperm.xlu0 %2038, %v1781
        %v2040 = vpop.permute.xlu0 %2039
        %2043 = vset.pattern.permute.xlu0 0
        %2044 = vperm.xlu0 %2043, %v1782
        %v2045 = vpop.permute.xlu0 %2044
        %2048 = vset.pattern.permute.xlu0 0
        %2049 = vperm.xlu0 %2048, %v1783
        %v2050 = vpop.permute.xlu0 %2049
        %2053 = vset.pattern.permute.xlu0 0
        %2054 = vperm.xlu0 %2053, %v1784
        %v2055 = vpop.permute.xlu0 %2054
        %2058 = vset.pattern.permute.xlu0 0
        %2059 = vperm.xlu0 %2058, %v1785
        %v2060 = vpop.permute.xlu0 %2059
        %2063 = vset.pattern.permute.xlu0 0
        %2064 = vperm.xlu0 %2063, %v1786
        %v2065 = vpop.permute.xlu0 %2064
        %2068 = vset.pattern.permute.xlu0 0
        %2069 = vperm.xlu0 %2068, %v1787
        %v2070 = vpop.permute.xlu0 %2069
        %2073 = vset.pattern.permute.xlu0 0
        %2074 = vperm.xlu0 %2073, %v1788
        %v2075 = vpop.permute.xlu0 %2074
        %2078 = vset.pattern.permute.xlu0 0
        %2079 = vperm.xlu0 %2078, %v1789
        %v2080 = vpop.permute.xlu0 %2079
        %2083 = vset.pattern.permute.xlu0 0
        %2084 = vperm.xlu0 %2083, %v1790
        %v2085 = vpop.permute.xlu0 %2084
        %2088 = vset.pattern.permute.xlu0 0
        %2089 = vperm.xlu0 %2088, %v1791
        %v2090 = vpop.permute.xlu0 %2089
        %2093 = vset.pattern.permute.xlu0 0
        %2094 = vperm.xlu0 %2093, %v1792
        %v2095 = vpop.permute.xlu0 %2094
        %2098 = vset.pattern.permute.xlu0 0
        %2099 = vperm.xlu0 %2098, %v1793
        %v2100 = vpop.permute.xlu0 %2099
        %2103 = vset.pattern.permute.xlu0 0
        %2104 = vperm.xlu0 %2103, %v1794
        %v2105 = vpop.permute.xlu0 %2104
        %2108 = vset.pattern.permute.xlu0 0
        %2109 = vperm.xlu0 %2108, %v1795
        %v2110 = vpop.permute.xlu0 %2109
        %2113 = vset.pattern.permute.xlu0 0
        %2114 = vperm.xlu0 %2113, %v1796
        %v2115 = vpop.permute.xlu0 %2114
        %v2117 = vadd.f32 %v1405, %v1800
        %v2118 = vadd.f32 %v1574, %v1800
        %v2119 = vadd.f32 %v1407, %v1805
        %v2120 = vadd.f32 %v1576, %v1805
        %v2121 = vadd.f32 %v1410, %v1810
        %v2122 = vadd.f32 %v1579, %v1810
        %v2123 = vadd.f32 %v1412, %v1815
        %v2124 = vadd.f32 %v1581, %v1815
        %v2125 = vadd.f32 %v1415, %v1820
        %v2126 = vadd.f32 %v1584, %v1820
        %v2127 = vadd.f32 %v1417, %v1825
        %v2128 = vadd.f32 %v1586, %v1825
        %v2129 = vadd.f32 %v1420, %v1830
        %v2130 = vadd.f32 %v1589, %v1830
        %v2131 = vadd.f32 %v1422, %v1835
        %v2132 = vadd.f32 %v1591, %v1835
        %v2133 = vadd.f32 %v1425, %v1840
        %v2134 = vadd.f32 %v1594, %v1840
        %v2135 = vadd.f32 %v1427, %v1845
        %v2136 = vadd.f32 %v1596, %v1845
        %v2137 = vadd.f32 %v1430, %v1850
        %v2138 = vadd.f32 %v1599, %v1850
        %v2139 = vadd.f32 %v1432, %v1855
        %v2140 = vadd.f32 %v1601, %v1855
        %v2141 = vadd.f32 %v1435, %v1860
        %v2142 = vadd.f32 %v1604, %v1860
        %v2143 = vadd.f32 %v1437, %v1865
        %v2144 = vadd.f32 %v1606, %v1865
        %v2145 = vadd.f32 %v1440, %v1870
        %v2146 = vadd.f32 %v1609, %v1870
        %v2147 = vadd.f32 %v1442, %v1875
        %v2148 = vadd.f32 %v1611, %v1875
        %v2149 = vadd.f32 %v1445, %v1880
        %v2150 = vadd.f32 %v1614, %v1880
        %v2151 = vadd.f32 %v1447, %v1885
        %v2152 = vadd.f32 %v1616, %v1885
        %v2153 = vadd.f32 %v1450, %v1890
        %v2154 = vadd.f32 %v1619, %v1890
        %v2155 = vadd.f32 %v1452, %v1895
        %v2156 = vadd.f32 %v1621, %v1895
        %v2157 = vadd.f32 %v1455, %v1900
        %v2158 = vadd.f32 %v1624, %v1900
        %v2159 = vadd.f32 %v1457, %v1905
        %v2160 = vadd.f32 %v1626, %v1905
        %v2161 = vadd.f32 %v1460, %v1910
        %v2162 = vadd.f32 %v1629, %v1910
        %v2163 = vadd.f32 %v1462, %v1915
        %v2164 = vadd.f32 %v1631, %v1915
        %v2165 = vadd.f32 %v1465, %v1920
        %v2166 = vadd.f32 %v1634, %v1920
        %v2167 = vadd.f32 %v1467, %v1925
        %v2168 = vadd.f32 %v1636, %v1925
        %v2169 = vadd.f32 %v1470, %v1930
        %v2170 = vadd.f32 %v1639, %v1930
        %v2171 = vadd.f32 %v1472, %v1935
        %v2172 = vadd.f32 %v1641, %v1935
        %v2173 = vadd.f32 %v1475, %v1940
        %v2174 = vadd.f32 %v1644, %v1940
        %v2175 = vadd.f32 %v1477, %v1945
        %v2176 = vadd.f32 %v1646, %v1945
        %v2177 = vadd.f32 %v1480, %v1950
        %v2178 = vadd.f32 %v1649, %v1950
        %v2179 = vadd.f32 %v1482, %v1955
        %v2180 = vadd.f32 %v1651, %v1955
        %v2181 = vadd.f32 %v1485, %v1960
        %v2182 = vadd.f32 %v1654, %v1960
        %v2183 = vadd.f32 %v1487, %v1965
        %v2184 = vadd.f32 %v1656, %v1965
        %v2185 = vadd.f32 %v1490, %v1970
        %v2186 = vadd.f32 %v1659, %v1970
        %v2187 = vadd.f32 %v1492, %v1975
        %v2188 = vadd.f32 %v1661, %v1975
        %v2189 = vadd.f32 %v1495, %v1980
        %v2190 = vadd.f32 %v1664, %v1980
        %v2191 = vadd.f32 %v1497, %v1985
        %v2192 = vadd.f32 %v1666, %v1985
        %v2193 = vadd.f32 %v1500, %v1990
        %v2194 = vadd.f32 %v1669, %v1990
        %v2195 = vadd.f32 %v1502, %v1995
        %v2196 = vadd.f32 %v1671, %v1995
        %v2197 = vadd.f32 %v1505, %v2000
        %v2198 = vadd.f32 %v1674, %v2000
        %v2199 = vadd.f32 %v1507, %v2005
        %v2200 = vadd.f32 %v1676, %v2005
        %v2201 = vadd.f32 %v1510, %v2010
        %v2202 = vadd.f32 %v1679, %v2010
        %v2203 = vadd.f32 %v1512, %v2015
        %v2204 = vadd.f32 %v1681, %v2015
        %v2205 = vadd.f32 %v1515, %v2020
        %v2206 = vadd.f32 %v1684, %v2020
        %v2207 = vadd.f32 %v1517, %v2025
        %v2208 = vadd.f32 %v1686, %v2025
        %v2209 = vadd.f32 %v1520, %v2030
        %v2210 = vadd.f32 %v1689, %v2030
        %v2211 = vadd.f32 %v1522, %v2035
        %v2212 = vadd.f32 %v1691, %v2035
        %v2213 = vadd.f32 %v1525, %v2040
        %v2214 = vadd.f32 %v1694, %v2040
        %v2215 = vadd.f32 %v1527, %v2045
        %v2216 = vadd.f32 %v1696, %v2045
        %v2217 = vadd.f32 %v1530, %v2050
        %v2218 = vadd.f32 %v1699, %v2050
        %v2219 = vadd.f32 %v1532, %v2055
        %v2220 = vadd.f32 %v1701, %v2055
        %v2221 = vadd.f32 %v1535, %v2060
        %v2222 = vadd.f32 %v1704, %v2060
        %v2223 = vadd.f32 %v1537, %v2065
        %v2224 = vadd.f32 %v1706, %v2065
        %v2225 = vadd.f32 %v1540, %v2070
        %v2226 = vadd.f32 %v1709, %v2070
        %v2227 = vadd.f32 %v1542, %v2075
        %v2228 = vadd.f32 %v1711, %v2075
        %v2229 = vadd.f32 %v1545, %v2080
        %v2230 = vadd.f32 %v1714, %v2080
        %v2231 = vadd.f32 %v1547, %v2085
        %v2232 = vadd.f32 %v1716, %v2085
        %v2233 = vadd.f32 %v1550, %v2090
        %v2234 = vadd.f32 %v1719, %v2090
        %v2235 = vadd.f32 %v1552, %v2095
        %v2236 = vadd.f32 %v1721, %v2095
        %v2237 = vadd.f32 %v1555, %v2100
        %v2238 = vadd.f32 %v1724, %v2100
        %v2239 = vadd.f32 %v1557, %v2105
        %v2240 = vadd.f32 %v1726, %v2105
        %v2241 = vadd.f32 %v1560, %v2110
        %v2242 = vadd.f32 %v1729, %v2110
        %v2243 = vadd.f32 %v1562, %v2115
        %v2244 = vadd.f32 %v1731, %v2115
        %v2245 = vmax.f32 %v2117, %v2121
        %v2246 = vmax.f32 %v2119, %v2123
        %v2247 = vmax.f32 %v2245, %v2125
        %v2248 = vmax.f32 %v2246, %v2127
        %v2249 = vmax.f32 %v2247, %v2129
        %v2250 = vmax.f32 %v2248, %v2131
        %v2251 = vmax.f32 %v2249, %v2133
        %v2252 = vmax.f32 %v2250, %v2135
        %v2253 = vmax.f32 %v2251, %v2137
        %v2254 = vmax.f32 %v2252, %v2139
        %v2255 = vmax.f32 %v2253, %v2141
        %v2256 = vmax.f32 %v2254, %v2143
        %v2257 = vmax.f32 %v2255, %v2145
        %v2258 = vmax.f32 %v2256, %v2147
        %v2259 = vmax.f32 %v2257, %v2258
        %v2260 = vrot.slane %v2259, 4
        %v2261 = vmax.f32 %v2259, %v2260
        %v2262 = vrot.slane %v2261, 2
        %v2263 = vmax.f32 %v2261, %v2262
        %v2264 = vrot.slane %v2263, 1
        %v2265 = vmax.f32 %v2263, %v2264
        %v2266 = vmax.f32 %v2118, %v2122
        %v2267 = vmax.f32 %v2120, %v2124
        %v2268 = vmax.f32 %v2266, %v2126
        %v2269 = vmax.f32 %v2267, %v2128
        %v2270 = vmax.f32 %v2268, %v2130
        %v2271 = vmax.f32 %v2269, %v2132
        %v2272 = vmax.f32 %v2270, %v2134
        %v2273 = vmax.f32 %v2271, %v2136
        %v2274 = vmax.f32 %v2272, %v2138
        %v2275 = vmax.f32 %v2273, %v2140
        %v2276 = vmax.f32 %v2274, %v2142
        %v2277 = vmax.f32 %v2275, %v2144
        %v2278 = vmax.f32 %v2276, %v2146
        %v2279 = vmax.f32 %v2277, %v2148
        %v2280 = vmax.f32 %v2278, %v2279
        %v2281 = vrot.slane %v2280, 4
        %v2282 = vmax.f32 %v2280, %v2281
        %v2283 = vrot.slane %v2282, 2
        %v2284 = vmax.f32 %v2282, %v2283
        %v2285 = vrot.slane %v2284, 1
        %v2286 = vmax.f32 %v2284, %v2285
        %v2287 = vsub.f32 %v2117, %v2265
        %v2288 = vsub.f32 %v2118, %v2286
        %v2289 = vsub.f32 %v2119, %v2265
        %v2290 = vsub.f32 %v2120, %v2286
        %v2291 = vsub.f32 %v2121, %v2265
        %v2292 = vsub.f32 %v2122, %v2286
        %v2293 = vsub.f32 %v2123, %v2265
        %v2294 = vsub.f32 %v2124, %v2286
        %v2295 = vsub.f32 %v2125, %v2265
        %v2296 = vsub.f32 %v2126, %v2286
        %v2297 = vsub.f32 %v2127, %v2265
        %v2298 = vsub.f32 %v2128, %v2286
        %v2299 = vsub.f32 %v2129, %v2265
        %v2300 = vsub.f32 %v2130, %v2286
        %v2301 = vsub.f32 %v2131, %v2265
        %v2302 = vsub.f32 %v2132, %v2286
        %v2303 = vsub.f32 %v2133, %v2265
        %v2304 = vsub.f32 %v2134, %v2286
        %v2305 = vsub.f32 %v2135, %v2265
        %v2306 = vsub.f32 %v2136, %v2286
        %v2307 = vsub.f32 %v2137, %v2265
        %v2308 = vsub.f32 %v2138, %v2286
        %v2309 = vsub.f32 %v2139, %v2265
        %v2310 = vsub.f32 %v2140, %v2286
        %v2311 = vsub.f32 %v2141, %v2265
        %v2312 = vsub.f32 %v2142, %v2286
        %v2313 = vsub.f32 %v2143, %v2265
        %v2314 = vsub.f32 %v2144, %v2286
        %v2315 = vsub.f32 %v2145, %v2265
        %v2316 = vsub.f32 %v2146, %v2286
        %v2317 = vsub.f32 %v2147, %v2265
        %v2318 = vsub.f32 %v2148, %v2286
        %v2319 = vmul.f32 %v2287, 1.442695
        %v2320 = vpow.pop %v2319
        %v2321 = vmul.f32 %v2288, 1.442695
        %v2322 = vpow.pop %v2321
        %v2323 = vmul.f32 %v2289, 1.442695
        %v2324 = vpow.pop %v2323
        %v2325 = vmul.f32 %v2290, 1.442695
        %v2326 = vpow.pop %v2325
        %v2327 = vmul.f32 %v2291, 1.442695
        %v2328 = vpow.pop %v2327
        %v2329 = vmul.f32 %v2292, 1.442695
        %v2330 = vpow.pop %v2329
        %v2331 = vmul.f32 %v2293, 1.442695
        %v2332 = vpow.pop %v2331
        %v2333 = vmul.f32 %v2294, 1.442695
        %v2334 = vpow.pop %v2333
        %v2335 = vmul.f32 %v2295, 1.442695
        %v2336 = vpow.pop %v2335
        %v2337 = vmul.f32 %v2296, 1.442695
        %v2338 = vpow.pop %v2337
        %v2339 = vmul.f32 %v2297, 1.442695
        %v2340 = vpow.pop %v2339
        %v2341 = vmul.f32 %v2298, 1.442695
        %v2342 = vpow.pop %v2341
        %v2343 = vmul.f32 %v2299, 1.442695
        %v2344 = vpow.pop %v2343
        %v2345 = vmul.f32 %v2300, 1.442695
        %v2346 = vpow.pop %v2345
        %v2347 = vmul.f32 %v2301, 1.442695
        %v2348 = vpow.pop %v2347
        %v2349 = vmul.f32 %v2302, 1.442695
        %v2350 = vpow.pop %v2349
        %v2351 = vmul.f32 %v2303, 1.442695
        %v2352 = vpow.pop %v2351
        %v2353 = vmul.f32 %v2304, 1.442695
        %v2354 = vpow.pop %v2353
        %v2355 = vmul.f32 %v2305, 1.442695
        %v2356 = vpow.pop %v2355
        %v2357 = vmul.f32 %v2306, 1.442695
        %v2358 = vpow.pop %v2357
        %v2359 = vmul.f32 %v2307, 1.442695
        %v2360 = vpow.pop %v2359
        %v2361 = vmul.f32 %v2308, 1.442695
        %v2362 = vpow.pop %v2361
        %v2363 = vmul.f32 %v2309, 1.442695
        %v2364 = vpow.pop %v2363
        %v2365 = vmul.f32 %v2310, 1.442695
        %v2366 = vpow.pop %v2365
        %v2367 = vmul.f32 %v2311, 1.442695
        %v2368 = vpow.pop %v2367
        %v2369 = vmul.f32 %v2312, 1.442695
        %v2370 = vpow.pop %v2369
        %v2371 = vmul.f32 %v2313, 1.442695
        %v2372 = vpow.pop %v2371
        %v2373 = vmul.f32 %v2314, 1.442695
        %v2374 = vpow.pop %v2373
        %v2375 = vmul.f32 %v2315, 1.442695
        %v2376 = vpow.pop %v2375
        %v2377 = vmul.f32 %v2316, 1.442695
        %v2378 = vpow.pop %v2377
        %v2379 = vmul.f32 %v2317, 1.442695
        %v2380 = vpow.pop %v2379
        %v2381 = vmul.f32 %v2318, 1.442695
        %v2382 = vpow.pop %v2381
        %v2383 = vadd.f32 %v2320, %v2324
        %v2384 = vadd.f32 %v2383, %v2328
        %v2385 = vadd.f32 %v2384, %v2332
        %v2386 = vadd.f32 %v2385, %v2336
        %v2387 = vadd.f32 %v2386, %v2340
        %v2388 = vadd.f32 %v2387, %v2344
        %v2389 = vadd.f32 %v2388, %v2348
        %v2390 = vadd.f32 %v2389, %v2352
        %v2391 = vadd.f32 %v2390, %v2356
        %v2392 = vadd.f32 %v2391, %v2360
        %v2393 = vadd.f32 %v2392, %v2364
        %v2394 = vadd.f32 %v2393, %v2368
        %v2395 = vadd.f32 %v2394, %v2372
        %v2396 = vadd.f32 %v2395, %v2376
        %v2397 = vadd.f32 %v2396, %v2380
        %v2398 = vrot.slane %v2397, 4
        %v2399 = vadd.f32 %v2397, %v2398
        %v2400 = vrot.slane %v2399, 2
        %v2401 = vadd.f32 %v2399, %v2400
        %v2402 = vrot.slane %v2401, 1
        %v2403 = vadd.f32 %v2401, %v2402
        %v2404 = vadd.f32 %v2322, %v2326
        %v2405 = vadd.f32 %v2404, %v2330
        %v2406 = vadd.f32 %v2405, %v2334
        %v2407 = vadd.f32 %v2406, %v2338
        %v2408 = vadd.f32 %v2407, %v2342
        %v2409 = vadd.f32 %v2408, %v2346
        %v2410 = vadd.f32 %v2409, %v2350
        %v2411 = vadd.f32 %v2410, %v2354
        %v2412 = vadd.f32 %v2411, %v2358
        %v2413 = vadd.f32 %v2412, %v2362
        %v2414 = vadd.f32 %v2413, %v2366
        %v2415 = vadd.f32 %v2414, %v2370
        %v2416 = vadd.f32 %v2415, %v2374
        %v2417 = vadd.f32 %v2416, %v2378
        %v2418 = vadd.f32 %v2417, %v2382
        %v2419 = vrot.slane %v2418, 4
        %v2420 = vadd.f32 %v2418, %v2419
        %v2421 = vrot.slane %v2420, 2
        %v2422 = vadd.f32 %v2420, %v2421
        %v2423 = vrot.slane %v2422, 1
        %v2424 = vadd.f32 %v2422, %v2423
        %v2425 = vrcp.pop %v2403
        %v2426 = vrcp.pop %v2424
        %v2427 = vmul.f32 %v2320, %v2425
        %v2428 = vmul.f32 %v2322, %v2426
        %v2429 = vmul.f32 %v2324, %v2425
        %v2430 = vmul.f32 %v2326, %v2426
        %v2431 = vmul.f32 %v2328, %v2425
        %v2432 = vmul.f32 %v2330, %v2426
        %v2433 = vmul.f32 %v2332, %v2425
        %v2434 = vmul.f32 %v2334, %v2426
        %v2435 = vmul.f32 %v2336, %v2425
        %v2436 = vmul.f32 %v2338, %v2426
        %v2437 = vmul.f32 %v2340, %v2425
        %v2438 = vmul.f32 %v2342, %v2426
        %v2439 = vmul.f32 %v2344, %v2425
        %v2440 = vmul.f32 %v2346, %v2426
        %v2441 = vmul.f32 %v2348, %v2425
        %v2442 = vmul.f32 %v2350, %v2426
        %v2443 = vmul.f32 %v2352, %v2425
        %v2444 = vmul.f32 %v2354, %v2426
        %v2445 = vmul.f32 %v2356, %v2425
        %v2446 = vmul.f32 %v2358, %v2426
        %v2447 = vmul.f32 %v2360, %v2425
        %v2448 = vmul.f32 %v2362, %v2426
        %v2449 = vmul.f32 %v2364, %v2425
        %v2450 = vmul.f32 %v2366, %v2426
        %v2451 = vmul.f32 %v2368, %v2425
        %v2452 = vmul.f32 %v2370, %v2426
        %v2453 = vmul.f32 %v2372, %v2425
        %v2454 = vmul.f32 %v2374, %v2426
        %v2455 = vmul.f32 %v2376, %v2425
        %v2456 = vmul.f32 %v2378, %v2426
        %v2457 = vmul.f32 %v2380, %v2425
        %v2458 = vmul.f32 %v2382, %v2426
        %v2459 = vmax.f32 %v2149, %v2153
        %v2460 = vmax.f32 %v2151, %v2155
        %v2461 = vmax.f32 %v2459, %v2157
        %v2462 = vmax.f32 %v2460, %v2159
        %v2463 = vmax.f32 %v2461, %v2161
        %v2464 = vmax.f32 %v2462, %v2163
        %v2465 = vmax.f32 %v2463, %v2165
        %v2466 = vmax.f32 %v2464, %v2167
        %v2467 = vmax.f32 %v2465, %v2169
        %v2468 = vmax.f32 %v2466, %v2171
        %v2469 = vmax.f32 %v2467, %v2173
        %v2470 = vmax.f32 %v2468, %v2175
        %v2471 = vmax.f32 %v2469, %v2177
        %v2472 = vmax.f32 %v2470, %v2179
        %v2473 = vmax.f32 %v2471, %v2472
        %v2474 = vrot.slane %v2473, 4
        %v2475 = vmax.f32 %v2473, %v2474
        %v2476 = vrot.slane %v2475, 2
        %v2477 = vmax.f32 %v2475, %v2476
        %v2478 = vrot.slane %v2477, 1
        %v2479 = vmax.f32 %v2477, %v2478
        %v2480 = vmax.f32 %v2150, %v2154
        %v2481 = vmax.f32 %v2152, %v2156
        %v2482 = vmax.f32 %v2480, %v2158
        %v2483 = vmax.f32 %v2481, %v2160
        %v2484 = vmax.f32 %v2482, %v2162
        %v2485 = vmax.f32 %v2483, %v2164
        %v2486 = vmax.f32 %v2484, %v2166
        %v2487 = vmax.f32 %v2485, %v2168
        %v2488 = vmax.f32 %v2486, %v2170
        %v2489 = vmax.f32 %v2487, %v2172
        %v2490 = vmax.f32 %v2488, %v2174
        %v2491 = vmax.f32 %v2489, %v2176
        %v2492 = vmax.f32 %v2490, %v2178
        %v2493 = vmax.f32 %v2491, %v2180
        %v2494 = vmax.f32 %v2492, %v2493
        %v2495 = vrot.slane %v2494, 4
        %v2496 = vmax.f32 %v2494, %v2495
        %v2497 = vrot.slane %v2496, 2
        %v2498 = vmax.f32 %v2496, %v2497
        %v2499 = vrot.slane %v2498, 1
        %v2500 = vmax.f32 %v2498, %v2499
        %v2501 = vsub.f32 %v2149, %v2479
        %v2502 = vsub.f32 %v2150, %v2500
        %v2503 = vsub.f32 %v2151, %v2479
        %v2504 = vsub.f32 %v2152, %v2500
        %v2505 = vsub.f32 %v2153, %v2479
        %v2506 = vsub.f32 %v2154, %v2500
        %v2507 = vsub.f32 %v2155, %v2479
        %v2508 = vsub.f32 %v2156, %v2500
        %v2509 = vsub.f32 %v2157, %v2479
        %v2510 = vsub.f32 %v2158, %v2500
        %v2511 = vsub.f32 %v2159, %v2479
        %v2512 = vsub.f32 %v2160, %v2500
        %v2513 = vsub.f32 %v2161, %v2479
        %v2514 = vsub.f32 %v2162, %v2500
        %v2515 = vsub.f32 %v2163, %v2479
        %v2516 = vsub.f32 %v2164, %v2500
        %v2517 = vsub.f32 %v2165, %v2479
        %v2518 = vsub.f32 %v2166, %v2500
        %v2519 = vsub.f32 %v2167, %v2479
        %v2520 = vsub.f32 %v2168, %v2500
        %v2521 = vsub.f32 %v2169, %v2479
        %v2522 = vsub.f32 %v2170, %v2500
        %v2523 = vsub.f32 %v2171, %v2479
        %v2524 = vsub.f32 %v2172, %v2500
        %v2525 = vsub.f32 %v2173, %v2479
        %v2526 = vsub.f32 %v2174, %v2500
        %v2527 = vsub.f32 %v2175, %v2479
        %v2528 = vsub.f32 %v2176, %v2500
        %v2529 = vsub.f32 %v2177, %v2479
        %v2530 = vsub.f32 %v2178, %v2500
        %v2531 = vsub.f32 %v2179, %v2479
        %v2532 = vsub.f32 %v2180, %v2500
        %v2533 = vmul.f32 %v2501, 1.442695
        %v2534 = vpow.pop %v2533
        %v2535 = vmul.f32 %v2502, 1.442695
        %v2536 = vpow.pop %v2535
        %v2537 = vmul.f32 %v2503, 1.442695
        %v2538 = vpow.pop %v2537
        %v2539 = vmul.f32 %v2504, 1.442695
        %v2540 = vpow.pop %v2539
        %v2541 = vmul.f32 %v2505, 1.442695
        %v2542 = vpow.pop %v2541
        %v2543 = vmul.f32 %v2506, 1.442695
        %v2544 = vpow.pop %v2543
        %v2545 = vmul.f32 %v2507, 1.442695
        %v2546 = vpow.pop %v2545
        %v2547 = vmul.f32 %v2508, 1.442695
        %v2548 = vpow.pop %v2547
        %v2549 = vmul.f32 %v2509, 1.442695
        %v2550 = vpow.pop %v2549
        %v2551 = vmul.f32 %v2510, 1.442695
        %v2552 = vpow.pop %v2551
        %v2553 = vmul.f32 %v2511, 1.442695
        %v2554 = vpow.pop %v2553
        %v2555 = vmul.f32 %v2512, 1.442695
        %v2556 = vpow.pop %v2555
        %v2557 = vmul.f32 %v2513, 1.442695
        %v2558 = vpow.pop %v2557
        %v2559 = vmul.f32 %v2514, 1.442695
        %v2560 = vpow.pop %v2559
        %v2561 = vmul.f32 %v2515, 1.442695
        %v2562 = vpow.pop %v2561
        %v2563 = vmul.f32 %v2516, 1.442695
        %v2564 = vpow.pop %v2563
        %v2565 = vmul.f32 %v2517, 1.442695
        %v2566 = vpow.pop %v2565
        %v2567 = vmul.f32 %v2518, 1.442695
        %v2568 = vpow.pop %v2567
        %v2569 = vmul.f32 %v2519, 1.442695
        %v2570 = vpow.pop %v2569
        %v2571 = vmul.f32 %v2520, 1.442695
        %v2572 = vpow.pop %v2571
        %v2573 = vmul.f32 %v2521, 1.442695
        %v2574 = vpow.pop %v2573
        %v2575 = vmul.f32 %v2522, 1.442695
        %v2576 = vpow.pop %v2575
        %v2577 = vmul.f32 %v2523, 1.442695
        %v2578 = vpow.pop %v2577
        %v2579 = vmul.f32 %v2524, 1.442695
        %v2580 = vpow.pop %v2579
        %v2581 = vmul.f32 %v2525, 1.442695
        %v2582 = vpow.pop %v2581
        %v2583 = vmul.f32 %v2526, 1.442695
        %v2584 = vpow.pop %v2583
        %v2585 = vmul.f32 %v2527, 1.442695
        %v2586 = vpow.pop %v2585
        %v2587 = vmul.f32 %v2528, 1.442695
        %v2588 = vpow.pop %v2587
        %v2589 = vmul.f32 %v2529, 1.442695
        %v2590 = vpow.pop %v2589
        %v2591 = vmul.f32 %v2530, 1.442695
        %v2592 = vpow.pop %v2591
        %v2593 = vmul.f32 %v2531, 1.442695
        %v2594 = vpow.pop %v2593
        %v2595 = vmul.f32 %v2532, 1.442695
        %v2596 = vpow.pop %v2595
        %v2597 = vadd.f32 %v2534, %v2538
        %v2598 = vadd.f32 %v2597, %v2542
        %v2599 = vadd.f32 %v2598, %v2546
        %v2600 = vadd.f32 %v2599, %v2550
        %v2601 = vadd.f32 %v2600, %v2554
        %v2602 = vadd.f32 %v2601, %v2558
        %v2603 = vadd.f32 %v2602, %v2562
        %v2604 = vadd.f32 %v2603, %v2566
        %v2605 = vadd.f32 %v2604, %v2570
        %v2606 = vadd.f32 %v2605, %v2574
        %v2607 = vadd.f32 %v2606, %v2578
        %v2608 = vadd.f32 %v2607, %v2582
        %v2609 = vadd.f32 %v2608, %v2586
        %v2610 = vadd.f32 %v2609, %v2590
        %v2611 = vadd.f32 %v2610, %v2594
        %v2612 = vrot.slane %v2611, 4
        %v2613 = vadd.f32 %v2611, %v2612
        %v2614 = vrot.slane %v2613, 2
        %v2615 = vadd.f32 %v2613, %v2614
        %v2616 = vrot.slane %v2615, 1
        %v2617 = vadd.f32 %v2615, %v2616
        %v2618 = vadd.f32 %v2536, %v2540
        %v2619 = vadd.f32 %v2618, %v2544
        %v2620 = vadd.f32 %v2619, %v2548
        %v2621 = vadd.f32 %v2620, %v2552
        %v2622 = vadd.f32 %v2621, %v2556
        %v2623 = vadd.f32 %v2622, %v2560
        %v2624 = vadd.f32 %v2623, %v2564
        %v2625 = vadd.f32 %v2624, %v2568
        %v2626 = vadd.f32 %v2625, %v2572
        %v2627 = vadd.f32 %v2626, %v2576
        %v2628 = vadd.f32 %v2627, %v2580
        %v2629 = vadd.f32 %v2628, %v2584
        %v2630 = vadd.f32 %v2629, %v2588
        %v2631 = vadd.f32 %v2630, %v2592
        %v2632 = vadd.f32 %v2631, %v2596
        %v2633 = vrot.slane %v2632, 4
        %v2634 = vadd.f32 %v2632, %v2633
        %v2635 = vrot.slane %v2634, 2
        %v2636 = vadd.f32 %v2634, %v2635
        %v2637 = vrot.slane %v2636, 1
        %v2638 = vadd.f32 %v2636, %v2637
        %v2639 = vrcp.pop %v2617
        %v2640 = vrcp.pop %v2638
        %v2641 = vmul.f32 %v2534, %v2639
        %v2642 = vmul.f32 %v2536, %v2640
        %v2643 = vmul.f32 %v2538, %v2639
        %v2644 = vmul.f32 %v2540, %v2640
        %v2645 = vmul.f32 %v2542, %v2639
        %v2646 = vmul.f32 %v2544, %v2640
        %v2647 = vmul.f32 %v2546, %v2639
        %v2648 = vmul.f32 %v2548, %v2640
        %v2649 = vmul.f32 %v2550, %v2639
        %v2650 = vmul.f32 %v2552, %v2640
        %v2651 = vmul.f32 %v2554, %v2639
        %v2652 = vmul.f32 %v2556, %v2640
        %v2653 = vmul.f32 %v2558, %v2639
        %v2654 = vmul.f32 %v2560, %v2640
        %v2655 = vmul.f32 %v2562, %v2639
        %v2656 = vmul.f32 %v2564, %v2640
        %v2657 = vmul.f32 %v2566, %v2639
        %v2658 = vmul.f32 %v2568, %v2640
        %v2659 = vmul.f32 %v2570, %v2639
        %v2660 = vmul.f32 %v2572, %v2640
        %v2661 = vmul.f32 %v2574, %v2639
        %v2662 = vmul.f32 %v2576, %v2640
        %v2663 = vmul.f32 %v2578, %v2639
        %v2664 = vmul.f32 %v2580, %v2640
        %v2665 = vmul.f32 %v2582, %v2639
        %v2666 = vmul.f32 %v2584, %v2640
        %v2667 = vmul.f32 %v2586, %v2639
        %v2668 = vmul.f32 %v2588, %v2640
        %v2669 = vmul.f32 %v2590, %v2639
        %v2670 = vmul.f32 %v2592, %v2640
        %v2671 = vmul.f32 %v2594, %v2639
        %v2672 = vmul.f32 %v2596, %v2640
        %v2673 = vtanh.pop %v2181
        %v2674 = vtanh.pop %v2182
        %v2675 = vtanh.pop %v2183
        %v2676 = vtanh.pop %v2184
        %v2677 = vtanh.pop %v2185
        %v2678 = vtanh.pop %v2186
        %v2679 = vtanh.pop %v2187
        %v2680 = vtanh.pop %v2188
        %v2681 = vtanh.pop %v2189
        %v2682 = vtanh.pop %v2190
        %v2683 = vtanh.pop %v2191
        %v2684 = vtanh.pop %v2192
        %v2685 = vtanh.pop %v2193
        %v2686 = vtanh.pop %v2194
        %v2687 = vtanh.pop %v2195
        %v2688 = vtanh.pop %v2196
        %v2689 = vtanh.pop %v2197
        %v2690 = vtanh.pop %v2198
        %v2691 = vtanh.pop %v2199
        %v2692 = vtanh.pop %v2200
        %v2693 = vtanh.pop %v2201
        %v2694 = vtanh.pop %v2202
        %v2695 = vtanh.pop %v2203
        %v2696 = vtanh.pop %v2204
        %v2697 = vtanh.pop %v2205
        %v2698 = vtanh.pop %v2206
        %v2699 = vtanh.pop %v2207
        %v2700 = vtanh.pop %v2208
        %v2701 = vtanh.pop %v2209
        %v2702 = vtanh.pop %v2210
        %v2703 = vtanh.pop %v2211
        %v2704 = vtanh.pop %v2212
        %v2705 = vmax.f32 %v2213, %v2217
        %v2706 = vmax.f32 %v2215, %v2219
        %v2707 = vmax.f32 %v2705, %v2221
        %v2708 = vmax.f32 %v2706, %v2223
        %v2709 = vmax.f32 %v2707, %v2225
        %v2710 = vmax.f32 %v2708, %v2227
        %v2711 = vmax.f32 %v2709, %v2229
        %v2712 = vmax.f32 %v2710, %v2231
        %v2713 = vmax.f32 %v2711, %v2233
        %v2714 = vmax.f32 %v2712, %v2235
        %v2715 = vmax.f32 %v2713, %v2237
        %v2716 = vmax.f32 %v2714, %v2239
        %v2717 = vmax.f32 %v2715, %v2241
        %v2718 = vmax.f32 %v2716, %v2243
        %v2719 = vmax.f32 %v2717, %v2718
        %v2720 = vrot.slane %v2719, 4
        %v2721 = vmax.f32 %v2719, %v2720
        %v2722 = vrot.slane %v2721, 2
        %v2723 = vmax.f32 %v2721, %v2722
        %v2724 = vrot.slane %v2723, 1
        %v2725 = vmax.f32 %v2723, %v2724
        %v2726 = vmax.f32 %v2214, %v2218
        %v2727 = vmax.f32 %v2216, %v2220
        %v2728 = vmax.f32 %v2726, %v2222
        %v2729 = vmax.f32 %v2727, %v2224
        %v2730 = vmax.f32 %v2728, %v2226
        %v2731 = vmax.f32 %v2729, %v2228
        %v2732 = vmax.f32 %v2730, %v2230
        %v2733 = vmax.f32 %v2731, %v2232
        %v2734 = vmax.f32 %v2732, %v2234
        %v2735 = vmax.f32 %v2733, %v2236
        %v2736 = vmax.f32 %v2734, %v2238
        %v2737 = vmax.f32 %v2735, %v2240
        %v2738 = vmax.f32 %v2736, %v2242
        %v2739 = vmax.f32 %v2737, %v2244
        %v2740 = vmax.f32 %v2738, %v2739
        %v2741 = vrot.slane %v2740, 4
        %v2742 = vmax.f32 %v2740, %v2741
        %v2743 = vrot.slane %v2742, 2
        %v2744 = vmax.f32 %v2742, %v2743
        %v2745 = vrot.slane %v2744, 1
        %v2746 = vmax.f32 %v2744, %v2745
        %v2747 = vsub.f32 %v2213, %v2725
        %v2748 = vsub.f32 %v2214, %v2746
        %v2749 = vsub.f32 %v2215, %v2725
        %v2750 = vsub.f32 %v2216, %v2746
        %v2751 = vsub.f32 %v2217, %v2725
        %v2752 = vsub.f32 %v2218, %v2746
        %v2753 = vsub.f32 %v2219, %v2725
        %v2754 = vsub.f32 %v2220, %v2746
        %v2755 = vsub.f32 %v2221, %v2725
        %v2756 = vsub.f32 %v2222, %v2746
        %v2757 = vsub.f32 %v2223, %v2725
        %v2758 = vsub.f32 %v2224, %v2746
        %v2759 = vsub.f32 %v2225, %v2725
        %v2760 = vsub.f32 %v2226, %v2746
        %v2761 = vsub.f32 %v2227, %v2725
        %v2762 = vsub.f32 %v2228, %v2746
        %v2763 = vsub.f32 %v2229, %v2725
        %v2764 = vsub.f32 %v2230, %v2746
        %v2765 = vsub.f32 %v2231, %v2725
        %v2766 = vsub.f32 %v2232, %v2746
        %v2767 = vsub.f32 %v2233, %v2725
        %v2768 = vsub.f32 %v2234, %v2746
        %v2769 = vsub.f32 %v2235, %v2725
        %v2770 = vsub.f32 %v2236, %v2746
        %v2771 = vsub.f32 %v2237, %v2725
        %v2772 = vsub.f32 %v2238, %v2746
        %v2773 = vsub.f32 %v2239, %v2725
        %v2774 = vsub.f32 %v2240, %v2746
        %v2775 = vsub.f32 %v2241, %v2725
        %v2776 = vsub.f32 %v2242, %v2746
        %v2777 = vsub.f32 %v2243, %v2725
        %v2778 = vsub.f32 %v2244, %v2746
        %v2779 = vmul.f32 %v2747, 1.442695
        %v2780 = vpow.pop %v2779
        %v2781 = vmul.f32 %v2748, 1.442695
        %v2782 = vpow.pop %v2781
        %v2783 = vmul.f32 %v2749, 1.442695
        %v2784 = vpow.pop %v2783
        %v2785 = vmul.f32 %v2750, 1.442695
        %v2786 = vpow.pop %v2785
        %v2787 = vmul.f32 %v2751, 1.442695
        %v2788 = vpow.pop %v2787
        %v2789 = vmul.f32 %v2752, 1.442695
        %v2790 = vpow.pop %v2789
        %v2791 = vmul.f32 %v2753, 1.442695
        %v2792 = vpow.pop %v2791
        %v2793 = vmul.f32 %v2754, 1.442695
        %v2794 = vpow.pop %v2793
        %v2795 = vmul.f32 %v2755, 1.442695
        %v2796 = vpow.pop %v2795
        %v2797 = vmul.f32 %v2756, 1.442695
        %v2798 = vpow.pop %v2797
        %v2799 = vmul.f32 %v2757, 1.442695
        %v2800 = vpow.pop %v2799
        %v2801 = vmul.f32 %v2758, 1.442695
        %v2802 = vpow.pop %v2801
        %v2803 = vmul.f32 %v2759, 1.442695
        %v2804 = vpow.pop %v2803
        %v2805 = vmul.f32 %v2760, 1.442695
        %v2806 = vpow.pop %v2805
        %v2807 = vmul.f32 %v2761, 1.442695
        %v2808 = vpow.pop %v2807
        %v2809 = vmul.f32 %v2762, 1.442695
        %v2810 = vpow.pop %v2809
        %v2811 = vmul.f32 %v2763, 1.442695
        %v2812 = vpow.pop %v2811
        %v2813 = vmul.f32 %v2764, 1.442695
        %v2814 = vpow.pop %v2813
        %v2815 = vmul.f32 %v2765, 1.442695
        %v2816 = vpow.pop %v2815
        %v2817 = vmul.f32 %v2766, 1.442695
        %v2818 = vpow.pop %v2817
        %v2819 = vmul.f32 %v2767, 1.442695
        %v2820 = vpow.pop %v2819
        %v2821 = vmul.f32 %v2768, 1.442695
        %v2822 = vpow.pop %v2821
        %v2823 = vmul.f32 %v2769, 1.442695
        %v2824 = vpow.pop %v2823
        %v2825 = vmul.f32 %v2770, 1.442695
        %v2826 = vpow.pop %v2825
        %v2827 = vmul.f32 %v2771, 1.442695
        %v2828 = vpow.pop %v2827
        %v2829 = vmul.f32 %v2772, 1.442695
        %v2830 = vpow.pop %v2829
        %v2831 = vmul.f32 %v2773, 1.442695
        %v2832 = vpow.pop %v2831
        %v2833 = vmul.f32 %v2774, 1.442695
        %v2834 = vpow.pop %v2833
        %v2835 = vmul.f32 %v2775, 1.442695
        %v2836 = vpow.pop %v2835
        %v2837 = vmul.f32 %v2776, 1.442695
        %v2838 = vpow.pop %v2837
        %v2839 = vmul.f32 %v2777, 1.442695
        %v2840 = vpow.pop %v2839
        %v2841 = vmul.f32 %v2778, 1.442695
        %v2842 = vpow.pop %v2841
        %v2843 = vadd.f32 %v2780, %v2784
        %v2844 = vadd.f32 %v2843, %v2788
        %v2845 = vadd.f32 %v2844, %v2792
        %v2846 = vadd.f32 %v2845, %v2796
        %v2847 = vadd.f32 %v2846, %v2800
        %v2848 = vadd.f32 %v2847, %v2804
        %v2849 = vadd.f32 %v2848, %v2808
        %v2850 = vadd.f32 %v2849, %v2812
        %v2851 = vadd.f32 %v2850, %v2816
        %v2852 = vadd.f32 %v2851, %v2820
        %v2853 = vadd.f32 %v2852, %v2824
        %v2854 = vadd.f32 %v2853, %v2828
        %v2855 = vadd.f32 %v2854, %v2832
        %v2856 = vadd.f32 %v2855, %v2836
        %v2857 = vadd.f32 %v2856, %v2840
        %v2858 = vrot.slane %v2857, 4
        %v2859 = vadd.f32 %v2857, %v2858
        %v2860 = vrot.slane %v2859, 2
        %v2861 = vadd.f32 %v2859, %v2860
        %v2862 = vrot.slane %v2861, 1
        %v2863 = vadd.f32 %v2861, %v2862
        %v2864 = vadd.f32 %v2782, %v2786
        %v2865 = vadd.f32 %v2864, %v2790
        %v2866 = vadd.f32 %v2865, %v2794
        %v2867 = vadd.f32 %v2866, %v2798
        %v2868 = vadd.f32 %v2867, %v2802
        %v2869 = vadd.f32 %v2868, %v2806
        %v2870 = vadd.f32 %v2869, %v2810
        %v2871 = vadd.f32 %v2870, %v2814
        %v2872 = vadd.f32 %v2871, %v2818
        %v2873 = vadd.f32 %v2872, %v2822
        %v2874 = vadd.f32 %v2873, %v2826
        %v2875 = vadd.f32 %v2874, %v2830
        %v2876 = vadd.f32 %v2875, %v2834
        %v2877 = vadd.f32 %v2876, %v2838
        %v2878 = vadd.f32 %v2877, %v2842
        %v2879 = vrot.slane %v2878, 4
        %v2880 = vadd.f32 %v2878, %v2879
        %v2881 = vrot.slane %v2880, 2
        %v2882 = vadd.f32 %v2880, %v2881
        %v2883 = vrot.slane %v2882, 1
        %v2884 = vadd.f32 %v2882, %v2883
        %v2885 = vrcp.pop %v2863
        %v2886 = vrcp.pop %v2884
        %v2887 = vmul.f32 %v2780, %v2885
        %v2888 = vmul.f32 %v2782, %v2886
        %v2889 = vmul.f32 %v2784, %v2885
        %v2890 = vmul.f32 %v2786, %v2886
        %v2891 = vmul.f32 %v2788, %v2885
        %v2892 = vmul.f32 %v2790, %v2886
        %v2893 = vmul.f32 %v2792, %v2885
        %v2894 = vmul.f32 %v2794, %v2886
        %v2895 = vmul.f32 %v2796, %v2885
        %v2896 = vmul.f32 %v2798, %v2886
        %v2897 = vmul.f32 %v2800, %v2885
        %v2898 = vmul.f32 %v2802, %v2886
        %v2899 = vmul.f32 %v2804, %v2885
        %v2900 = vmul.f32 %v2806, %v2886
        %v2901 = vmul.f32 %v2808, %v2885
        %v2902 = vmul.f32 %v2810, %v2886
        %v2903 = vmul.f32 %v2812, %v2885
        %v2904 = vmul.f32 %v2814, %v2886
        %v2905 = vmul.f32 %v2816, %v2885
        %v2906 = vmul.f32 %v2818, %v2886
        %v2907 = vmul.f32 %v2820, %v2885
        %v2908 = vmul.f32 %v2822, %v2886
        %v2909 = vmul.f32 %v2824, %v2885
        %v2910 = vmul.f32 %v2826, %v2886
        %v2911 = vmul.f32 %v2828, %v2885
        %v2912 = vmul.f32 %v2830, %v2886
        %v2913 = vmul.f32 %v2832, %v2885
        %v2914 = vmul.f32 %v2834, %v2886
        %v2915 = vmul.f32 %v2836, %v2885
        %v2916 = vmul.f32 %v2838, %v2886
        %v2917 = vmul.f32 %v2840, %v2885
        %v2918 = vmul.f32 %v2842, %v2886
        %v2919 = vld [vmem:[%s374] sm:$0xff]
        %v2920 = vld [vmem:[%s374 + $0x8] sm:$0xff]
        %v2921 = vld [vmem:[%s374 + $0x10] sm:$0xff]
        %v2922 = vld [vmem:[%s374 + $0x18] sm:$0xff]
        %v2923 = vld [vmem:[%s374 + $0x20] sm:$0xff]
        %v2924 = vld [vmem:[%s374 + $0x28] sm:$0xff]
        %v2925 = vld [vmem:[%s374 + $0x30] sm:$0xff]
        %v2926 = vld [vmem:[%s374 + $0x38] sm:$0xff]
        %v2927 = vld [vmem:[%s374 + $0x40] sm:$0xff]
        %v2928 = vld [vmem:[%s374 + $0x48] sm:$0xff]
        %v2929 = vld [vmem:[%s374 + $0x50] sm:$0xff]
        %v2930 = vld [vmem:[%s374 + $0x58] sm:$0xff]
        %v2931 = vld [vmem:[%s374 + $0x60] sm:$0xff]
        %v2932 = vld [vmem:[%s374 + $0x68] sm:$0xff]
        %v2933 = vld [vmem:[%s374 + $0x70] sm:$0xff]
        %v2934 = vld [vmem:[%s374 + $0x78] sm:$0xff]
        %v2935 = vld [vmem:[%s374 + $0x80] sm:$0xff]
        %v2936 = vld [vmem:[%s374 + $0x88] sm:$0xff]
        %v2937 = vld [vmem:[%s374 + $0x90] sm:$0xff]
        %v2938 = vld [vmem:[%s374 + $0x98] sm:$0xff]
        %v2939 = vld [vmem:[%s374 + $0xa0] sm:$0xff]
        %v2940 = vld [vmem:[%s374 + $0xa8] sm:$0xff]
        %v2941 = vld [vmem:[%s374 + $0xb0] sm:$0xff]
        %v2942 = vld [vmem:[%s374 + $0xb8] sm:$0xff]
        %v2943 = vld [vmem:[%s374 + $0xc0] sm:$0xff]
        %v2944 = vld [vmem:[%s374 + $0xc8] sm:$0xff]
        %v2945 = vld [vmem:[%s374 + $0xd0] sm:$0xff]
        %v2946 = vld [vmem:[%s374 + $0xd8] sm:$0xff]
        %v2947 = vld [vmem:[%s374 + $0xe0] sm:$0xff]
        %v2948 = vld [vmem:[%s374 + $0xe8] sm:$0xff]
        %v2949 = vld [vmem:[%s374 + $0xf0] sm:$0xff]
        %v2950 = vld [vmem:[%s374 + $0xf8] sm:$0xff]
        %v2951 = vmul.f32 %v2427, %v2919
        %v2952 = vmul.f32 %v2428, %v2920
        %v2953 = vmul.f32 %v2429, %v2921
        %v2954 = vmul.f32 %v2430, %v2922
        %v2955 = vmul.f32 %v2431, %v2923
        %v2956 = vmul.f32 %v2432, %v2924
        %v2957 = vmul.f32 %v2433, %v2925
        %v2958 = vmul.f32 %v2434, %v2926
        %v2959 = vmul.f32 %v2435, %v2927
        %v2960 = vmul.f32 %v2436, %v2928
        %v2961 = vmul.f32 %v2437, %v2929
        %v2962 = vmul.f32 %v2438, %v2930
        %v2963 = vmul.f32 %v2439, %v2931
        %v2964 = vmul.f32 %v2440, %v2932
        %v2965 = vmul.f32 %v2441, %v2933
        %v2966 = vmul.f32 %v2442, %v2934
        %v2967 = vmul.f32 %v2443, %v2935
        %v2968 = vmul.f32 %v2444, %v2936
        %v2969 = vmul.f32 %v2445, %v2937
        %v2970 = vmul.f32 %v2446, %v2938
        %v2971 = vmul.f32 %v2447, %v2939
        %v2972 = vmul.f32 %v2448, %v2940
        %v2973 = vmul.f32 %v2449, %v2941
        %v2974 = vmul.f32 %v2450, %v2942
        %v2975 = vmul.f32 %v2451, %v2943
        %v2976 = vmul.f32 %v2452, %v2944
        %v2977 = vmul.f32 %v2453, %v2945
        %v2978 = vmul.f32 %v2454, %v2946
        %v2979 = vmul.f32 %v2455, %v2947
        %v2980 = vmul.f32 %v2456, %v2948
        %v2981 = vmul.f32 %v2457, %v2949
        %v2982 = vmul.f32 %v2458, %v2950
        %v2983 = vmul.f32 %v2641, %v2673
        %v2984 = vmul.f32 %v2642, %v2674
        %v2985 = vmul.f32 %v2643, %v2675
        %v2986 = vmul.f32 %v2644, %v2676
        %v2987 = vmul.f32 %v2645, %v2677
        %v2988 = vmul.f32 %v2646, %v2678
        %v2989 = vmul.f32 %v2647, %v2679
        %v2990 = vmul.f32 %v2648, %v2680
        %v2991 = vmul.f32 %v2649, %v2681
        %v2992 = vmul.f32 %v2650, %v2682
        %v2993 = vmul.f32 %v2651, %v2683
        %v2994 = vmul.f32 %v2652, %v2684
        %v2995 = vmul.f32 %v2653, %v2685
        %v2996 = vmul.f32 %v2654, %v2686
        %v2997 = vmul.f32 %v2655, %v2687
        %v2998 = vmul.f32 %v2656, %v2688
        %v2999 = vmul.f32 %v2657, %v2689
        %v3000 = vmul.f32 %v2658, %v2690
        %v3001 = vmul.f32 %v2659, %v2691
        %v3002 = vmul.f32 %v2660, %v2692
        %v3003 = vmul.f32 %v2661, %v2693
        %v3004 = vmul.f32 %v2662, %v2694
        %v3005 = vmul.f32 %v2663, %v2695
        %v3006 = vmul.f32 %v2664, %v2696
        %v3007 = vmul.f32 %v2665, %v2697
        %v3008 = vmul.f32 %v2666, %v2698
        %v3009 = vmul.f32 %v2667, %v2699
        %v3010 = vmul.f32 %v2668, %v2700
        %v3011 = vmul.f32 %v2669, %v2701
        %v3012 = vmul.f32 %v2670, %v2702
        %v3013 = vmul.f32 %v2671, %v2703
        %v3014 = vmul.f32 %v2672, %v2704
        %v3015 = vadd.f32 %v2951, %v2983
        %v3016 = vadd.f32 %v2952, %v2984
        %v3017 = vadd.f32 %v2953, %v2985
        %v3018 = vadd.f32 %v2954, %v2986
        %v3019 = vadd.f32 %v2955, %v2987
        %v3020 = vadd.f32 %v2956, %v2988
        %v3021 = vadd.f32 %v2957, %v2989
        %v3022 = vadd.f32 %v2958, %v2990
        %v3023 = vadd.f32 %v2959, %v2991
        %v3024 = vadd.f32 %v2960, %v2992
        %v3025 = vadd.f32 %v2961, %v2993
        %v3026 = vadd.f32 %v2962, %v2994
        %v3027 = vadd.f32 %v2963, %v2995
        %v3028 = vadd.f32 %v2964, %v2996
        %v3029 = vadd.f32 %v2965, %v2997
        %v3030 = vadd.f32 %v2966, %v2998
        %v3031 = vadd.f32 %v2967, %v2999
        %v3032 = vadd.f32 %v2968, %v3000
        %v3033 = vadd.f32 %v2969, %v3001
        %v3034 = vadd.f32 %v2970, %v3002
        %v3035 = vadd.f32 %v2971, %v3003
        %v3036 = vadd.f32 %v2972, %v3004
        %v3037 = vadd.f32 %v2973, %v3005
        %v3038 = vadd.f32 %v2974, %v3006
        %v3039 = vadd.f32 %v2975, %v3007
        %v3040 = vadd.f32 %v2976, %v3008
        %v3041 = vadd.f32 %v2977, %v3009
        %v3042 = vadd.f32 %v2978, %v3010
        %v3043 = vadd.f32 %v2979, %v3011
        %v3044 = vadd.f32 %v2980, %v3012
        %v3045 = vadd.f32 %v2981, %v3013
        %v3046 = vadd.f32 %v2982, %v3014
        %v3047 = vtanh.pop %v3015
        %v3048 = vtanh.pop %v3016
        %v3049 = vtanh.pop %v3017
        %v3050 = vtanh.pop %v3018
        %v3051 = vtanh.pop %v3019
        %v3052 = vtanh.pop %v3020
        %v3053 = vtanh.pop %v3021
        %v3054 = vtanh.pop %v3022
        %v3055 = vtanh.pop %v3023
        %v3056 = vtanh.pop %v3024
        %v3057 = vtanh.pop %v3025
        %v3058 = vtanh.pop %v3026
        %v3059 = vtanh.pop %v3027
        %v3060 = vtanh.pop %v3028
        %v3061 = vtanh.pop %v3029
        %v3062 = vtanh.pop %v3030
        %v3063 = vtanh.pop %v3031
        %v3064 = vtanh.pop %v3032
        %v3065 = vtanh.pop %v3033
        %v3066 = vtanh.pop %v3034
        %v3067 = vtanh.pop %v3035
        %v3068 = vtanh.pop %v3036
        %v3069 = vtanh.pop %v3037
        %v3070 = vtanh.pop %v3038
        %v3071 = vtanh.pop %v3039
        %v3072 = vtanh.pop %v3040
        %v3073 = vtanh.pop %v3041
        %v3074 = vtanh.pop %v3042
        %v3075 = vtanh.pop %v3043
        %v3076 = vtanh.pop %v3044
        %v3077 = vtanh.pop %v3045
        %v3078 = vtanh.pop %v3046
        %v3079 = vmul.f32 %v2887, %v3047
        %v3080 = vmul.f32 %v2888, %v3048
        %v3081 = vmul.f32 %v2889, %v3049
        %v3082 = vmul.f32 %v2890, %v3050
        %v3083 = vmul.f32 %v2891, %v3051
        %v3084 = vmul.f32 %v2892, %v3052
        %v3085 = vmul.f32 %v2893, %v3053
        %v3086 = vmul.f32 %v2894, %v3054
        %v3087 = vmul.f32 %v2895, %v3055
        %v3088 = vmul.f32 %v2896, %v3056
        %v3089 = vmul.f32 %v2897, %v3057
        %v3090 = vmul.f32 %v2898, %v3058
        %v3091 = vmul.f32 %v2899, %v3059
        %v3092 = vmul.f32 %v2900, %v3060
        %v3093 = vmul.f32 %v2901, %v3061
        %v3094 = vmul.f32 %v2902, %v3062
        %v3095 = vmul.f32 %v2903, %v3063
        %v3096 = vmul.f32 %v2904, %v3064
        %v3097 = vmul.f32 %v2905, %v3065
        %v3098 = vmul.f32 %v2906, %v3066
        %v3099 = vmul.f32 %v2907, %v3067
        %v3100 = vmul.f32 %v2908, %v3068
        %v3101 = vmul.f32 %v2909, %v3069
        %v3102 = vmul.f32 %v2910, %v3070
        %v3103 = vmul.f32 %v2911, %v3071
        %v3104 = vmul.f32 %v2912, %v3072
        %v3105 = vmul.f32 %v2913, %v3073
        %v3106 = vmul.f32 %v2914, %v3074
        %v3107 = vmul.f32 %v2915, %v3075
        %v3108 = vmul.f32 %v2916, %v3076
        %v3109 = vmul.f32 %v2917, %v3077
        %v3110 = vmul.f32 %v2918, %v3078
        %3111 = vst [vmem:[%s427] sm:$0xff] %v3079
        %3112 = vst [vmem:[%s427 + $0x8] sm:$0xff] %v3080
        %3113 = vst [vmem:[%s427 + $0x10] sm:$0xff] %v3081
        %3114 = vst [vmem:[%s427 + $0x18] sm:$0xff] %v3082
        %3115 = vst [vmem:[%s427 + $0x20] sm:$0xff] %v3083
        %3116 = vst [vmem:[%s427 + $0x28] sm:$0xff] %v3084
        %3117 = vst [vmem:[%s427 + $0x30] sm:$0xff] %v3085
        %3118 = vst [vmem:[%s427 + $0x38] sm:$0xff] %v3086
        %3119 = vst [vmem:[%s427 + $0x40] sm:$0xff] %v3087
        %3120 = vst [vmem:[%s427 + $0x48] sm:$0xff] %v3088
        %3121 = vst [vmem:[%s427 + $0x50] sm:$0xff] %v3089
        %3122 = vst [vmem:[%s427 + $0x58] sm:$0xff] %v3090
        %3123 = vst [vmem:[%s427 + $0x60] sm:$0xff] %v3091
        %3124 = vst [vmem:[%s427 + $0x68] sm:$0xff] %v3092
        %3125 = vst [vmem:[%s427 + $0x70] sm:$0xff] %v3093
        %3126 = vst [vmem:[%s427 + $0x78] sm:$0xff] %v3094
        %3127 = vst [vmem:[%s427 + $0x80] sm:$0xff] %v3095
        %3128 = vst [vmem:[%s427 + $0x88] sm:$0xff] %v3096
        %3129 = vst [vmem:[%s427 + $0x90] sm:$0xff] %v3097
        %3130 = vst [vmem:[%s427 + $0x98] sm:$0xff] %v3098
        %3131 = vst [vmem:[%s427 + $0xa0] sm:$0xff] %v3099
        %3132 = vst [vmem:[%s427 + $0xa8] sm:$0xff] %v3100
        %3133 = vst [vmem:[%s427 + $0xb0] sm:$0xff] %v3101
        %3134 = vst [vmem:[%s427 + $0xb8] sm:$0xff] %v3102
        %3135 = vst [vmem:[%s427 + $0xc0] sm:$0xff] %v3103
        %3136 = vst [vmem:[%s427 + $0xc8] sm:$0xff] %v3104
        %3137 = vst [vmem:[%s427 + $0xd0] sm:$0xff] %v3105
        %3138 = vst [vmem:[%s427 + $0xd8] sm:$0xff] %v3106
        %3139 = vst [vmem:[%s427 + $0xe0] sm:$0xff] %v3107
        %3140 = vst [vmem:[%s427 + $0xe8] sm:$0xff] %v3108
        %3141 = vst [vmem:[%s427 + $0xf0] sm:$0xff] %v3109
        %3142 = vst [vmem:[%s427 + $0xf8] sm:$0xff] %v3110
        %3143 = vst [vmem:[%s434] sm:$0xff] %v3015
        %3144 = vst [vmem:[%s434 + $0x8] sm:$0xff] %v3016
        %3145 = vst [vmem:[%s434 + $0x10] sm:$0xff] %v3017
        %3146 = vst [vmem:[%s434 + $0x18] sm:$0xff] %v3018
        %3147 = vst [vmem:[%s434 + $0x20] sm:$0xff] %v3019
        %3148 = vst [vmem:[%s434 + $0x28] sm:$0xff] %v3020
        %3149 = vst [vmem:[%s434 + $0x30] sm:$0xff] %v3021
        %3150 = vst [vmem:[%s434 + $0x38] sm:$0xff] %v3022
        %3151 = vst [vmem:[%s434 + $0x40] sm:$0xff] %v3023
        %3152 = vst [vmem:[%s434 + $0x48] sm:$0xff] %v3024
        %3153 = vst [vmem:[%s434 + $0x50] sm:$0xff] %v3025
        %3154 = vst [vmem:[%s434 + $0x58] sm:$0xff] %v3026
        %3155 = vst [vmem:[%s434 + $0x60] sm:$0xff] %v3027
        %3156 = vst [vmem:[%s434 + $0x68] sm:$0xff] %v3028
        %3157 = vst [vmem:[%s434 + $0x70] sm:$0xff] %v3029
        %3158 = vst [vmem:[%s434 + $0x78] sm:$0xff] %v3030
        %3159 = vst [vmem:[%s434 + $0x80] sm:$0xff] %v3031
        %3160 = vst [vmem:[%s434 + $0x88] sm:$0xff] %v3032
        %3161 = vst [vmem:[%s434 + $0x90] sm:$0xff] %v3033
        %3162 = vst [vmem:[%s434 + $0x98] sm:$0xff] %v3034
        %3163 = vst [vmem:[%s434 + $0xa0] sm:$0xff] %v3035
        %3164 = vst [vmem:[%s434 + $0xa8] sm:$0xff] %v3036
        %3165 = vst [vmem:[%s434 + $0xb0] sm:$0xff] %v3037
        %3166 = vst [vmem:[%s434 + $0xb8] sm:$0xff] %v3038
        %3167 = vst [vmem:[%s434 + $0xc0] sm:$0xff] %v3039
        %3168 = vst [vmem:[%s434 + $0xc8] sm:$0xff] %v3040
        %3169 = vst [vmem:[%s434 + $0xd0] sm:$0xff] %v3041
        %3170 = vst [vmem:[%s434 + $0xd8] sm:$0xff] %v3042
        %3171 = vst [vmem:[%s434 + $0xe0] sm:$0xff] %v3043
        %3172 = vst [vmem:[%s434 + $0xe8] sm:$0xff] %v3044
        %3173 = vst [vmem:[%s434 + $0xf0] sm:$0xff] %v3045
        %3174 = vst [vmem:[%s434 + $0xf8] sm:$0xff] %v3046
        %s3175 = sand.u32 %s201, 1
        %s3176 = scalar_lea.sflag [#allocation4], %s3175
        %s3177 = sand.u32 %s201, 1
        %s3178 = smul.addr %s3177, 256
        %s3179 = scalar_lea.vmem [#allocation10], %s3178
        %s3180 = sand.u32 %s229, 1
        %s3181 = scalar_lea.sflag [#allocation12], %s3180
        %s3182 = sand.u32 %s229, 1
        %s3183 = smul.addr %s3182, 256
        %s3184 = scalar_lea.vmem [#allocation11], %s3183
        // Predicated region
        $region61: #{tpu_custom_call.1} parent=43 // pred_check
          %p3185 = pneg %p211
        $region62: #{tpu_custom_call.1} parent=43 // pred_check_branch
          %3187 = sbr.rel (%p3185) target = $region64
        $region63: #{tpu_custom_call.1} parent=43 // pred_region
          %s3188 = smul.u32 2, %s37
          %3190 = vsyncadd %s3176, 0
          %s3191 = smul.addr %s36, 32
          %s3192 = sadd.s32 %s3188, %s3191
          %s3193 = smul.addr %s3192, 8
          %s3194 = scalar_lea.hbm %s6, %s3193
          %s3195 = sshll.u32 %s3179, 4
          %s3196 = int_to_ptr.vmem [resolvable:$true] %s3195
          %s3197 = sshll.u32 %s3194, 4
          %s3198 = int_to_ptr.hbm [resolvable:$true] %s3197
          %3203 = dma.vmem_to_hbm [thread:$0]  %s3196, 4096, %s3198, %s3176, 256, 256, 16
        $region64: #{tpu_custom_call.1} parent=43 // pred_fallthru
          _
        // Predicated region
        $region65: #{tpu_custom_call.1} parent=43 // pred_check
          %p3204 = pneg %p239
        $region66: #{tpu_custom_call.1} parent=43 // pred_check_branch
          %3206 = sbr.rel (%p3204) target = $region68
        $region67: #{tpu_custom_call.1} parent=43 // pred_region
          %s3207 = smul.u32 2, %s37
          %3209 = vsyncadd %s3181, 0
          %s3210 = smul.addr %s36, 32
          %s3211 = sadd.s32 %s3207, %s3210
          %s3212 = smul.addr %s3211, 8
          %s3213 = scalar_lea.hbm %s7, %s3212
          %s3214 = sshll.u32 %s3184, 4
          %s3215 = int_to_ptr.vmem [resolvable:$true] %s3214
          %s3216 = sshll.u32 %s3213, 4
          %s3217 = int_to_ptr.hbm [resolvable:$true] %s3216
          %3222 = dma.vmem_to_hbm [thread:$0]  %s3215, 4096, %s3217, %s3181, 256, 256, 16
        $region68: #{tpu_custom_call.1} parent=43 // pred_fallthru
          _
      $region44: #{tpu_custom_call.1} parent=5 // pred_fallthru
        _
      %p3223 = scmp.le.s32.totalorder 2, %s27
      // Predicated region
      $region69: #{tpu_custom_call.1} parent=5 // pred_check
        %p3224 = pneg %p3223
      $region70: #{tpu_custom_call.1} parent=5 // pred_check_branch
        %3226 = sbr.rel (%p3224) target = $region72
      $region71: #{tpu_custom_call.1} parent=5 // pred_region
        %s3227 = ssub.s32 %s27, 2
        // Predicated region
        $region73: #{tpu_custom_call.1} parent=71 // pred_check
          %p3228 = pneg %p217
        $region74: #{tpu_custom_call.1} parent=71 // pred_check_branch
          %3230 = sbr.rel (%p3228) target = $region76
        $region75: #{tpu_custom_call.1} parent=71 // pred_region
          %s3231 = sand.u32 %s202, 1
          %s3232 = scalar_lea.sflag [#allocation4], %s3231
          %s3233 = sand.u32 %s202, 1
          %s3234 = smul.addr %s3233, 256
          %s3235 = scalar_lea.vmem [#allocation10], %s3234
          %3237 = dma.done %s3232, 4096
        $region76: #{tpu_custom_call.1} parent=71 // pred_fallthru
          _
        // Predicated region
        $region77: #{tpu_custom_call.1} parent=71 // pred_check
          %p3238 = pneg %p245
        $region78: #{tpu_custom_call.1} parent=71 // pred_check_branch
          %3240 = sbr.rel (%p3238) target = $region80
        $region79: #{tpu_custom_call.1} parent=71 // pred_region
          %s3241 = sand.u32 %s230, 1
          %s3242 = scalar_lea.sflag [#allocation12], %s3241
          %s3243 = sand.u32 %s230, 1
          %s3244 = smul.addr %s3243, 256
          %s3245 = scalar_lea.vmem [#allocation11], %s3244
          %3247 = dma.done %s3242, 4096
        $region80: #{tpu_custom_call.1} parent=71 // pred_fallthru
          _
      $region72: #{tpu_custom_call.1} parent=5 // pred_fallthru
        _
    $region6: #{tpu_custom_call.1} parent=1 // loop_footer
      %s31 = sadd.s32 1, %s27
    $region7: #{tpu_custom_call.1} parent=1 // loop_footer_branch
      %26 = sbr.rel target = $region3
    $region8: #{tpu_custom_call.1} parent=1 // loop_exit
      _
    %3248 = vsyncpa [#allocation3], 1
    %s3249 = scalar_lea.sflag [#allocation3], 1
    %3250 = vsyncpa %s3249, 1
    %3251 = vsyncpa [#allocation6], 1
    %s3252 = scalar_lea.sflag [#allocation6], 1
    %3253 = vsyncpa %s3252, 1
    %3254 = vsyncpa [#allocation9], 1
    %3255 = vsyncpa [#allocation4], 1
    %s3256 = scalar_lea.sflag [#allocation4], 1
    %3257 = vsyncpa %s3256, 1
    %3258 = vsyncpa [#allocation12], 1
    %s3259 = scalar_lea.sflag [#allocation12], 1
    %3260 = vsyncpa %s3259, 1

</llo_original>
